<compile_context>
chip_gen: v5e
topology: v5e:2x2
jax: 0.10.0
libtpu: 0.0.40
codegen_flags: <defaults>
</compile_context>

<pallas_src>
import functools
import math

import jax
import jax.numpy as jnp
from jax.experimental import pallas as pl
from jax.experimental.pallas import tpu as pltpu

MAX_ROW_TILE = 4096          # rows (lanes) per grid step; <1 MiB/buffer at C<=48
LN_EPS = 1e-5
CARRY_DTYPE = jnp.bfloat16   # activation dtype between kernels (f32 math inside)


def _round_up(n, m):
    return ((n + m - 1) // m) * m


def _cdiv(a, b):
    return (a + b - 1) // b


def _plan_rows(hw, batch, max_tile=MAX_ROW_TILE):
    """Lane-dense plan: tile multiple of 128 rows; >=2 total grid steps."""
    min_steps = 2 if batch == 1 else 1
    steps = max(min_steps, _cdiv(hw, max_tile))
    tile = _round_up(_cdiv(hw, steps), 128)
    return tile, tile * steps


# ----------------------------- in-kernel helpers -----------------------------

def _exact_gelu(y):
    return 0.5 * y * (1.0 + jax.lax.erf(y / jnp.sqrt(2.0).astype(y.dtype)))


def _channel_ln(x, g, b, eps):
    """ETU-Net LayerNorm over channels (sublane axis): biased var,
    (x-mean)/(sqrt(var)+eps)*g + b.   x: (C, T); g, b: (C, 1)."""
    mean = jnp.mean(x, axis=0, keepdims=True)
    var = jnp.mean((x - mean) ** 2, axis=0, keepdims=True)
    inv = pl.reciprocal(jnp.sqrt(var) + eps, approx=True)   # EUP slot, ~free
    return (x - mean) * inv * g + b


def _emit_eca_pools(xn_next, rowsum_ref, cpart_ref, hw, tile):
    """Partial pools of the NEXT attention's LN(x), consumed by the ECA gates:
    per-row channel sums (lane-dense block) + masked per-tile channel sums."""
    r = pl.program_id(1)
    rowsum_ref[0] = jnp.sum(xn_next, axis=0, keepdims=True)              # (1, T)
    ridx = jax.lax.broadcasted_iota(jnp.int32, (1, tile), 1) + r * tile
    valid = (ridx < hw).astype(jnp.float32)                              # (1, T)
    csum = jnp.sum(xn_next * valid, axis=1, keepdims=True)               # (C, 1)
    cpart_ref[0, 0] = jnp.broadcast_to(csum, (csum.shape[0], 8))


# ----------------------------- Pallas kernels -----------------------------

def _inproj_kernel(x2_ref, x1_ref, wa_ref, wb_ref, b0_ref, g0_ref, bb0_ref,
                   gn_ref, bn_ref, o_ref, rowsum_ref, cpart_ref,
                   *, eps, hw, tile):
    """concat([x2, x1up]) channels -> Conv1x1 -> LayerNorm, + ECA pool partials."""
    x2 = x2_ref[0].astype(jnp.float32)                 # (C2, T)
    x1 = x1_ref[0].astype(jnp.float32)                 # (C1, T)
    y = jnp.dot(wa_ref[...], x2, preferred_element_type=jnp.float32)
    y = y + jnp.dot(wb_ref[...], x1, preferred_element_type=jnp.float32)
    y = y + b0_ref[...]
    x0 = _channel_ln(y, g0_ref[...], bb0_ref[...], eps)
    o_ref[0] = x0.astype(o_ref.dtype)
    xn_next = _channel_ln(x0, gn_ref[...], bn_ref[...], eps)
    _emit_eca_pools(xn_next, rowsum_ref, cpart_ref, hw, tile)


def _layer_kernel(x_ref, wattn_ref, battn_ref, ga_ref, ba_ref, gh_ref, gw_ref,
                  w1_ref, b1_ref, w2_ref, b2_ref, gf_ref, bf_ref,
                  gn_ref, bn_ref, o_ref, rowsum_ref, cpart_ref,
                  *, eps, hw, tile, c):
    """Fused transformer layer: PreNorm + ECA attention + residual, then
    PreNorm + FeedForward + residual; emits ECA pool partials for next layer."""
    x = x_ref[0].astype(jnp.float32)                                   # (C, T)
    # --- attention: LN -> single (3C,C)@(C,T) matmul -> gate mix -> residual
    xn = _channel_ln(x, ga_ref[...], ba_ref[...], eps)
    y = jnp.dot(wattn_ref[0], xn, preferred_element_type=jnp.float32)  # (3C, T)
    gh = gh_ref[0]                                                     # (1, T)
    gw = gw_ref[0]                                                     # (1, T)
    xa = x + y[:c] + gh * y[c:2 * c] + gw * y[2 * c:] + battn_ref[...]
    # --- feed-forward: LN -> Conv1x1 -> GELU -> Conv1x1 -> residual
    xn2 = _channel_ln(xa, gf_ref[...], bf_ref[...], eps)
    h = jnp.dot(w1_ref[...], xn2, preferred_element_type=jnp.float32) + b1_ref[...]
    h = _exact_gelu(h)
    xo = xa + jnp.dot(w2_ref[...], h, preferred_element_type=jnp.float32) + b2_ref[...]
    o_ref[0] = xo.astype(o_ref.dtype)
    # --- ECA pool partials for the NEXT layer's attention (ignored after last)
    xn_next = _channel_ln(xo, gn_ref[...], bn_ref[...], eps)
    _emit_eca_pools(xn_next, rowsum_ref, cpart_ref, hw, tile)


# ----------------------------- Pallas wrappers -----------------------------

def _const2d(shape):
    return pl.BlockSpec(shape, lambda b, r: (0, 0))


def _parallel2():
    return pltpu.CompilerParams(dimension_semantics=("parallel", "parallel"))


def _col(v):
    return v.reshape(-1, 1).astype(jnp.float32)


def input_projection(x2_r, x1_r, w0, b0, ln_g, ln_b, nxt_g, nxt_b, hw, tile):
    B, C2, HWp = x2_r.shape
    C1 = x1_r.shape[1]
    Cout = w0.shape[1]
    R = HWp // tile
    kern = functools.partial(_inproj_kernel, eps=LN_EPS, hw=hw, tile=tile)
    return pl.pallas_call(
        kern,
        out_shape=(jax.ShapeDtypeStruct((B, Cout, HWp), CARRY_DTYPE),
                   jax.ShapeDtypeStruct((B, 1, HWp), jnp.float32),
                   jax.ShapeDtypeStruct((B, R, Cout, 8), jnp.float32)),
        grid=(B, R),
        in_specs=[
            pl.BlockSpec((1, C2, tile), lambda b, r: (b, 0, r)),
            pl.BlockSpec((1, C1, tile), lambda b, r: (b, 0, r)),
            _const2d((Cout, C2)),
            _const2d((Cout, C1)),
            _const2d((Cout, 1)),
            _const2d((Cout, 1)),
            _const2d((Cout, 1)),
            _const2d((Cout, 1)),
            _const2d((Cout, 1)),
        ],
        out_specs=(
            pl.BlockSpec((1, Cout, tile), lambda b, r: (b, 0, r)),
            pl.BlockSpec((1, 1, tile), lambda b, r: (b, 0, r)),
            pl.BlockSpec((1, 1, Cout, 8), lambda b, r: (b, r, 0, 0)),
        ),
        compiler_params=_parallel2(),
    )(x2_r, x1_r,
      w0[:C2].T.astype(jnp.float32), w0[C2:].T.astype(jnp.float32),
      _col(b0), _col(ln_g), _col(ln_b), _col(nxt_g), _col(nxt_b))


def _finish_gates(rowsum, cpart, attn_p, H, W, hw, hwp):
    """k-tap ECA conv1d + sigmoid on tiny pooled vectors; build per-row lanes."""
    B = rowsum.shape[0]
    C = cpart.shape[2]
    chan_mean = cpart[:, :, :, 0].sum(axis=1) / hw                       # (B, C)
    gate_c = jax.nn.sigmoid(_conv1d_same(chan_mean, attn_p["q_w1d"]))
    rs = rowsum[:, 0, :hw].reshape(B, H, W)
    gate_h = jax.nn.sigmoid(_conv1d_same(rs.sum(axis=2) / (W * C), attn_p["k_w1d"]))
    gate_w = jax.nn.sigmoid(_conv1d_same(rs.sum(axis=1) / (H * C), attn_p["v_w1d"]))
    ghr = jnp.repeat(gate_h, W, axis=1)          # rows are (h, w) row-major
    gwr = jnp.tile(gate_w, (1, H))
    if hwp != hw:
        ghr = jnp.pad(ghr, ((0, 0), (0, hwp - hw)))
        gwr = jnp.pad(gwr, ((0, 0), (0, hwp - hw)))
    return gate_c, ghr.reshape(B, 1, hwp), gwr.reshape(B, 1, hwp)


def layer_block(x_p, gates, lp, nxt_ln, hw, tile):
    B, C, HWp = x_p.shape
    R = HWp // tile
    p, f = lp["attn"], lp["ff"]
    gate_c, ghr, gwr = gates

    # algebraic fold:  cat(q,k,v) @ Wo  ==  sum_i (xn*g_i) @ (W_i @ Wo_i);
    # channel gate folded into the first weight block (per batch), h/w gates
    # commute past the matmul and are applied as lane vectors in-kernel.
    inner = p["q_w"].shape[1]
    wo_q, wo_k, wo_v = p["o_w"][:inner], p["o_w"][inner:2 * inner], p["o_w"][2 * inner:]
    w_q = (p["q_w"] @ wo_q).T                             # (Cout, Cin)
    w_k = (p["k_w"] @ wo_k).T
    w_v = (p["v_w"] @ wo_v).T
    w_qb = w_q[None, :, :] * gate_c[:, None, :]           # (B, C, C)
    w_attn = jnp.concatenate(
        [w_qb, jnp.broadcast_to(w_k, (B, C, C)), jnp.broadcast_to(w_v, (B, C, C))],
        axis=1).astype(jnp.float32)                        # (B, 3C, C)
    b_attn = (p["q_b"] @ wo_q + p["k_b"] @ wo_k + p["v_b"] @ wo_v
              + p["o_b"]).reshape(C, 1).astype(jnp.float32)

    Ch = f["w1"].shape[1]
    kern = functools.partial(_layer_kernel, eps=LN_EPS, hw=hw, tile=tile, c=C)
    return pl.pallas_call(
        kern,
        out_shape=(jax.ShapeDtypeStruct((B, C, HWp), x_p.dtype),
                   jax.ShapeDtypeStruct((B, 1, HWp), jnp.float32),
                   jax.ShapeDtypeStruct((B, R, C, 8), jnp.float32)),
        grid=(B, R),
        in_specs=[
            pl.BlockSpec((1, C, tile), lambda b, r: (b, 0, r)),     # x
            pl.BlockSpec((1, 3 * C, C), lambda b, r: (b, 0, 0)),    # attn weight (per batch)
            _const2d((C, 1)),                                        # attn bias
            _const2d((C, 1)), _const2d((C, 1)),                      # attn LN g, b
            pl.BlockSpec((1, 1, tile), lambda b, r: (b, 0, r)),      # height gate lanes
            pl.BlockSpec((1, 1, tile), lambda b, r: (b, 0, r)),      # width gate lanes
            _const2d((Ch, C)), _const2d((Ch, 1)),                    # ff w1^T, b1
            _const2d((C, Ch)), _const2d((C, 1)),                     # ff w2^T, b2
            _const2d((C, 1)), _const2d((C, 1)),                      # ff LN g, b
            _const2d((C, 1)), _const2d((C, 1)),                      # next-attn LN g, b
        ],
        out_specs=(
            pl.BlockSpec((1, C, tile), lambda b, r: (b, 0, r)),
            pl.BlockSpec((1, 1, tile), lambda b, r: (b, 0, r)),
            pl.BlockSpec((1, 1, C, 8), lambda b, r: (b, r, 0, 0)),
        ),
        compiler_params=_parallel2(),
    )(x_p, w_attn, b_attn,
      _col(p["ln_g"]), _col(p["ln_b"]), ghr, gwr,
      f["w1"].T.astype(jnp.float32), _col(f["b1"]),
      f["w2"].T.astype(jnp.float32), _col(f["b2"]),
      _col(f["ln_g"]), _col(f["ln_b"]),
      _col(nxt_ln["ln_g"]), _col(nxt_ln["ln_b"]))


# ----------------------------- JAX glue pieces -----------------------------

def eca_ksize(channels, gamma=2, b=1):
    k = int(abs((math.log(channels, 2) + b) / gamma))
    return k if k % 2 else k + 1


def _conv1d_same(seq, w):
    """PyTorch Conv1d(1,1,k,padding=(k-1)//2,bias=False).  seq: (B,L), w: (k,)."""
    k = w.shape[0]
    pad = (k - 1) // 2
    s = jnp.pad(seq, ((0, 0), (pad, pad)))
    L = seq.shape[1]
    out = jnp.zeros_like(seq)
    for i in range(k):
        out = out + w[i] * s[:, i:i + L]
    return out


def _interp_matrix(n_in, n_out):
    """Bilinear (align_corners=True) 1-D interpolation matrix (n_out, n_in)."""
    if n_in == 1:
        return jnp.ones((n_out, 1), jnp.float32)
    src = jnp.arange(n_out, dtype=jnp.float32) * (n_in - 1) / (n_out - 1)
    i0 = jnp.floor(src).astype(jnp.int32)
    i1 = jnp.minimum(i0 + 1, n_in - 1)
    f = src - i0.astype(jnp.float32)
    cols = jnp.arange(n_in)
    m = ((cols[None, :] == i0[:, None]) * (1.0 - f)[:, None]
         + (cols[None, :] == i1[:, None]) * f[:, None])
    return m.astype(jnp.float32)


def upsample_bilinear_2x_nchw(x):
    """nn.Upsample(scale_factor=2, bilinear, align_corners=True), NCHW->NCHW,
    as two small interpolation matmuls (MXU-friendly, no gathers)."""
    B, C, H, W = x.shape
    My = _interp_matrix(H, 2 * H)
    Mx = _interp_matrix(W, 2 * W)
    return jnp.einsum('oh,pw,bchw->bcop', My, Mx, x)


# ----------------------------- forward -----------------------------

def up_forward(params, x1, x2):
    """Up.forward (bilinear=True path).  x1, x2: NCHW float32 -> NCHW float32."""
    B, C2, H2, W2 = x2.shape
    C1 = x1.shape[1]

    x1u = upsample_bilinear_2x_nchw(x1)
    diffY = H2 - x1u.shape[2]
    diffX = W2 - x1u.shape[3]
    if diffY or diffX:
        x1u = jnp.pad(x1u, ((0, 0), (0, 0),
                            (diffY // 2, diffY - diffY // 2),
                            (diffX // 2, diffX - diffX // 2)))

    hw = H2 * W2
    tile, hwp = _plan_rows(hw, B)
    x2r = x2.reshape(B, C2, hw)            # channels-first rows: no transpose
    x1r = x1u.reshape(B, C1, hw)
    if hwp != hw:
        padc = ((0, 0), (0, 0), (0, hwp - hw))
        x2r = jnp.pad(x2r, padc)
        x1r = jnp.pad(x1r, padc)

    layers = params["layers"]
    first_ln = layers[0]["attn"] if layers else {"ln_g": params["ln0_g"],
                                                 "ln_b": params["ln0_b"]}
    # Conv2d(dim, emb_dim, 1) on the channel concat, fused with LayerNorm and the
    # ECA pool partials of the first transformer layer.
    # TODO(synk): AKConv(emb_dim, emb_dim, 2) is referenced but not defined in the
    # provided source; it is shape-preserving here and is treated as identity.
    x_p, rowsum, cpart = input_projection(
        x2r, x1r, params["conv0_w"], params["conv0_b"],
        params["ln0_g"], params["ln0_b"], first_ln["ln_g"], first_ln["ln_b"],
        hw, tile)

    for i, lp in enumerate(layers):
        nxt = layers[i + 1]["attn"] if i + 1 < len(layers) else lp["attn"]  # dummy for last
        gates = _finish_gates(rowsum, cpart, lp["attn"], H2, W2, hw, hwp)
        x_p, rowsum, cpart = layer_block(x_p, gates, lp, nxt, hw, tile)

    out = x_p[:, :, :hw] if hwp != hw else x_p
    return out.reshape(B, -1, H2, W2).astype(jnp.float32)


# ----------------------------- param init -----------------------------

def init_params(key, dim, emb_dim, depth, heads, dim_head, mlp_mult):
    inner = heads * dim_head
    ks = eca_ksize(emb_dim)
    keys = iter(jax.random.split(key, 8 + depth * 32))

    def w(shape, scale=0.05):
        return scale * jax.random.normal(next(keys), shape, jnp.float32)

    params = {
        "conv0_w": w((dim, emb_dim)), "conv0_b": w((emb_dim,), 0.01),
        "ln0_g": jnp.ones((emb_dim,), jnp.float32),
        "ln0_b": jnp.zeros((emb_dim,), jnp.float32),
        "layers": [],
    }
    for _ in range(depth):
        attn = {
            "ln_g": jnp.ones((emb_dim,), jnp.float32),
            "ln_b": jnp.zeros((emb_dim,), jnp.float32),
            "q_w1d": w((ks,), 0.3), "q_w": w((emb_dim, inner)), "q_b": w((inner,), 0.01),
            "k_w1d": w((ks,), 0.3), "k_w": w((emb_dim, inner)), "k_b": w((inner,), 0.01),
            "v_w1d": w((ks,), 0.3), "v_w": w((emb_dim, inner)), "v_b": w((inner,), 0.01),
            "o_w": w((3 * inner, emb_dim)), "o_b": w((emb_dim,), 0.01),
        }
        ff = {
            "ln_g": jnp.ones((emb_dim,), jnp.float32),
            "ln_b": jnp.zeros((emb_dim,), jnp.float32),
            "w1": w((emb_dim, emb_dim * mlp_mult)), "b1": w((emb_dim * mlp_mult,), 0.01),
            "w2": w((emb_dim * mlp_mult, emb_dim)), "b2": w((emb_dim,), 0.01),
        }
        params["layers"].append({"attn": attn, "ff": ff})
    return params


# ----------------------------- driver -----------------------------

if __name__ == "__main__":
    key = jax.random.PRNGKey(0)
    k1, k2, kp = jax.random.split(key, 3)

    # x1 is 2x-upsampled to x2's spatial size, channels are concatenated.
    B, C1, H1, W1 = 2, 4, 8, 8
    C2, H2, W2 = 4, 16, 16
    dim = C1 + C2            # channels after concat = 8
    emb_dim = 16
    depth, heads, mlp_mult = 1, 1, 2
    dim_head = 64            # Transformer default

    x1 = jax.random.normal(k1, (B, C1, H1, W1), jnp.float32)
    x2 = jax.random.normal(k2, (B, C2, H2, W2), jnp.float32)
    params = init_params(kp, dim, emb_dim, depth, heads, dim_head, mlp_mult)

    fwd = jax.jit(up_forward)
    out = jax.block_until_ready(fwd(params, x1, x2))

    assert out.shape == (B, emb_dim, H2, W2), out.shape
    assert bool(jnp.all(jnp.isfinite(out)))
    print("KERNEL_OK")
</pallas_src>

<mosaic_0001>
module attributes {stable_mosaic.version = 11 : i64} {
  func.func @_inproj_kernel(%arg0: i32, %arg1: i32, %arg2: memref<1x4x256xf32, #tpu.memory_space<vmem>>, %arg3: memref<1x4x256xf32, #tpu.memory_space<vmem>>, %arg4: memref<16x4xf32, #tpu.memory_space<vmem>>, %arg5: memref<16x4xf32, #tpu.memory_space<vmem>>, %arg6: memref<16x1xf32, #tpu.memory_space<vmem>>, %arg7: memref<16x1xf32, #tpu.memory_space<vmem>>, %arg8: memref<16x1xf32, #tpu.memory_space<vmem>>, %arg9: memref<16x1xf32, #tpu.memory_space<vmem>>, %arg10: memref<16x1xf32, #tpu.memory_space<vmem>>, %arg11: memref<1x16x256xbf16, #tpu.memory_space<vmem>>, %arg12: memref<1x1x256xf32, #tpu.memory_space<vmem>>, %arg13: memref<1x1x16x8xf32, #tpu.memory_space<vmem>>) attributes {dimension_semantics = [#tpu.dimension_semantics<parallel>, #tpu.dimension_semantics<parallel>], iteration_bounds = array<i64: 2, 1>, scalar_prefetch = 0 : i64, scratch_operands = 0 : i64, tpu.core_type = #tpu.core_type<tc>, window_params = [{transform_indices = @transform_0, window_bounds = array<i64: 1, 4, 256>}, {transform_indices = @transform_1, window_bounds = array<i64: 1, 4, 256>}, {pipeline_mode = #tpu.pipeline_mode<synchronous>, transform_indices = @transform_2, window_bounds = array<i64: 16, 4>}, {pipeline_mode = #tpu.pipeline_mode<synchronous>, transform_indices = @transform_3, window_bounds = array<i64: 16, 4>}, {pipeline_mode = #tpu.pipeline_mode<synchronous>, transform_indices = @transform_4, window_bounds = array<i64: 16, 1>}, {pipeline_mode = #tpu.pipeline_mode<synchronous>, transform_indices = @transform_5, window_bounds = array<i64: 16, 1>}, {pipeline_mode = #tpu.pipeline_mode<synchronous>, transform_indices = @transform_6, window_bounds = array<i64: 16, 1>}, {pipeline_mode = #tpu.pipeline_mode<synchronous>, transform_indices = @transform_7, window_bounds = array<i64: 16, 1>}, {pipeline_mode = #tpu.pipeline_mode<synchronous>, transform_indices = @transform_8, window_bounds = array<i64: 16, 1>}, {transform_indices = @transform_9, window_bounds = array<i64: 1, 16, 256>}, {transform_indices = @transform_10, window_bounds = array<i64: 1, 1, 256>}, {transform_indices = @transform_11, window_bounds = array<i64: 1, 1, 16, 8>}]} {
    %c0 = arith.constant 0 : index
    %c0_0 = arith.constant 0 : index
    %c0_1 = arith.constant 0 : index
    %0 = vector.load %arg2[%c0, %c0_0, %c0_1] : memref<1x4x256xf32, #tpu.memory_space<vmem>>, vector<1x4x256xf32>
    %1 = vector.shape_cast %0 : vector<1x4x256xf32> to vector<4x256xf32>
    %c0_2 = arith.constant 0 : index
    %c0_3 = arith.constant 0 : index
    %c0_4 = arith.constant 0 : index
    %2 = vector.load %arg3[%c0_2, %c0_3, %c0_4] : memref<1x4x256xf32, #tpu.memory_space<vmem>>, vector<1x4x256xf32>
    %3 = vector.shape_cast %2 : vector<1x4x256xf32> to vector<4x256xf32>
    %c0_5 = arith.constant 0 : index
    %c0_6 = arith.constant 0 : index
    %4 = vector.load %arg4[%c0_5, %c0_6] : memref<16x4xf32, #tpu.memory_space<vmem>>, vector<16x4xf32>
    %cst = arith.constant dense<0.000000e+00> : vector<16x256xf32>
    %5 = tpu.matmul %4, %1, %cst {dimension_numbers = #tpu.dot_dimension_numbers<[1], [0], [0], [1], [0, 0, 1, 1], [], []>} : vector<16x4xf32>, vector<4x256xf32>, vector<16x256xf32> -> vector<16x256xf32>
    %c0_7 = arith.constant 0 : index
    %c0_8 = arith.constant 0 : index
    %6 = vector.load %arg5[%c0_7, %c0_8] : memref<16x4xf32, #tpu.memory_space<vmem>>, vector<16x4xf32>
    %cst_9 = arith.constant dense<0.000000e+00> : vector<16x256xf32>
    %7 = tpu.matmul %6, %3, %cst_9 {dimension_numbers = #tpu.dot_dimension_numbers<[1], [0], [0], [1], [0, 0, 1, 1], [], []>} : vector<16x4xf32>, vector<4x256xf32>, vector<16x256xf32> -> vector<16x256xf32>
    %8 = arith.addf %5, %7 : vector<16x256xf32>
    %c0_10 = arith.constant 0 : index
    %c0_11 = arith.constant 0 : index
    %9 = vector.load %arg6[%c0_10, %c0_11] : memref<16x1xf32, #tpu.memory_space<vmem>>, vector<16x1xf32>
    %10 = vector.broadcast %9 : vector<16x1xf32> to vector<16x256xf32>
    %11 = arith.addf %8, %10 : vector<16x256xf32>
    %c0_12 = arith.constant 0 : index
    %c0_13 = arith.constant 0 : index
    %12 = vector.load %arg7[%c0_12, %c0_13] : memref<16x1xf32, #tpu.memory_space<vmem>>, vector<16x1xf32>
    %c0_14 = arith.constant 0 : index
    %c0_15 = arith.constant 0 : index
    %13 = vector.load %arg8[%c0_14, %c0_15] : memref<16x1xf32, #tpu.memory_space<vmem>>, vector<16x1xf32>
    %cst_16 = arith.constant dense<0.000000e+00> : vector<256xf32>
    %14 = vector.multi_reduction <add>, %11, %cst_16 [0] : vector<16x256xf32> to vector<256xf32>
    %15 = vector.shape_cast %14 : vector<256xf32> to vector<1x256xf32>
    %cst_17 = arith.constant 1.600000e+01 : f32
    %16 = vector.broadcast %cst_17 : f32 to vector<1x256xf32>
    %17 = arith.divf %15, %16 : vector<1x256xf32>
    %18 = vector.broadcast %17 : vector<1x256xf32> to vector<16x256xf32>
    %19 = arith.subf %11, %18 : vector<16x256xf32>
    %20 = arith.mulf %19, %19 : vector<16x256xf32>
    %cst_18 = arith.constant dense<0.000000e+00> : vector<256xf32>
    %21 = vector.multi_reduction <add>, %20, %cst_18 [0] : vector<16x256xf32> to vector<256xf32>
    %22 = vector.shape_cast %21 : vector<256xf32> to vector<1x256xf32>
    %cst_19 = arith.constant 1.600000e+01 : f32
    %23 = vector.broadcast %cst_19 : f32 to vector<1x256xf32>
    %24 = arith.divf %22, %23 : vector<1x256xf32>
    %25 = math.sqrt %24 : vector<1x256xf32>
    %cst_20 = arith.constant 9.99999974E-6 : f32
    %26 = vector.broadcast %cst_20 : f32 to vector<1x256xf32>
    %27 = arith.addf %25, %26 : vector<1x256xf32>
    %28 = tpu.reciprocal %27 {approx = true} : vector<1x256xf32> -> vector<1x256xf32>
    %29 = vector.broadcast %17 : vector<1x256xf32> to vector<16x256xf32>
    %30 = arith.subf %11, %29 : vector<16x256xf32>
    %31 = vector.broadcast %28 : vector<1x256xf32> to vector<16x256xf32>
    %32 = arith.mulf %30, %31 : vector<16x256xf32>
    %33 = vector.broadcast %12 : vector<16x1xf32> to vector<16x256xf32>
    %34 = arith.mulf %32, %33 : vector<16x256xf32>
    %35 = vector.broadcast %13 : vector<16x1xf32> to vector<16x256xf32>
    %36 = arith.addf %34, %35 : vector<16x256xf32>
    %37 = arith.truncf %36 : vector<16x256xf32> to vector<16x256xbf16>
    %c0_21 = arith.constant 0 : index
    %c0_22 = arith.constant 0 : index
    %c0_23 = arith.constant 0 : index
    %38 = vector.load %arg11[%c0_21, %c0_22, %c0_23] : memref<1x16x256xbf16, #tpu.memory_space<vmem>>, vector<1x16x256xbf16>
    %39 = vector.shape_cast %38 : vector<1x16x256xbf16> to vector<16x256xbf16>
    %40 = vector.shape_cast %37 : vector<16x256xbf16> to vector<1x16x256xbf16>
    tpu.vector_store %arg11[%c0_21, %c0_22, %c0_23], %40 {strides = array<i32>} : memref<1x16x256xbf16, #tpu.memory_space<vmem>>, vector<1x16x256xbf16>,
    %c0_24 = arith.constant 0 : index
    %c0_25 = arith.constant 0 : index
    %41 = vector.load %arg9[%c0_24, %c0_25] : memref<16x1xf32, #tpu.memory_space<vmem>>, vector<16x1xf32>
    %c0_26 = arith.constant 0 : index
    %c0_27 = arith.constant 0 : index
    %42 = vector.load %arg10[%c0_26, %c0_27] : memref<16x1xf32, #tpu.memory_space<vmem>>, vector<16x1xf32>
    %cst_28 = arith.constant dense<0.000000e+00> : vector<256xf32>
    %43 = vector.multi_reduction <add>, %36, %cst_28 [0] : vector<16x256xf32> to vector<256xf32>
    %44 = vector.shape_cast %43 : vector<256xf32> to vector<1x256xf32>
    %cst_29 = arith.constant 1.600000e+01 : f32
    %45 = vector.broadcast %cst_29 : f32 to vector<1x256xf32>
    %46 = arith.divf %44, %45 : vector<1x256xf32>
    %47 = vector.broadcast %46 : vector<1x256xf32> to vector<16x256xf32>
    %48 = arith.subf %36, %47 : vector<16x256xf32>
    %49 = arith.mulf %48, %48 : vector<16x256xf32>
    %cst_30 = arith.constant dense<0.000000e+00> : vector<256xf32>
    %50 = vector.multi_reduction <add>, %49, %cst_30 [0] : vector<16x256xf32> to vector<256xf32>
    %51 = vector.shape_cast %50 : vector<256xf32> to vector<1x256xf32>
    %cst_31 = arith.constant 1.600000e+01 : f32
    %52 = vector.broadcast %cst_31 : f32 to vector<1x256xf32>
    %53 = arith.divf %51, %52 : vector<1x256xf32>
    %54 = math.sqrt %53 : vector<1x256xf32>
    %cst_32 = arith.constant 9.99999974E-6 : f32
    %55 = vector.broadcast %cst_32 : f32 to vector<1x256xf32>
    %56 = arith.addf %54, %55 : vector<1x256xf32>
    %57 = tpu.reciprocal %56 {approx = true} : vector<1x256xf32> -> vector<1x256xf32>
    %58 = vector.broadcast %46 : vector<1x256xf32> to vector<16x256xf32>
    %59 = arith.subf %36, %58 : vector<16x256xf32>
    %60 = vector.broadcast %57 : vector<1x256xf32> to vector<16x256xf32>
    %61 = arith.mulf %59, %60 : vector<16x256xf32>
    %62 = vector.broadcast %41 : vector<16x1xf32> to vector<16x256xf32>
    %63 = arith.mulf %61, %62 : vector<16x256xf32>
    %64 = vector.broadcast %42 : vector<16x1xf32> to vector<16x256xf32>
    %65 = arith.addf %63, %64 : vector<16x256xf32>
    %cst_33 = arith.constant dense<0.000000e+00> : vector<256xf32>
    %66 = vector.multi_reduction <add>, %65, %cst_33 [0] : vector<16x256xf32> to vector<256xf32>
    %67 = vector.shape_cast %66 : vector<256xf32> to vector<1x256xf32>
    %c0_34 = arith.constant 0 : index
    %c0_35 = arith.constant 0 : index
    %c0_36 = arith.constant 0 : index
    %68 = vector.load %arg12[%c0_34, %c0_35, %c0_36] : memref<1x1x256xf32, #tpu.memory_space<vmem>>, vector<1x1x256xf32>
    %69 = vector.shape_cast %68 : vector<1x1x256xf32> to vector<1x256xf32>
    %70 = vector.shape_cast %67 : vector<1x256xf32> to vector<1x1x256xf32>
    tpu.vector_store %arg12[%c0_34, %c0_35, %c0_36], %70 {strides = array<i32>} : memref<1x1x256xf32, #tpu.memory_space<vmem>>, vector<1x1x256xf32>,
    %71 = tpu.iota {dimensions = array<i32: 1>} : vector<1x256xi32>
    %c256_i32 = arith.constant 256 : i32
    %72 = arith.muli %arg1, %c256_i32 : i32
    %73 = vector.broadcast %72 : i32 to vector<1x256xi32>
    %74 = arith.addi %71, %73 : vector<1x256xi32>
    %c256_i32_37 = arith.constant 256 : i32
    %75 = vector.broadcast %c256_i32_37 : i32 to vector<1x256xi32>
    %76 = arith.cmpi slt, %74, %75 : vector<1x256xi32>
    %77 = arith.extui %76 : vector<1x256xi1> to vector<1x256xi32>
    %78 = arith.sitofp %77 : vector<1x256xi32> to vector<1x256xf32>
    %79 = vector.broadcast %78 : vector<1x256xf32> to vector<16x256xf32>
    %80 = arith.mulf %65, %79 : vector<16x256xf32>
    %cst_38 = arith.constant dense<0.000000e+00> : vector<16xf32>
    %81 = vector.multi_reduction <add>, %80, %cst_38 [1] : vector<16x256xf32> to vector<16xf32>
    %82 = vector.shape_cast %81 : vector<16xf32> to vector<16x1xf32>
    %83 = vector.shape_cast %82 : vector<16x1xf32> to vector<16x1xf32>
    %84 = vector.broadcast %83 : vector<16x1xf32> to vector<16x8xf32>
    %c0_39 = arith.constant 0 : index
    %c0_40 = arith.constant 0 : index
    %c0_41 = arith.constant 0 : index
    %c0_42 = arith.constant 0 : index
    %85 = vector.load %arg13[%c0_39, %c0_40, %c0_41, %c0_42] : memref<1x1x16x8xf32, #tpu.memory_space<vmem>>, vector<1x1x16x8xf32>
    %86 = vector.shape_cast %85 : vector<1x1x16x8xf32> to vector<16x8xf32>
    %87 = vector.shape_cast %84 : vector<16x8xf32> to vector<1x1x16x8xf32>
    tpu.vector_store %arg13[%c0_39, %c0_40, %c0_41, %c0_42], %87 {strides = array<i32>} : memref<1x1x16x8xf32, #tpu.memory_space<vmem>>, vector<1x1x16x8xf32>,
    return
  }
  func.func @transform_0(%arg0: i32, %arg1: i32) -> (i32, i32, i32) {
    %c0_i32 = arith.constant 0 : i32
    %c0_i32_0 = arith.constant 0 : i32
    return %arg0, %c0_i32, %arg1 : i32, i32, i32
  }
  func.func @transform_1(%arg0: i32, %arg1: i32) -> (i32, i32, i32) {
    %c0_i32 = arith.constant 0 : i32
    %c0_i32_0 = arith.constant 0 : i32
    return %arg0, %c0_i32, %arg1 : i32, i32, i32
  }
  func.func @transform_2(%arg0: i32, %arg1: i32) -> (i32, i32) {
    %c0_i32 = arith.constant 0 : i32
    %c0_i32_0 = arith.constant 0 : i32
    %c0_i32_1 = arith.constant 0 : i32
    return %c0_i32, %c0_i32_0 : i32, i32
  }
  func.func @transform_3(%arg0: i32, %arg1: i32) -> (i32, i32) {
    %c0_i32 = arith.constant 0 : i32
    %c0_i32_0 = arith.constant 0 : i32
    %c0_i32_1 = arith.constant 0 : i32
    return %c0_i32, %c0_i32_0 : i32, i32
  }
  func.func @transform_4(%arg0: i32, %arg1: i32) -> (i32, i32) {
    %c0_i32 = arith.constant 0 : i32
    %c0_i32_0 = arith.constant 0 : i32
    %c0_i32_1 = arith.constant 0 : i32
    return %c0_i32, %c0_i32_0 : i32, i32
  }
  func.func @transform_5(%arg0: i32, %arg1: i32) -> (i32, i32) {
    %c0_i32 = arith.constant 0 : i32
    %c0_i32_0 = arith.constant 0 : i32
    %c0_i32_1 = arith.constant 0 : i32
    return %c0_i32, %c0_i32_0 : i32, i32
  }
  func.func @transform_6(%arg0: i32, %arg1: i32) -> (i32, i32) {
    %c0_i32 = arith.constant 0 : i32
    %c0_i32_0 = arith.constant 0 : i32
    %c0_i32_1 = arith.constant 0 : i32
    return %c0_i32, %c0_i32_0 : i32, i32
  }
  func.func @transform_7(%arg0: i32, %arg1: i32) -> (i32, i32) {
    %c0_i32 = arith.constant 0 : i32
    %c0_i32_0 = arith.constant 0 : i32
    %c0_i32_1 = arith.constant 0 : i32
    return %c0_i32, %c0_i32_0 : i32, i32
  }
  func.func @transform_8(%arg0: i32, %arg1: i32) -> (i32, i32) {
    %c0_i32 = arith.constant 0 : i32
    %c0_i32_0 = arith.constant 0 : i32
    %c0_i32_1 = arith.constant 0 : i32
    return %c0_i32, %c0_i32_0 : i32, i32
  }
  func.func @transform_9(%arg0: i32, %arg1: i32) -> (i32, i32, i32) {
    %c0_i32 = arith.constant 0 : i32
    %c0_i32_0 = arith.constant 0 : i32
    return %arg0, %c0_i32, %arg1 : i32, i32, i32
  }
  func.func @transform_10(%arg0: i32, %arg1: i32) -> (i32, i32, i32) {
    %c0_i32 = arith.constant 0 : i32
    %c0_i32_0 = arith.constant 0 : i32
    return %arg0, %c0_i32, %arg1 : i32, i32, i32
  }
  func.func @transform_11(%arg0: i32, %arg1: i32) -> (i32, i32, i32, i32) {
    %c0_i32 = arith.constant 0 : i32
    %c0_i32_0 = arith.constant 0 : i32
    %c0_i32_1 = arith.constant 0 : i32
    return %arg0, %arg1, %c0_i32, %c0_i32_0 : i32, i32, i32, i32
  }
}

module attributes {stable_mosaic.version = 11 : i64} {
  func.func @_layer_kernel(%arg0: i32, %arg1: i32, %arg2: memref<1x16x256xbf16, #tpu.memory_space<vmem>>, %arg3: memref<1x48x16xf32, #tpu.memory_space<vmem>>, %arg4: memref<16x1xf32, #tpu.memory_space<vmem>>, %arg5: memref<16x1xf32, #tpu.memory_space<vmem>>, %arg6: memref<16x1xf32, #tpu.memory_space<vmem>>, %arg7: memref<1x1x256xf32, #tpu.memory_space<vmem>>, %arg8: memref<1x1x256xf32, #tpu.memory_space<vmem>>, %arg9: memref<32x16xf32, #tpu.memory_space<vmem>>, %arg10: memref<32x1xf32, #tpu.memory_space<vmem>>, %arg11: memref<16x32xf32, #tpu.memory_space<vmem>>, %arg12: memref<16x1xf32, #tpu.memory_space<vmem>>, %arg13: memref<16x1xf32, #tpu.memory_space<vmem>>, %arg14: memref<16x1xf32, #tpu.memory_space<vmem>>, %arg15: memref<16x1xf32, #tpu.memory_space<vmem>>, %arg16: memref<16x1xf32, #tpu.memory_space<vmem>>, %arg17: memref<1x16x256xbf16, #tpu.memory_space<vmem>>, %arg18: memref<1x1x256xf32, #tpu.memory_space<vmem>>, %arg19: memref<1x1x16x8xf32, #tpu.memory_space<vmem>>) attributes {dimension_semantics = [#tpu.dimension_semantics<parallel>, #tpu.dimension_semantics<parallel>], iteration_bounds = array<i64: 2, 1>, scalar_prefetch = 0 : i64, scratch_operands = 0 : i64, tpu.core_type = #tpu.core_type<tc>, window_params = [{transform_indices = @transform_0, window_bounds = array<i64: 1, 16, 256>}, {transform_indices = @transform_1, window_bounds = array<i64: 1, 48, 16>}, {pipeline_mode = #tpu.pipeline_mode<synchronous>, transform_indices = @transform_2, window_bounds = array<i64: 16, 1>}, {pipeline_mode = #tpu.pipeline_mode<synchronous>, transform_indices = @transform_3, window_bounds = array<i64: 16, 1>}, {pipeline_mode = #tpu.pipeline_mode<synchronous>, transform_indices = @transform_4, window_bounds = array<i64: 16, 1>}, {transform_indices = @transform_5, window_bounds = array<i64: 1, 1, 256>}, {transform_indices = @transform_6, window_bounds = array<i64: 1, 1, 256>}, {pipeline_mode = #tpu.pipeline_mode<synchronous>, transform_indices = @transform_7, window_bounds = array<i64: 32, 16>}, {pipeline_mode = #tpu.pipeline_mode<synchronous>, transform_indices = @transform_8, window_bounds = array<i64: 32, 1>}, {pipeline_mode = #tpu.pipeline_mode<synchronous>, transform_indices = @transform_9, window_bounds = array<i64: 16, 32>}, {pipeline_mode = #tpu.pipeline_mode<synchronous>, transform_indices = @transform_10, window_bounds = array<i64: 16, 1>}, {pipeline_mode = #tpu.pipeline_mode<synchronous>, transform_indices = @transform_11, window_bounds = array<i64: 16, 1>}, {pipeline_mode = #tpu.pipeline_mode<synchronous>, transform_indices = @transform_12, window_bounds = array<i64: 16, 1>}, {pipeline_mode = #tpu.pipeline_mode<synchronous>, transform_indices = @transform_13, window_bounds = array<i64: 16, 1>}, {pipeline_mode = #tpu.pipeline_mode<synchronous>, transform_indices = @transform_14, window_bounds = array<i64: 16, 1>}, {transform_indices = @transform_15, window_bounds = array<i64: 1, 16, 256>}, {transform_indices = @transform_16, window_bounds = array<i64: 1, 1, 256>}, {transform_indices = @transform_17, window_bounds = array<i64: 1, 1, 16, 8>}]} {
    %c0 = arith.constant 0 : index
    %c0_0 = arith.constant 0 : index
    %c0_1 = arith.constant 0 : index
    %0 = vector.load %arg2[%c0, %c0_0, %c0_1] : memref<1x16x256xbf16, #tpu.memory_space<vmem>>, vector<1x16x256xbf16>
    %1 = vector.shape_cast %0 : vector<1x16x256xbf16> to vector<16x256xbf16>
    %2 = arith.extf %1 : vector<16x256xbf16> to vector<16x256xf32>
    %c0_2 = arith.constant 0 : index
    %c0_3 = arith.constant 0 : index
    %3 = vector.load %arg5[%c0_2, %c0_3] : memref<16x1xf32, #tpu.memory_space<vmem>>, vector<16x1xf32>
    %c0_4 = arith.constant 0 : index
    %c0_5 = arith.constant 0 : index
    %4 = vector.load %arg6[%c0_4, %c0_5] : memref<16x1xf32, #tpu.memory_space<vmem>>, vector<16x1xf32>
    %cst = arith.constant dense<0.000000e+00> : vector<256xf32>
    %5 = vector.multi_reduction <add>, %2, %cst [0] : vector<16x256xf32> to vector<256xf32>
    %6 = vector.shape_cast %5 : vector<256xf32> to vector<1x256xf32>
    %cst_6 = arith.constant 1.600000e+01 : f32
    %7 = vector.broadcast %cst_6 : f32 to vector<1x256xf32>
    %8 = arith.divf %6, %7 : vector<1x256xf32>
    %9 = vector.broadcast %8 : vector<1x256xf32> to vector<16x256xf32>
    %10 = arith.subf %2, %9 : vector<16x256xf32>
    %11 = arith.mulf %10, %10 : vector<16x256xf32>
    %cst_7 = arith.constant dense<0.000000e+00> : vector<256xf32>
    %12 = vector.multi_reduction <add>, %11, %cst_7 [0] : vector<16x256xf32> to vector<256xf32>
    %13 = vector.shape_cast %12 : vector<256xf32> to vector<1x256xf32>
    %cst_8 = arith.constant 1.600000e+01 : f32
    %14 = vector.broadcast %cst_8 : f32 to vector<1x256xf32>
    %15 = arith.divf %13, %14 : vector<1x256xf32>
    %16 = math.sqrt %15 : vector<1x256xf32>
    %cst_9 = arith.constant 9.99999974E-6 : f32
    %17 = vector.broadcast %cst_9 : f32 to vector<1x256xf32>
    %18 = arith.addf %16, %17 : vector<1x256xf32>
    %19 = tpu.reciprocal %18 {approx = true} : vector<1x256xf32> -> vector<1x256xf32>
    %20 = vector.broadcast %8 : vector<1x256xf32> to vector<16x256xf32>
    %21 = arith.subf %2, %20 : vector<16x256xf32>
    %22 = vector.broadcast %19 : vector<1x256xf32> to vector<16x256xf32>
    %23 = arith.mulf %21, %22 : vector<16x256xf32>
    %24 = vector.broadcast %3 : vector<16x1xf32> to vector<16x256xf32>
    %25 = arith.mulf %23, %24 : vector<16x256xf32>
    %26 = vector.broadcast %4 : vector<16x1xf32> to vector<16x256xf32>
    %27 = arith.addf %25, %26 : vector<16x256xf32>
    %c0_10 = arith.constant 0 : index
    %c0_11 = arith.constant 0 : index
    %c0_12 = arith.constant 0 : index
    %28 = vector.load %arg3[%c0_10, %c0_11, %c0_12] : memref<1x48x16xf32, #tpu.memory_space<vmem>>, vector<1x48x16xf32>
    %29 = vector.shape_cast %28 : vector<1x48x16xf32> to vector<48x16xf32>
    %cst_13 = arith.constant dense<0.000000e+00> : vector<48x256xf32>
    %30 = tpu.matmul %29, %27, %cst_13 {dimension_numbers = #tpu.dot_dimension_numbers<[1], [0], [0], [1], [0, 0, 1, 1], [], []>} : vector<48x16xf32>, vector<16x256xf32>, vector<48x256xf32> -> vector<48x256xf32>
    %c0_14 = arith.constant 0 : index
    %c0_15 = arith.constant 0 : index
    %c0_16 = arith.constant 0 : index
    %31 = vector.load %arg7[%c0_14, %c0_15, %c0_16] : memref<1x1x256xf32, #tpu.memory_space<vmem>>, vector<1x1x256xf32>
    %32 = vector.shape_cast %31 : vector<1x1x256xf32> to vector<1x256xf32>
    %c0_17 = arith.constant 0 : index
    %c0_18 = arith.constant 0 : index
    %c0_19 = arith.constant 0 : index
    %33 = vector.load %arg8[%c0_17, %c0_18, %c0_19] : memref<1x1x256xf32, #tpu.memory_space<vmem>>, vector<1x1x256xf32>
    %34 = vector.shape_cast %33 : vector<1x1x256xf32> to vector<1x256xf32>
    %35 = vector.extract_strided_slice %30 {offsets = [0, 0], sizes = [16, 256], strides = [1, 1]} : vector<48x256xf32> to vector<16x256xf32>
    %36 = arith.addf %2, %35 : vector<16x256xf32>
    %37 = vector.extract_strided_slice %30 {offsets = [16, 0], sizes = [16, 256], strides = [1, 1]} : vector<48x256xf32> to vector<16x256xf32>
    %38 = vector.broadcast %32 : vector<1x256xf32> to vector<16x256xf32>
    %39 = arith.mulf %38, %37 : vector<16x256xf32>
    %40 = arith.addf %36, %39 : vector<16x256xf32>
    %41 = vector.extract_strided_slice %30 {offsets = [32, 0], sizes = [16, 256], strides = [1, 1]} : vector<48x256xf32> to vector<16x256xf32>
    %42 = vector.broadcast %34 : vector<1x256xf32> to vector<16x256xf32>
    %43 = arith.mulf %42, %41 : vector<16x256xf32>
    %44 = arith.addf %40, %43 : vector<16x256xf32>
    %c0_20 = arith.constant 0 : index
    %c0_21 = arith.constant 0 : index
    %45 = vector.load %arg4[%c0_20, %c0_21] : memref<16x1xf32, #tpu.memory_space<vmem>>, vector<16x1xf32>
    %46 = vector.broadcast %45 : vector<16x1xf32> to vector<16x256xf32>
    %47 = arith.addf %44, %46 : vector<16x256xf32>
    %c0_22 = arith.constant 0 : index
    %c0_23 = arith.constant 0 : index
    %48 = vector.load %arg13[%c0_22, %c0_23] : memref<16x1xf32, #tpu.memory_space<vmem>>, vector<16x1xf32>
    %c0_24 = arith.constant 0 : index
    %c0_25 = arith.constant 0 : index
    %49 = vector.load %arg14[%c0_24, %c0_25] : memref<16x1xf32, #tpu.memory_space<vmem>>, vector<16x1xf32>
    %cst_26 = arith.constant dense<0.000000e+00> : vector<256xf32>
    %50 = vector.multi_reduction <add>, %47, %cst_26 [0] : vector<16x256xf32> to vector<256xf32>
    %51 = vector.shape_cast %50 : vector<256xf32> to vector<1x256xf32>
    %cst_27 = arith.constant 1.600000e+01 : f32
    %52 = vector.broadcast %cst_27 : f32 to vector<1x256xf32>
    %53 = arith.divf %51, %52 : vector<1x256xf32>
    %54 = vector.broadcast %53 : vector<1x256xf32> to vector<16x256xf32>
    %55 = arith.subf %47, %54 : vector<16x256xf32>
    %56 = arith.mulf %55, %55 : vector<16x256xf32>
    %cst_28 = arith.constant dense<0.000000e+00> : vector<256xf32>
    %57 = vector.multi_reduction <add>, %56, %cst_28 [0] : vector<16x256xf32> to vector<256xf32>
    %58 = vector.shape_cast %57 : vector<256xf32> to vector<1x256xf32>
    %cst_29 = arith.constant 1.600000e+01 : f32
    %59 = vector.broadcast %cst_29 : f32 to vector<1x256xf32>
    %60 = arith.divf %58, %59 : vector<1x256xf32>
    %61 = math.sqrt %60 : vector<1x256xf32>
    %cst_30 = arith.constant 9.99999974E-6 : f32
    %62 = vector.broadcast %cst_30 : f32 to vector<1x256xf32>
    %63 = arith.addf %61, %62 : vector<1x256xf32>
    %64 = tpu.reciprocal %63 {approx = true} : vector<1x256xf32> -> vector<1x256xf32>
    %65 = vector.broadcast %53 : vector<1x256xf32> to vector<16x256xf32>
    %66 = arith.subf %47, %65 : vector<16x256xf32>
    %67 = vector.broadcast %64 : vector<1x256xf32> to vector<16x256xf32>
    %68 = arith.mulf %66, %67 : vector<16x256xf32>
    %69 = vector.broadcast %48 : vector<16x1xf32> to vector<16x256xf32>
    %70 = arith.mulf %68, %69 : vector<16x256xf32>
    %71 = vector.broadcast %49 : vector<16x1xf32> to vector<16x256xf32>
    %72 = arith.addf %70, %71 : vector<16x256xf32>
    %c0_31 = arith.constant 0 : index
    %c0_32 = arith.constant 0 : index
    %73 = vector.load %arg9[%c0_31, %c0_32] : memref<32x16xf32, #tpu.memory_space<vmem>>, vector<32x16xf32>
    %cst_33 = arith.constant dense<0.000000e+00> : vector<32x256xf32>
    %74 = tpu.matmul %73, %72, %cst_33 {dimension_numbers = #tpu.dot_dimension_numbers<[1], [0], [0], [1], [0, 0, 1, 1], [], []>} : vector<32x16xf32>, vector<16x256xf32>, vector<32x256xf32> -> vector<32x256xf32>
    %c0_34 = arith.constant 0 : index
    %c0_35 = arith.constant 0 : index
    %75 = vector.load %arg10[%c0_34, %c0_35] : memref<32x1xf32, #tpu.memory_space<vmem>>, vector<32x1xf32>
    %76 = vector.broadcast %75 : vector<32x1xf32> to vector<32x256xf32>
    %77 = arith.addf %74, %76 : vector<32x256xf32>
    %cst_36 = arith.constant 5.000000e-01 : f32
    %78 = vector.broadcast %cst_36 : f32 to vector<32x256xf32>
    %79 = arith.mulf %78, %77 : vector<32x256xf32>
    %cst_37 = arith.constant 2.000000e+00 : f32
    %80 = math.sqrt %cst_37 : f32
    %81 = vector.broadcast %80 : f32 to vector<32x256xf32>
    %82 = arith.divf %77, %81 : vector<32x256xf32>
    %83 = math.erf %82 : vector<32x256xf32>
    %cst_38 = arith.constant 1.000000e+00 : f32
    %84 = vector.broadcast %cst_38 : f32 to vector<32x256xf32>
    %85 = arith.addf %84, %83 : vector<32x256xf32>
    %86 = arith.mulf %79, %85 : vector<32x256xf32>
    %c0_39 = arith.constant 0 : index
    %c0_40 = arith.constant 0 : index
    %87 = vector.load %arg11[%c0_39, %c0_40] : memref<16x32xf32, #tpu.memory_space<vmem>>, vector<16x32xf32>
    %cst_41 = arith.constant dense<0.000000e+00> : vector<16x256xf32>
    %88 = tpu.matmul %87, %86, %cst_41 {dimension_numbers = #tpu.dot_dimension_numbers<[1], [0], [0], [1], [0, 0, 1, 1], [], []>} : vector<16x32xf32>, vector<32x256xf32>, vector<16x256xf32> -> vector<16x256xf32>
    %89 = arith.addf %47, %88 : vector<16x256xf32>
    %c0_42 = arith.constant 0 : index
    %c0_43 = arith.constant 0 : index
    %90 = vector.load %arg12[%c0_42, %c0_43] : memref<16x1xf32, #tpu.memory_space<vmem>>, vector<16x1xf32>
    %91 = vector.broadcast %90 : vector<16x1xf32> to vector<16x256xf32>
    %92 = arith.addf %89, %91 : vector<16x256xf32>
    %93 = arith.truncf %92 : vector<16x256xf32> to vector<16x256xbf16>
    %c0_44 = arith.constant 0 : index
    %c0_45 = arith.constant 0 : index
    %c0_46 = arith.constant 0 : index
    %94 = vector.load %arg17[%c0_44, %c0_45, %c0_46] : memref<1x16x256xbf16, #tpu.memory_space<vmem>>, vector<1x16x256xbf16>
    %95 = vector.shape_cast %94 : vector<1x16x256xbf16> to vector<16x256xbf16>
    %96 = vector.shape_cast %93 : vector<16x256xbf16> to vector<1x16x256xbf16>
    tpu.vector_store %arg17[%c0_44, %c0_45, %c0_46], %96 {strides = array<i32>} : memref<1x16x256xbf16, #tpu.memory_space<vmem>>, vector<1x16x256xbf16>,
    %c0_47 = arith.constant 0 : index
    %c0_48 = arith.constant 0 : index
    %97 = vector.load %arg15[%c0_47, %c0_48] : memref<16x1xf32, #tpu.memory_space<vmem>>, vector<16x1xf32>
    %c0_49 = arith.constant 0 : index
    %c0_50 = arith.constant 0 : index
    %98 = vector.load %arg16[%c0_49, %c0_50] : memref<16x1xf32, #tpu.memory_space<vmem>>, vector<16x1xf32>
    %cst_51 = arith.constant dense<0.000000e+00> : vector<256xf32>
    %99 = vector.multi_reduction <add>, %92, %cst_51 [0] : vector<16x256xf32> to vector<256xf32>
    %100 = vector.shape_cast %99 : vector<256xf32> to vector<1x256xf32>
    %cst_52 = arith.constant 1.600000e+01 : f32
    %101 = vector.broadcast %cst_52 : f32 to vector<1x256xf32>
    %102 = arith.divf %100, %101 : vector<1x256xf32>
    %103 = vector.broadcast %102 : vector<1x256xf32> to vector<16x256xf32>
    %104 = arith.subf %92, %103 : vector<16x256xf32>
    %105 = arith.mulf %104, %104 : vector<16x256xf32>
    %cst_53 = arith.constant dense<0.000000e+00> : vector<256xf32>
    %106 = vector.multi_reduction <add>, %105, %cst_53 [0] : vector<16x256xf32> to vector<256xf32>
    %107 = vector.shape_cast %106 : vector<256xf32> to vector<1x256xf32>
    %cst_54 = arith.constant 1.600000e+01 : f32
    %108 = vector.broadcast %cst_54 : f32 to vector<1x256xf32>
    %109 = arith.divf %107, %108 : vector<1x256xf32>
    %110 = math.sqrt %109 : vector<1x256xf32>
    %cst_55 = arith.constant 9.99999974E-6 : f32
    %111 = vector.broadcast %cst_55 : f32 to vector<1x256xf32>
    %112 = arith.addf %110, %111 : vector<1x256xf32>
    %113 = tpu.reciprocal %112 {approx = true} : vector<1x256xf32> -> vector<1x256xf32>
    %114 = vector.broadcast %102 : vector<1x256xf32> to vector<16x256xf32>
    %115 = arith.subf %92, %114 : vector<16x256xf32>
    %116 = vector.broadcast %113 : vector<1x256xf32> to vector<16x256xf32>
    %117 = arith.mulf %115, %116 : vector<16x256xf32>
    %118 = vector.broadcast %97 : vector<16x1xf32> to vector<16x256xf32>
    %119 = arith.mulf %117, %118 : vector<16x256xf32>
    %120 = vector.broadcast %98 : vector<16x1xf32> to vector<16x256xf32>
    %121 = arith.addf %119, %120 : vector<16x256xf32>
    %cst_56 = arith.constant dense<0.000000e+00> : vector<256xf32>
    %122 = vector.multi_reduction <add>, %121, %cst_56 [0] : vector<16x256xf32> to vector<256xf32>
    %123 = vector.shape_cast %122 : vector<256xf32> to vector<1x256xf32>
    %c0_57 = arith.constant 0 : index
    %c0_58 = arith.constant 0 : index
    %c0_59 = arith.constant 0 : index
    %124 = vector.load %arg18[%c0_57, %c0_58, %c0_59] : memref<1x1x256xf32, #tpu.memory_space<vmem>>, vector<1x1x256xf32>
    %125 = vector.shape_cast %124 : vector<1x1x256xf32> to vector<1x256xf32>
    %126 = vector.shape_cast %123 : vector<1x256xf32> to vector<1x1x256xf32>
    tpu.vector_store %arg18[%c0_57, %c0_58, %c0_59], %126 {strides = array<i32>} : memref<1x1x256xf32, #tpu.memory_space<vmem>>, vector<1x1x256xf32>,
    %127 = tpu.iota {dimensions = array<i32: 1>} : vector<1x256xi32>
    %c256_i32 = arith.constant 256 : i32
    %128 = arith.muli %arg1, %c256_i32 : i32
    %129 = vector.broadcast %128 : i32 to vector<1x256xi32>
    %130 = arith.addi %127, %129 : vector<1x256xi32>
    %c256_i32_60 = arith.constant 256 : i32
    %131 = vector.broadcast %c256_i32_60 : i32 to vector<1x256xi32>
    %132 = arith.cmpi slt, %130, %131 : vector<1x256xi32>
    %133 = arith.extui %132 : vector<1x256xi1> to vector<1x256xi32>
    %134 = arith.sitofp %133 : vector<1x256xi32> to vector<1x256xf32>
    %135 = vector.broadcast %134 : vector<1x256xf32> to vector<16x256xf32>
    %136 = arith.mulf %121, %135 : vector<16x256xf32>
    %cst_61 = arith.constant dense<0.000000e+00> : vector<16xf32>
    %137 = vector.multi_reduction <add>, %136, %cst_61 [1] : vector<16x256xf32> to vector<16xf32>
    %138 = vector.shape_cast %137 : vector<16xf32> to vector<16x1xf32>
    %139 = vector.shape_cast %138 : vector<16x1xf32> to vector<16x1xf32>
    %140 = vector.broadcast %139 : vector<16x1xf32> to vector<16x8xf32>
    %c0_62 = arith.constant 0 : index
    %c0_63 = arith.constant 0 : index
    %c0_64 = arith.constant 0 : index
    %c0_65 = arith.constant 0 : index
    %141 = vector.load %arg19[%c0_62, %c0_63, %c0_64, %c0_65] : memref<1x1x16x8xf32, #tpu.memory_space<vmem>>, vector<1x1x16x8xf32>
    %142 = vector.shape_cast %141 : vector<1x1x16x8xf32> to vector<16x8xf32>
    %143 = vector.shape_cast %140 : vector<16x8xf32> to vector<1x1x16x8xf32>
    tpu.vector_store %arg19[%c0_62, %c0_63, %c0_64, %c0_65], %143 {strides = array<i32>} : memref<1x1x16x8xf32, #tpu.memory_space<vmem>>, vector<1x1x16x8xf32>,
    return
  }
  func.func @transform_0(%arg0: i32, %arg1: i32) -> (i32, i32, i32) {
    %c0_i32 = arith.constant 0 : i32
    %c0_i32_0 = arith.constant 0 : i32
    return %arg0, %c0_i32, %arg1 : i32, i32, i32
  }
  func.func @transform_1(%arg0: i32, %arg1: i32) -> (i32, i32, i32) {
    %c0_i32 = arith.constant 0 : i32
    %c0_i32_0 = arith.constant 0 : i32
    %c0_i32_1 = arith.constant 0 : i32
    return %arg0, %c0_i32, %c0_i32_0 : i32, i32, i32
  }
  func.func @transform_2(%arg0: i32, %arg1: i32) -> (i32, i32) {
    %c0_i32 = arith.constant 0 : i32
    %c0_i32_0 = arith.constant 0 : i32
    %c0_i32_1 = arith.constant 0 : i32
    return %c0_i32, %c0_i32_0 : i32, i32
  }
  func.func @transform_3(%arg0: i32, %arg1: i32) -> (i32, i32) {
    %c0_i32 = arith.constant 0 : i32
    %c0_i32_0 = arith.constant 0 : i32
    %c0_i32_1 = arith.constant 0 : i32
    return %c0_i32, %c0_i32_0 : i32, i32
  }
  func.func @transform_4(%arg0: i32, %arg1: i32) -> (i32, i32) {
    %c0_i32 = arith.constant 0 : i32
    %c0_i32_0 = arith.constant 0 : i32
    %c0_i32_1 = arith.constant 0 : i32
    return %c0_i32, %c0_i32_0 : i32, i32
  }
  func.func @transform_5(%arg0: i32, %arg1: i32) -> (i32, i32, i32) {
    %c0_i32 = arith.constant 0 : i32
    %c0_i32_0 = arith.constant 0 : i32
    return %arg0, %c0_i32, %arg1 : i32, i32, i32
  }
  func.func @transform_6(%arg0: i32, %arg1: i32) -> (i32, i32, i32) {
    %c0_i32 = arith.constant 0 : i32
    %c0_i32_0 = arith.constant 0 : i32
    return %arg0, %c0_i32, %arg1 : i32, i32, i32
  }
  func.func @transform_7(%arg0: i32, %arg1: i32) -> (i32, i32) {
    %c0_i32 = arith.constant 0 : i32
    %c0_i32_0 = arith.constant 0 : i32
    %c0_i32_1 = arith.constant 0 : i32
    return %c0_i32, %c0_i32_0 : i32, i32
  }
  func.func @transform_8(%arg0: i32, %arg1: i32) -> (i32, i32) {
    %c0_i32 = arith.constant 0 : i32
    %c0_i32_0 = arith.constant 0 : i32
    %c0_i32_1 = arith.constant 0 : i32
    return %c0_i32, %c0_i32_0 : i32, i32
  }
  func.func @transform_9(%arg0: i32, %arg1: i32) -> (i32, i32) {
    %c0_i32 = arith.constant 0 : i32
    %c0_i32_0 = arith.constant 0 : i32
    %c0_i32_1 = arith.constant 0 : i32
    return %c0_i32, %c0_i32_0 : i32, i32
  }
  func.func @transform_10(%arg0: i32, %arg1: i32) -> (i32, i32) {
    %c0_i32 = arith.constant 0 : i32
    %c0_i32_0 = arith.constant 0 : i32
    %c0_i32_1 = arith.constant 0 : i32
    return %c0_i32, %c0_i32_0 : i32, i32
  }
  func.func @transform_11(%arg0: i32, %arg1: i32) -> (i32, i32) {
    %c0_i32 = arith.constant 0 : i32
    %c0_i32_0 = arith.constant 0 : i32
    %c0_i32_1 = arith.constant 0 : i32
    return %c0_i32, %c0_i32_0 : i32, i32
  }
  func.func @transform_12(%arg0: i32, %arg1: i32) -> (i32, i32) {
    %c0_i32 = arith.constant 0 : i32
    %c0_i32_0 = arith.constant 0 : i32
    %c0_i32_1 = arith.constant 0 : i32
    return %c0_i32, %c0_i32_0 : i32, i32
  }
  func.func @transform_13(%arg0: i32, %arg1: i32) -> (i32, i32) {
    %c0_i32 = arith.constant 0 : i32
    %c0_i32_0 = arith.constant 0 : i32
    %c0_i32_1 = arith.constant 0 : i32
    return %c0_i32, %c0_i32_0 : i32, i32
  }
  func.func @transform_14(%arg0: i32, %arg1: i32) -> (i32, i32) {
    %c0_i32 = arith.constant 0 : i32
    %c0_i32_0 = arith.constant 0 : i32
    %c0_i32_1 = arith.constant 0 : i32
    return %c0_i32, %c0_i32_0 : i32, i32
  }
  func.func @transform_15(%arg0: i32, %arg1: i32) -> (i32, i32, i32) {
    %c0_i32 = arith.constant 0 : i32
    %c0_i32_0 = arith.constant 0 : i32
    return %arg0, %c0_i32, %arg1 : i32, i32, i32
  }
  func.func @transform_16(%arg0: i32, %arg1: i32) -> (i32, i32, i32) {
    %c0_i32 = arith.constant 0 : i32
    %c0_i32_0 = arith.constant 0 : i32
    return %arg0, %c0_i32, %arg1 : i32, i32, i32
  }
  func.func @transform_17(%arg0: i32, %arg1: i32) -> (i32, i32, i32, i32) {
    %c0_i32 = arith.constant 0 : i32
    %c0_i32_0 = arith.constant 0 : i32
    %c0_i32_1 = arith.constant 0 : i32
    return %arg0, %arg1, %c0_i32, %c0_i32_0 : i32, i32, i32, i32
  }
}

</mosaic_0001>

<llo_original>
// kernel: squeeze.15
$region0: #{squeeze.15}
  %s0 = inlined_call_operand.vmem [shape: f32[2,256], index: 0, kind: input, shape index: {}]
  %s1 = inlined_call_operand.vmem [shape: f32[2,16,16], index: 1, kind: output, shape index: {}]
  $region1: #{squeeze.15} parent=0
    #allocation0 [shape = 'u8[8192]{0}', space=vmem, size = 0x2000, scoped, tag = 'scoped mem for input reshape']
    %s3 = ssub.s32 4, 1
    %s4 = scalar_lea.vmem %s0, 2
    %v5 = vld [vmem:[%s4] sm:%s3]
    %s6 = scalar_lea.vmem [#allocation0], 8
    %7 = vst [vmem:[%s6] sm:%s3] %v5
    %v8 = vld [vmem:[%s0] sm:%s3]
    %9 = vst [vmem:[#allocation0] sm:%s3] %v8
    %v10 = vld [vmem:[#allocation0] sm:$0x3]
    %vm11 = vcmask 130048
    %12 = vst.msk [vmem:[%s1] ss:$16 sm:$0x3] %vm11, %v10
    %s13 = scalar_lea.vmem [#allocation0], 8
    %v14 = vld [vmem:[%s13] sm:$0x3]
    %vm15 = vcmask 130048
    %s16 = scalar_lea.vmem %s1, 8
    %17 = vst.msk [vmem:[%s16] ss:$16 sm:$0x3] %vm15, %v14
    %v18 = vld.sshfl [vmem:[#allocation0] sm:$0xff pattern:$0x99999180]
    %19 = vrot.lane.b32.xlu0 %v18, 112
    %v20 = vpop.permute.xlu0 %19
    %vm21 = vcmask 130048
    %s22 = scalar_lea.vmem %s1, 1
    %23 = vst.msk [vmem:[%s22] ss:$8 sm:$0xf] %vm21, %v20
    %v24 = vld.sshfl [vmem:[#allocation0] sm:$0xff pattern:$0x99999180]
    %25 = vrot.lane.b32.xlu0 %v24, 96
    %v26 = vpop.permute.xlu0 %25
    %vm27 = vcmask 130048
    %s28 = scalar_lea.vmem %s1, 2
    %29 = vst.msk [vmem:[%s28] ss:$8 sm:$0xf] %vm27, %v26
    %v30 = vld.sshfl [vmem:[#allocation0] sm:$0xff pattern:$0x99999180]
    %31 = vrot.lane.b32.xlu0 %v30, 80
    %v32 = vpop.permute.xlu0 %31
    %vm33 = vcmask 130048
    %s34 = scalar_lea.vmem %s1, 3
    %35 = vst.msk [vmem:[%s34] ss:$8 sm:$0xf] %vm33, %v32
    %v36 = vld.sshfl [vmem:[#allocation0] sm:$0xff pattern:$0x99999180]
    %37 = vrot.lane.b32.xlu0 %v36, 64
    %v38 = vpop.permute.xlu0 %37
    %vm39 = vcmask 130048
    %s40 = scalar_lea.vmem %s1, 4
    %41 = vst.msk [vmem:[%s40] ss:$8 sm:$0xf] %vm39, %v38
    %v42 = vld.sshfl [vmem:[#allocation0] sm:$0xff pattern:$0x99999180]
    %43 = vrot.lane.b32.xlu0 %v42, 48
    %v44 = vpop.permute.xlu0 %43
    %vm45 = vcmask 130048
    %s46 = scalar_lea.vmem %s1, 5
    %47 = vst.msk [vmem:[%s46] ss:$8 sm:$0xf] %vm45, %v44
    %v48 = vld.sshfl [vmem:[#allocation0] sm:$0xff pattern:$0x99999180]
    %49 = vrot.lane.b32.xlu0 %v48, 32
    %v50 = vpop.permute.xlu0 %49
    %vm51 = vcmask 130048
    %s52 = scalar_lea.vmem %s1, 6
    %53 = vst.msk [vmem:[%s52] ss:$8 sm:$0xf] %vm51, %v50
    %v54 = vld.sshfl [vmem:[#allocation0] sm:$0xff pattern:$0x99999180]
    %55 = vrot.lane.b32.xlu0 %v54, 16
    %v56 = vpop.permute.xlu0 %55
    %vm57 = vcmask 130048
    %s58 = scalar_lea.vmem %s1, 7
    %59 = vst.msk [vmem:[%s58] ss:$8 sm:$0xf] %vm57, %v56

// kernel: up_forward.2
$region0: #{up_forward.2}
  #allocation0 [shape = 'u32[]', space=smem, size = 0x4, offset = 0x4, fixed_abs, tag = 'smem constant byte address 0x4 - core index']
  #allocation1 [shape = 'u32[72,128]{1,0:T(1,128)}', space=vmem, size = 0x9000, scoped, tag = 'internal scratch']
  %s0 = inlined_call_operand.vmem [shape: f32[2,4,256], index: 0, kind: input, shape index: {}]
  %s1 = inlined_call_operand.vmem [shape: f32[2,4,256], index: 1, kind: input, shape index: {}]
  %s2 = inlined_call_operand.vmem [shape: f32[16,4], index: 2, kind: input, shape index: {}]
  %s3 = inlined_call_operand.vmem [shape: f32[16,4], index: 3, kind: input, shape index: {}]
  %s4 = inlined_call_operand.vmem [shape: f32[16,1], index: 4, kind: input, shape index: {}]
  %s5 = inlined_call_operand.vmem [shape: f32[16,1], index: 5, kind: input, shape index: {}]
  %s6 = inlined_call_operand.vmem [shape: f32[16,1], index: 6, kind: input, shape index: {}]
  %s7 = inlined_call_operand.vmem [shape: f32[16,1], index: 7, kind: input, shape index: {}]
  %s8 = inlined_call_operand.vmem [shape: f32[16,1], index: 8, kind: input, shape index: {}]
  %s9 = inlined_call_operand.vmem [shape: bf16[2,16,256], index: 9, kind: output, shape index: {0}]
  %s10 = inlined_call_operand.vmem [shape: f32[2,1,256], index: 10, kind: output, shape index: {1}]
  %s11 = inlined_call_operand.vmem [shape: f32[2,1,16,8], index: 11, kind: output, shape index: {2}]
  %12 = xla_tuple %s9, %s10, %s11
  %s13 = sld [smem:[#allocation0]]
  $region85: #{up_forward.2} parent=0
    _
  %s15 = ssub.s32 1, %s13
  %s16 = scalar_select 0, %s15, %s13
  loop: start=0, step=1, limit=4
  $region2: #{up_forward.2} parent=0 // loop_pre_header
    _
  $region3: #{up_forward.2} parent=0 // loop_header
    %s18 = sphi 0, %s22
    %p19 = scmp.ge.s32.totalorder %s18, 4
    %s25 = sphi 0, %s37
    %s26 = sphi 0, %s33
    %s27 = sphi 0, %s25
    %s28 = sphi 0, %s26
    %s29 = sphi 0, %s27
    %s30 = sphi 0, %s28
    %s42 = sphi 0, %s44
    %s45 = sphi 0, %s42
    %s46 = sphi 0, %s45
    %s62 = sphi 0, %s46
    %s70 = sphi 0, %s72
    %s73 = sphi 0, %s70
    %s74 = sphi 0, %s73
    %s90 = sphi 0, %s74
    %s94 = sphi 0, %s94
    %s96 = sphi 0, %s94
    %s97 = sphi 0, %s96
    %s111 = sphi 0, %s97
    %s115 = sphi 0, %s115
    %s117 = sphi 0, %s115
    %s118 = sphi 0, %s117
    %s132 = sphi 0, %s118
    %s136 = sphi 0, %s136
    %s138 = sphi 0, %s136
    %s139 = sphi 0, %s138
    %s153 = sphi 0, %s139
    %s157 = sphi 0, %s157
    %s159 = sphi 0, %s157
    %s160 = sphi 0, %s159
    %s174 = sphi 0, %s160
    %s178 = sphi 0, %s178
    %s180 = sphi 0, %s178
    %s181 = sphi 0, %s180
    %s195 = sphi 0, %s181
    %s199 = sphi 0, %s199
    %s201 = sphi 0, %s199
    %s202 = sphi 0, %s201
    %s216 = sphi 0, %s202
    %s220 = sphi 0, %s220
    %s222 = sphi 0, %s220
    %s223 = sphi 0, %s222
    %s237 = sphi 0, %s223
    %s245 = sphi 0, %s247
    %s248 = sphi 0, %s245
    %s249 = sphi 0, %s248
    %s265 = sphi 0, %s249
    %s273 = sphi 0, %s275
    %s276 = sphi 0, %s273
    %s277 = sphi 0, %s276
    %s293 = sphi 0, %s277
    %s301 = sphi 0, %s303
    %s304 = sphi 0, %s301
    %s305 = sphi 0, %s304
    %s321 = sphi 0, %s305
  $region4: #{up_forward.2} parent=0 // loop_header_branch
    %21 = sbr.rel (%p19) target = $region8
  $region5: #{up_forward.2} parent=0 // loop_body
    %s23 = ssub.s32 %s18, 1
    %s24 = ssub.s32 %s18, 2
    %s31 = sadd.s32 1, %s26
    %p32 = scmp.ge.s32.totalorder %s31, 1
    %s33 = scalar_select %p32, 0, %s31
    %s34 = sadd.s32 1, %s25
    %s35 = scalar_select %p32, %s34, %s25
    %p36 = scmp.ge.s32.totalorder %s35, 2
    %s37 = scalar_select %p36, 0, %s35
    %s38 = ssub.s32 %s25, %s37
    %s39 = ssub.s32 %s26, %s33
    %s40 = sor.u32 %s38, %s39
    %p41 = scmp.eq.s32.totalorder %s40, 0
    %s43 = sadd.s32 %s42, 1
    %s44 = scalar_select %p41, %s42, %s43
    %p47 = pneg %p41
    %p48 = scmp.eq.s32.totalorder %s18, 1
    %p49 = por %p47, %p48
    %p50 = scmp.ne.s32.totalorder %s42, %s45
    %p51 = scmp.eq.s32.totalorder %s18, 0
    %p52 = por %p50, %p51
    %p53 = scmp.ne.s32.totalorder %s42, %s45
    %p54 = scmp.eq.s32.totalorder %s23, 1
    %p55 = por %p53, %p54
    %p56 = scmp.ne.s32.totalorder %s45, %s46
    %p57 = scmp.eq.s32.totalorder %s23, 0
    %p58 = por %p56, %p57
    %p59 = scmp.ne.s32.totalorder %s45, %s46
    %p60 = scmp.eq.s32.totalorder %s24, 1
    %p61 = por %p59, %p60
    %p63 = scmp.ne.s32.totalorder %s46, %s62
    %p64 = scmp.eq.s32.totalorder %s24, 0
    %p65 = por %p63, %p64
    %s66 = ssub.s32 %s25, %s37
    %s67 = ssub.s32 %s26, %s33
    %s68 = sor.u32 %s66, %s67
    %p69 = scmp.eq.s32.totalorder %s68, 0
    %s71 = sadd.s32 %s70, 1
    %s72 = scalar_select %p69, %s70, %s71
    %p75 = pneg %p69
    %p76 = scmp.eq.s32.totalorder %s18, 1
    %p77 = por %p75, %p76
    %p78 = scmp.ne.s32.totalorder %s70, %s73
    %p79 = scmp.eq.s32.totalorder %s18, 0
    %p80 = por %p78, %p79
    %p81 = scmp.ne.s32.totalorder %s70, %s73
    %p82 = scmp.eq.s32.totalorder %s23, 1
    %p83 = por %p81, %p82
    %p84 = scmp.ne.s32.totalorder %s73, %s74
    %p85 = scmp.eq.s32.totalorder %s23, 0
    %p86 = por %p84, %p85
    %p87 = scmp.ne.s32.totalorder %s73, %s74
    %p88 = scmp.eq.s32.totalorder %s24, 1
    %p89 = por %p87, %p88
    %p91 = scmp.ne.s32.totalorder %s74, %s90
    %p92 = scmp.eq.s32.totalorder %s24, 0
    %p93 = por %p91, %p92
    %s95 = sadd.s32 %s94, 1
    %p98 = scmp.eq.s32.totalorder %s18, 1
    %p99 = scmp.ne.s32.totalorder %s94, %s96
    %p100 = scmp.eq.s32.totalorder %s18, 0
    %p101 = por %p99, %p100
    %p102 = scmp.ne.s32.totalorder %s94, %s96
    %p103 = scmp.eq.s32.totalorder %s23, 1
    %p104 = por %p102, %p103
    %p105 = scmp.ne.s32.totalorder %s96, %s97
    %p106 = scmp.eq.s32.totalorder %s23, 0
    %p107 = por %p105, %p106
    %p108 = scmp.ne.s32.totalorder %s96, %s97
    %p109 = scmp.eq.s32.totalorder %s24, 1
    %p110 = por %p108, %p109
    %p112 = scmp.ne.s32.totalorder %s97, %s111
    %p113 = scmp.eq.s32.totalorder %s24, 0
    %p114 = por %p112, %p113
    %s116 = sadd.s32 %s115, 1
    %p119 = scmp.eq.s32.totalorder %s18, 1
    %p120 = scmp.ne.s32.totalorder %s115, %s117
    %p121 = scmp.eq.s32.totalorder %s18, 0
    %p122 = por %p120, %p121
    %p123 = scmp.ne.s32.totalorder %s115, %s117
    %p124 = scmp.eq.s32.totalorder %s23, 1
    %p125 = por %p123, %p124
    %p126 = scmp.ne.s32.totalorder %s117, %s118
    %p127 = scmp.eq.s32.totalorder %s23, 0
    %p128 = por %p126, %p127
    %p129 = scmp.ne.s32.totalorder %s117, %s118
    %p130 = scmp.eq.s32.totalorder %s24, 1
    %p131 = por %p129, %p130
    %p133 = scmp.ne.s32.totalorder %s118, %s132
    %p134 = scmp.eq.s32.totalorder %s24, 0
    %p135 = por %p133, %p134
    %s137 = sadd.s32 %s136, 1
    %p140 = scmp.eq.s32.totalorder %s18, 1
    %p141 = scmp.ne.s32.totalorder %s136, %s138
    %p142 = scmp.eq.s32.totalorder %s18, 0
    %p143 = por %p141, %p142
    %p144 = scmp.ne.s32.totalorder %s136, %s138
    %p145 = scmp.eq.s32.totalorder %s23, 1
    %p146 = por %p144, %p145
    %p147 = scmp.ne.s32.totalorder %s138, %s139
    %p148 = scmp.eq.s32.totalorder %s23, 0
    %p149 = por %p147, %p148
    %p150 = scmp.ne.s32.totalorder %s138, %s139
    %p151 = scmp.eq.s32.totalorder %s24, 1
    %p152 = por %p150, %p151
    %p154 = scmp.ne.s32.totalorder %s139, %s153
    %p155 = scmp.eq.s32.totalorder %s24, 0
    %p156 = por %p154, %p155
    %s158 = sadd.s32 %s157, 1
    %p161 = scmp.eq.s32.totalorder %s18, 1
    %p162 = scmp.ne.s32.totalorder %s157, %s159
    %p163 = scmp.eq.s32.totalorder %s18, 0
    %p164 = por %p162, %p163
    %p165 = scmp.ne.s32.totalorder %s157, %s159
    %p166 = scmp.eq.s32.totalorder %s23, 1
    %p167 = por %p165, %p166
    %p168 = scmp.ne.s32.totalorder %s159, %s160
    %p169 = scmp.eq.s32.totalorder %s23, 0
    %p170 = por %p168, %p169
    %p171 = scmp.ne.s32.totalorder %s159, %s160
    %p172 = scmp.eq.s32.totalorder %s24, 1
    %p173 = por %p171, %p172
    %p175 = scmp.ne.s32.totalorder %s160, %s174
    %p176 = scmp.eq.s32.totalorder %s24, 0
    %p177 = por %p175, %p176
    %s179 = sadd.s32 %s178, 1
    %p182 = scmp.eq.s32.totalorder %s18, 1
    %p183 = scmp.ne.s32.totalorder %s178, %s180
    %p184 = scmp.eq.s32.totalorder %s18, 0
    %p185 = por %p183, %p184
    %p186 = scmp.ne.s32.totalorder %s178, %s180
    %p187 = scmp.eq.s32.totalorder %s23, 1
    %p188 = por %p186, %p187
    %p189 = scmp.ne.s32.totalorder %s180, %s181
    %p190 = scmp.eq.s32.totalorder %s23, 0
    %p191 = por %p189, %p190
    %p192 = scmp.ne.s32.totalorder %s180, %s181
    %p193 = scmp.eq.s32.totalorder %s24, 1
    %p194 = por %p192, %p193
    %p196 = scmp.ne.s32.totalorder %s181, %s195
    %p197 = scmp.eq.s32.totalorder %s24, 0
    %p198 = por %p196, %p197
    %s200 = sadd.s32 %s199, 1
    %p203 = scmp.eq.s32.totalorder %s18, 1
    %p204 = scmp.ne.s32.totalorder %s199, %s201
    %p205 = scmp.eq.s32.totalorder %s18, 0
    %p206 = por %p204, %p205
    %p207 = scmp.ne.s32.totalorder %s199, %s201
    %p208 = scmp.eq.s32.totalorder %s23, 1
    %p209 = por %p207, %p208
    %p210 = scmp.ne.s32.totalorder %s201, %s202
    %p211 = scmp.eq.s32.totalorder %s23, 0
    %p212 = por %p210, %p211
    %p213 = scmp.ne.s32.totalorder %s201, %s202
    %p214 = scmp.eq.s32.totalorder %s24, 1
    %p215 = por %p213, %p214
    %p217 = scmp.ne.s32.totalorder %s202, %s216
    %p218 = scmp.eq.s32.totalorder %s24, 0
    %p219 = por %p217, %p218
    %s221 = sadd.s32 %s220, 1
    %p224 = scmp.eq.s32.totalorder %s18, 1
    %p225 = scmp.ne.s32.totalorder %s220, %s222
    %p226 = scmp.eq.s32.totalorder %s18, 0
    %p227 = por %p225, %p226
    %p228 = scmp.ne.s32.totalorder %s220, %s222
    %p229 = scmp.eq.s32.totalorder %s23, 1
    %p230 = por %p228, %p229
    %p231 = scmp.ne.s32.totalorder %s222, %s223
    %p232 = scmp.eq.s32.totalorder %s23, 0
    %p233 = por %p231, %p232
    %p234 = scmp.ne.s32.totalorder %s222, %s223
    %p235 = scmp.eq.s32.totalorder %s24, 1
    %p236 = por %p234, %p235
    %p238 = scmp.ne.s32.totalorder %s223, %s237
    %p239 = scmp.eq.s32.totalorder %s24, 0
    %p240 = por %p238, %p239
    %s241 = ssub.s32 %s25, %s37
    %s242 = ssub.s32 %s26, %s33
    %s243 = sor.u32 %s241, %s242
    %p244 = scmp.eq.s32.totalorder %s243, 0
    %s246 = sadd.s32 %s245, 1
    %s247 = scalar_select %p244, %s245, %s246
    %p250 = pneg %p244
    %p251 = scmp.eq.s32.totalorder %s18, 1
    %p252 = por %p250, %p251
    %p253 = scmp.ne.s32.totalorder %s245, %s248
    %p254 = scmp.eq.s32.totalorder %s18, 0
    %p255 = por %p253, %p254
    %p256 = scmp.ne.s32.totalorder %s245, %s248
    %p257 = scmp.eq.s32.totalorder %s23, 1
    %p258 = por %p256, %p257
    %p259 = scmp.ne.s32.totalorder %s248, %s249
    %p260 = scmp.eq.s32.totalorder %s23, 0
    %p261 = por %p259, %p260
    %p262 = scmp.ne.s32.totalorder %s248, %s249
    %p263 = scmp.eq.s32.totalorder %s24, 1
    %p264 = por %p262, %p263
    %p266 = scmp.ne.s32.totalorder %s249, %s265
    %p267 = scmp.eq.s32.totalorder %s24, 0
    %p268 = por %p266, %p267
    %s269 = ssub.s32 %s25, %s37
    %s270 = ssub.s32 %s26, %s33
    %s271 = sor.u32 %s269, %s270
    %p272 = scmp.eq.s32.totalorder %s271, 0
    %s274 = sadd.s32 %s273, 1
    %s275 = scalar_select %p272, %s273, %s274
    %p278 = pneg %p272
    %p279 = scmp.eq.s32.totalorder %s18, 1
    %p280 = por %p278, %p279
    %p281 = scmp.ne.s32.totalorder %s273, %s276
    %p282 = scmp.eq.s32.totalorder %s18, 0
    %p283 = por %p281, %p282
    %p284 = scmp.ne.s32.totalorder %s273, %s276
    %p285 = scmp.eq.s32.totalorder %s23, 1
    %p286 = por %p284, %p285
    %p287 = scmp.ne.s32.totalorder %s276, %s277
    %p288 = scmp.eq.s32.totalorder %s23, 0
    %p289 = por %p287, %p288
    %p290 = scmp.ne.s32.totalorder %s276, %s277
    %p291 = scmp.eq.s32.totalorder %s24, 1
    %p292 = por %p290, %p291
    %p294 = scmp.ne.s32.totalorder %s277, %s293
    %p295 = scmp.eq.s32.totalorder %s24, 0
    %p296 = por %p294, %p295
    %s297 = ssub.s32 %s25, %s37
    %s298 = ssub.s32 %s26, %s33
    %s299 = sor.u32 %s297, %s298
    %p300 = scmp.eq.s32.totalorder %s299, 0
    %s302 = sadd.s32 %s301, 1
    %s303 = scalar_select %p300, %s301, %s302
    %p306 = pneg %p300
    %p307 = scmp.eq.s32.totalorder %s18, 1
    %p308 = por %p306, %p307
    %p309 = scmp.ne.s32.totalorder %s301, %s304
    %p310 = scmp.eq.s32.totalorder %s18, 0
    %p311 = por %p309, %p310
    %p312 = scmp.ne.s32.totalorder %s301, %s304
    %p313 = scmp.eq.s32.totalorder %s23, 1
    %p314 = por %p312, %p313
    %p315 = scmp.ne.s32.totalorder %s304, %s305
    %p316 = scmp.eq.s32.totalorder %s23, 0
    %p317 = por %p315, %p316
    %p318 = scmp.ne.s32.totalorder %s304, %s305
    %p319 = scmp.eq.s32.totalorder %s24, 1
    %p320 = por %p318, %p319
    %p322 = scmp.ne.s32.totalorder %s305, %s321
    %p323 = scmp.eq.s32.totalorder %s24, 0
    %p324 = por %p322, %p323
    %p325 = scmp.le.s32.totalorder 1, %s18
    %p326 = scmp.lt.s32.totalorder %s18, 3
    %p327 = pnand %p325, %p326
    %p328 = pneg %p327
    // Predicated region
    $region9: #{up_forward.2} parent=5 // pred_check
      _
    $region10: #{up_forward.2} parent=5 // pred_check_branch
      %330 = sbr.rel (%p327) target = $region12
    $region11: #{up_forward.2} parent=5 // pred_region
      %s331 = ssub.s32 %s18, 1
      // Predicated region
      $region13: #{up_forward.2} parent=11 // pred_check
        %p332 = pneg %p107
      $region14: #{up_forward.2} parent=11 // pred_check_branch
        %334 = sbr.rel (%p332) target = $region16
      $region15: #{up_forward.2} parent=11 // pred_region
        _
      $region16: #{up_forward.2} parent=11 // pred_fallthru
        _
      // Predicated region
      $region17: #{up_forward.2} parent=11 // pred_check
        %p335 = pneg %p128
      $region18: #{up_forward.2} parent=11 // pred_check_branch
        %337 = sbr.rel (%p335) target = $region20
      $region19: #{up_forward.2} parent=11 // pred_region
        _
      $region20: #{up_forward.2} parent=11 // pred_fallthru
        _
      // Predicated region
      $region21: #{up_forward.2} parent=11 // pred_check
        %p338 = pneg %p149
      $region22: #{up_forward.2} parent=11 // pred_check_branch
        %340 = sbr.rel (%p338) target = $region24
      $region23: #{up_forward.2} parent=11 // pred_region
        _
      $region24: #{up_forward.2} parent=11 // pred_fallthru
        _
      // Predicated region
      $region25: #{up_forward.2} parent=11 // pred_check
        %p341 = pneg %p170
      $region26: #{up_forward.2} parent=11 // pred_check_branch
        %343 = sbr.rel (%p341) target = $region28
      $region27: #{up_forward.2} parent=11 // pred_region
        _
      $region28: #{up_forward.2} parent=11 // pred_fallthru
        _
      // Predicated region
      $region29: #{up_forward.2} parent=11 // pred_check
        %p344 = pneg %p191
      $region30: #{up_forward.2} parent=11 // pred_check_branch
        %346 = sbr.rel (%p344) target = $region32
      $region31: #{up_forward.2} parent=11 // pred_region
        _
      $region32: #{up_forward.2} parent=11 // pred_fallthru
        _
      // Predicated region
      $region33: #{up_forward.2} parent=11 // pred_check
        %p347 = pneg %p212
      $region34: #{up_forward.2} parent=11 // pred_check_branch
        %349 = sbr.rel (%p347) target = $region36
      $region35: #{up_forward.2} parent=11 // pred_region
        _
      $region36: #{up_forward.2} parent=11 // pred_fallthru
        _
      // Predicated region
      $region37: #{up_forward.2} parent=11 // pred_check
        %p350 = pneg %p233
      $region38: #{up_forward.2} parent=11 // pred_check_branch
        %352 = sbr.rel (%p350) target = $region40
      $region39: #{up_forward.2} parent=11 // pred_region
        _
      $region40: #{up_forward.2} parent=11 // pred_fallthru
        _
    $region12: #{up_forward.2} parent=5 // pred_fallthru
      _
    %p353 = scmp.lt.s32.totalorder %s18, 2
    // Predicated region
    $region41: #{up_forward.2} parent=5 // pred_check
      %p354 = pneg %p353
    $region42: #{up_forward.2} parent=5 // pred_check_branch
      %356 = sbr.rel (%p354) target = $region44
    $region43: #{up_forward.2} parent=5 // pred_region
      // Predicated region
      $region45: #{up_forward.2} parent=43 // pred_check
        %p357 = pneg %p52
      $region46: #{up_forward.2} parent=43 // pred_check_branch
        %359 = sbr.rel (%p357) target = $region48
      $region47: #{up_forward.2} parent=43 // pred_region
        %s360 = smul.u32 2, %s26
        %p361 = scmp.lt.s32.totalorder %s25, 1
        %s362 = scalar_select %p361, %s25, 1
        %p363 = scmp.lt.s32.totalorder %s360, 1
        %s364 = scalar_select %p363, %s360, 1
        %s365 = smul.addr %s362, 2
        %s366 = sadd.s32 %s364, %s365
        %s367 = smul.addr %s366, 4
        %s368 = scalar_lea.vmem %s0, %s367
        %s369 = smul.u32 2, %s26
      $region48: #{up_forward.2} parent=43 // pred_fallthru
        _
      // Predicated region
      $region49: #{up_forward.2} parent=43 // pred_check
        %p370 = pneg %p80
      $region50: #{up_forward.2} parent=43 // pred_check_branch
        %372 = sbr.rel (%p370) target = $region52
      $region51: #{up_forward.2} parent=43 // pred_region
        %s373 = smul.u32 2, %s26
        %p374 = scmp.lt.s32.totalorder %s25, 1
        %s375 = scalar_select %p374, %s25, 1
        %p376 = scmp.lt.s32.totalorder %s373, 1
        %s377 = scalar_select %p376, %s373, 1
        %s378 = smul.addr %s375, 2
        %s379 = sadd.s32 %s377, %s378
        %s380 = smul.addr %s379, 4
        %s381 = scalar_lea.vmem %s1, %s380
        %s382 = smul.u32 2, %s26
      $region52: #{up_forward.2} parent=43 // pred_fallthru
        _
    $region44: #{up_forward.2} parent=5 // pred_fallthru
      _
    %p383 = scmp.le.s32.totalorder 1, %s18
    %p384 = scmp.lt.s32.totalorder %s18, 3
    %p385 = pnand %p383, %p384
    %p386 = pneg %p385
    // Predicated region
    $region53: #{up_forward.2} parent=5 // pred_check
      _
    $region54: #{up_forward.2} parent=5 // pred_check_branch
      %388 = sbr.rel (%p385) target = $region56
    $region55: #{up_forward.2} parent=5 // pred_region
      %s389 = ssub.s32 %s18, 1
      %s390 = smul.u32 2, %s28
      %p391 = scmp.lt.s32.totalorder %s27, 1
      %s392 = scalar_select %p391, %s27, 1
      %p393 = scmp.lt.s32.totalorder %s390, 1
      %s394 = scalar_select %p393, %s390, 1
      %s395 = smul.addr %s392, 2
      %s396 = sadd.s32 %s394, %s395
      %s397 = smul.addr %s396, 4
      %s398 = scalar_lea.vmem %s0, %s397
      %p399 = pneg %p58
      %p400 = pneg %p55
      %s401 = smul.u32 2, %s28
      %p402 = scmp.lt.s32.totalorder %s27, 1
      %s403 = scalar_select %p402, %s27, 1
      %p404 = scmp.lt.s32.totalorder %s401, 1
      %s405 = scalar_select %p404, %s401, 1
      %s406 = smul.addr %s403, 2
      %s407 = sadd.s32 %s405, %s406
      %s408 = smul.addr %s407, 4
      %s409 = scalar_lea.vmem %s1, %s408
      %p410 = pneg %p86
      %p411 = pneg %p83
      %p412 = pneg %p107
      %p413 = pneg %p104
      %p414 = pneg %p128
      %p415 = pneg %p125
      %p416 = pneg %p149
      %p417 = pneg %p146
      %p418 = pneg %p170
      %p419 = pneg %p167
      %p420 = pneg %p191
      %p421 = pneg %p188
      %p422 = pneg %p212
      %p423 = pneg %p209
      %p424 = pneg %p233
      %p425 = pneg %p230
      %p426 = pneg %p261
      %p427 = pneg %p258
      %s428 = smul.u32 2, %s28
      %p429 = scmp.lt.s32.totalorder %s27, 1
      %s430 = scalar_select %p429, %s27, 1
      %p431 = scmp.lt.s32.totalorder %s428, 1
      %s432 = scalar_select %p431, %s428, 1
      %s433 = smul.addr %s430, 4
      %s434 = sadd.s32 %s432, %s433
      %s435 = smul.addr %s434, 4
      %s436 = scalar_lea.vmem %s9, %s435
      %p437 = pneg %p289
      %p438 = pneg %p286
      %s439 = smul.u32 2, %s28
      %p440 = scmp.lt.s32.totalorder %s27, 1
      %s441 = scalar_select %p440, %s27, 1
      %p442 = scmp.lt.s32.totalorder %s439, 1
      %s443 = scalar_select %p442, %s439, 1
      %s444 = smul.addr %s441, 2
      %s445 = sadd.s32 %s443, %s444
      %s446 = scalar_lea.vmem %s10, %s445
      %p447 = pneg %p317
      %p448 = pneg %p314
      %p449 = scmp.lt.s32.totalorder %s27, 1
      %s450 = scalar_select %p449, %s27, 1
      %p451 = scmp.lt.s32.totalorder %s28, 0
      %s452 = scalar_select %p451, %s28, 0
      %s453 = smul.addr %s452, 2
      %s454 = smul.addr %s450, 2
      %s455 = sadd.s32 %s453, %s454
      %s456 = smul.addr %s455, 8
      %s457 = scalar_lea.vmem %s11, %s456
      %s458 = smul.u32 2, %s28
      %p459 = scmp.lt.s32.totalorder %s27, 1
      %s460 = scalar_select %p459, %s27, 1
      %p461 = scmp.lt.s32.totalorder %s458, 1
      %s462 = scalar_select %p461, %s458, 1
      %s463 = smul.addr %s460, 2
      %s464 = sadd.s32 %s462, %s463
      %s465 = smul.addr %s464, 4
      %s466 = scalar_lea.vmem %s0, %s465
      %s467 = smul.u32 2, %s28
      %s468 = smul.u32 2, %s28
      %p469 = scmp.lt.s32.totalorder %s27, 1
      %s470 = scalar_select %p469, %s27, 1
      %p471 = scmp.lt.s32.totalorder %s468, 1
      %s472 = scalar_select %p471, %s468, 1
      %s473 = smul.addr %s470, 2
      %s474 = sadd.s32 %s472, %s473
      %s475 = smul.addr %s474, 4
      %s476 = scalar_lea.vmem %s1, %s475
      %s477 = smul.u32 2, %s28
      %s478 = smul.u32 2, %s28
      %p479 = scmp.lt.s32.totalorder %s27, 1
      %s480 = scalar_select %p479, %s27, 1
      %p481 = scmp.lt.s32.totalorder %s478, 1
      %s482 = scalar_select %p481, %s478, 1
      %s483 = smul.addr %s480, 4
      %s484 = sadd.s32 %s482, %s483
      %s485 = smul.addr %s484, 4
      %s486 = scalar_lea.vmem %s9, %s485
      %s487 = smul.u32 2, %s28
      %s488 = smul.u32 2, %s28
      %p489 = scmp.lt.s32.totalorder %s27, 1
      %s490 = scalar_select %p489, %s27, 1
      %p491 = scmp.lt.s32.totalorder %s488, 1
      %s492 = scalar_select %p491, %s488, 1
      %s493 = smul.addr %s490, 2
      %s494 = sadd.s32 %s492, %s493
      %s495 = scalar_lea.vmem %s10, %s494
      %s496 = smul.u32 2, %s28
      %p497 = scmp.lt.s32.totalorder %s27, 1
      %s498 = scalar_select %p497, %s27, 1
      %p499 = scmp.lt.s32.totalorder %s28, 0
      %s500 = scalar_select %p499, %s28, 0
      %s501 = smul.addr %s500, 2
      %s502 = smul.addr %s498, 2
      %s503 = sadd.s32 %s501, %s502
      %s504 = smul.addr %s503, 8
      %s505 = scalar_lea.vmem %s11, %s504
      %v506 = vld [vmem:[%s466] sm:$0xff]
      %v507 = vld [vmem:[%s476] sm:$0xff]
      %v508 = vld [vmem:[%s2] sm:$0xff]
      %v509 = vld [vmem:[%s2 + $0x8] sm:$0xff]
      %v510 = vld [vmem:[%s3] sm:$0xff]
      %v511 = vld [vmem:[%s3 + $0x8] sm:$0xff]
      %513 = vst [vmem:[#allocation1] ss:$2 sm:$0xff] %v507
      %v514 = vld.sshfl [vmem:[#allocation1] sm:$0xff pattern:$0x75316420]
      %v515 = vld.sshfl [vmem:[#allocation1 + $0x8] sm:$0xff pattern:$0x75316420]
      %vm516 = vcmask 31744
      %v518 = vsel %vm516, %v510, 0
      %v521 = vsel %vm516, %v511, 0
      %vm523 = vcmask 1043456
      %v524 = vsel %vm523, %v514, 0
      %v526 = vsel %vm523, %v515, 0
      %528 = vmatpush.msra.mxu0 0.0
      %529 = vmatpush.msra.mxu0 0.0
      %530 = vmatpush.msra.mxu0 0.0
      %531 = vmatpush.msra.mxu0 0.0
      %532 = vmatpush.msra.mxu0 0.0
      %533 = vmatpush.msra.mxu0 0.0
      %534 = vmatpush.msra.mxu0 0.0
      %535 = vmatpush.msra.mxu0 0.0
      %536 = vmatpush.msra.mxu0 0.0
      %537 = vmatpush.msra.mxu0 0.0
      %538 = vmatpush.msra.mxu0 0.0
      %539 = vmatpush.msra.mxu0 0.0
      %540 = vmatpush.msra.mxu0 0.0
      %541 = vmatpush.msra.mxu0 0.0
      %542 = vmatpush.msra.mxu0 0.0
      %543 = vmatpush.msra.mxu0 %v524
      %544 = vmatmul.f32.gmra.mxu0 %v518
      %v545 = vpop.f32.mrf.mxu0
      %v546 = vadd.f32 0.0, %v545
      %547 = vmatmul.f32.gmra.mxu0 %v521
      %v548 = vpop.f32.mrf.mxu0
      %v549 = vadd.f32 0.0, %v548
      %550 = vdwg.mxu0
      %551 = vmatpush.msra.mxu0 0.0
      %552 = vmatpush.msra.mxu0 0.0
      %553 = vmatpush.msra.mxu0 0.0
      %554 = vmatpush.msra.mxu0 0.0
      %555 = vmatpush.msra.mxu0 0.0
      %556 = vmatpush.msra.mxu0 0.0
      %557 = vmatpush.msra.mxu0 0.0
      %558 = vmatpush.msra.mxu0 0.0
      %559 = vmatpush.msra.mxu0 0.0
      %560 = vmatpush.msra.mxu0 0.0
      %561 = vmatpush.msra.mxu0 0.0
      %562 = vmatpush.msra.mxu0 0.0
      %563 = vmatpush.msra.mxu0 0.0
      %564 = vmatpush.msra.mxu0 0.0
      %565 = vmatpush.msra.mxu0 0.0
      %566 = vmatpush.msra.mxu0 %v526
      %567 = vmatmul.f32.gmra.mxu0 %v518
      %v568 = vpop.f32.mrf.mxu0
      %v569 = vadd.f32 0.0, %v568
      %570 = vmatmul.f32.gmra.mxu0 %v521
      %v571 = vpop.f32.mrf.mxu0
      %v572 = vadd.f32 0.0, %v571
      %573 = vdwg.mxu0
      %575 = vst [vmem:[#allocation1] ss:$2 sm:$0xff] %v506
      %v576 = vld.sshfl [vmem:[#allocation1] sm:$0xff pattern:$0x75316420]
      %v577 = vld.sshfl [vmem:[#allocation1 + $0x8] sm:$0xff pattern:$0x75316420]
      %v579 = vsel %vm516, %v508, 0
      %v582 = vsel %vm516, %v509, 0
      %v584 = vsel %vm523, %v576, 0
      %v586 = vsel %vm523, %v577, 0
      %588 = vmatpush.msra.mxu0 0.0
      %589 = vmatpush.msra.mxu0 0.0
      %590 = vmatpush.msra.mxu0 0.0
      %591 = vmatpush.msra.mxu0 0.0
      %592 = vmatpush.msra.mxu0 0.0
      %593 = vmatpush.msra.mxu0 0.0
      %594 = vmatpush.msra.mxu0 0.0
      %595 = vmatpush.msra.mxu0 0.0
      %596 = vmatpush.msra.mxu0 0.0
      %597 = vmatpush.msra.mxu0 0.0
      %598 = vmatpush.msra.mxu0 0.0
      %599 = vmatpush.msra.mxu0 0.0
      %600 = vmatpush.msra.mxu0 0.0
      %601 = vmatpush.msra.mxu0 0.0
      %602 = vmatpush.msra.mxu0 0.0
      %603 = vmatpush.msra.mxu0 %v584
      %604 = vmatmul.f32.gmra.mxu0 %v579
      %v605 = vpop.f32.mrf.mxu0
      %v606 = vadd.f32 %v546, %v605
      %607 = vmatmul.f32.gmra.mxu0 %v582
      %v608 = vpop.f32.mrf.mxu0
      %v609 = vadd.f32 %v549, %v608
      %610 = vdwg.mxu0
      %611 = vmatpush.msra.mxu0 0.0
      %612 = vmatpush.msra.mxu0 0.0
      %613 = vmatpush.msra.mxu0 0.0
      %614 = vmatpush.msra.mxu0 0.0
      %615 = vmatpush.msra.mxu0 0.0
      %616 = vmatpush.msra.mxu0 0.0
      %617 = vmatpush.msra.mxu0 0.0
      %618 = vmatpush.msra.mxu0 0.0
      %619 = vmatpush.msra.mxu0 0.0
      %620 = vmatpush.msra.mxu0 0.0
      %621 = vmatpush.msra.mxu0 0.0
      %622 = vmatpush.msra.mxu0 0.0
      %623 = vmatpush.msra.mxu0 0.0
      %624 = vmatpush.msra.mxu0 0.0
      %625 = vmatpush.msra.mxu0 0.0
      %626 = vmatpush.msra.mxu0 %v586
      %627 = vmatmul.f32.gmra.mxu0 %v579
      %v628 = vpop.f32.mrf.mxu0
      %v629 = vadd.f32 %v569, %v628
      %630 = vmatmul.f32.gmra.mxu0 %v582
      %v631 = vpop.f32.mrf.mxu0
      %v632 = vadd.f32 %v572, %v631
      %633 = vdwg.mxu0
      %v634 = vld [vmem:[%s4] sm:$0xff]
      %v635 = vld [vmem:[%s4 + $0x8] sm:$0xff]
      %637 = vset.pattern.permute.xlu0 0
      %638 = vperm.xlu0 %637, %v634
      %v639 = vpop.permute.xlu0 %638
      %642 = vset.pattern.permute.xlu0 0
      %643 = vperm.xlu0 %642, %v635
      %v644 = vpop.permute.xlu0 %643
      %v646 = vadd.f32 %v606, %v639
      %v647 = vadd.f32 %v629, %v639
      %v648 = vadd.f32 %v609, %v644
      %v649 = vadd.f32 %v632, %v644
      %v650 = vld [vmem:[%s5] sm:$0xff]
      %v651 = vld [vmem:[%s5 + $0x8] sm:$0xff]
      %v652 = vld [vmem:[%s6] sm:$0xff]
      %v653 = vld [vmem:[%s6 + $0x8] sm:$0xff]
      %v654 = vadd.f32 %v646, %v648
      %v655 = vrot.slane %v654, 4
      %v656 = vadd.f32 %v654, %v655
      %v657 = vrot.slane %v656, 2
      %v658 = vadd.f32 %v656, %v657
      %v659 = vrot.slane %v658, 1
      %v660 = vadd.f32 %v658, %v659
      %v661 = vadd.f32 %v647, %v649
      %v662 = vrot.slane %v661, 4
      %v663 = vadd.f32 %v661, %v662
      %v664 = vrot.slane %v663, 2
      %v665 = vadd.f32 %v663, %v664
      %v666 = vrot.slane %v665, 1
      %v667 = vadd.f32 %v665, %v666
      %v668 = vrcp.pop 16.0
      %v669 = vmul.f32 16.0, %v668
      %v670 = vsub.f32 1.0, %v669
      %v671 = vmul.f32 %v668, %v670
      %v672 = vadd.f32 %v668, %v671
      %vm673 = vweird.f32 %v668
      %v674 = vsel %vm673, %v668, %v672
      %v675 = vmul.f32 %v660, %v674
      %v676 = vmul.f32 %v667, %v674
      %v677 = vsub.f32 %v646, %v675
      %v678 = vsub.f32 %v647, %v676
      %v679 = vsub.f32 %v648, %v675
      %v680 = vsub.f32 %v649, %v676
      %v681 = vmul.f32 %v677, %v677
      %v682 = vmul.f32 %v678, %v678
      %v683 = vmul.f32 %v679, %v679
      %v684 = vmul.f32 %v680, %v680
      %v685 = vadd.f32 %v681, %v683
      %v686 = vrot.slane %v685, 4
      %v687 = vadd.f32 %v685, %v686
      %v688 = vrot.slane %v687, 2
      %v689 = vadd.f32 %v687, %v688
      %v690 = vrot.slane %v689, 1
      %v691 = vadd.f32 %v689, %v690
      %v692 = vadd.f32 %v682, %v684
      %v693 = vrot.slane %v692, 4
      %v694 = vadd.f32 %v692, %v693
      %v695 = vrot.slane %v694, 2
      %v696 = vadd.f32 %v694, %v695
      %v697 = vrot.slane %v696, 1
      %v698 = vadd.f32 %v696, %v697
      %v699 = vmul.f32 %v691, %v674
      %v700 = vmul.f32 %v698, %v674
      %v701 = vrsqrt.pop %v699
      %v702 = vmul.f32 %v701, %v699
      %v703 = vmul.f32 %v702, %v701
      %v704 = vmul.f32 0.5, %v703
      %v705 = vsub.f32 1.5, %v704
      %v706 = vmul.f32 %v701, %v705
      %v707 = vmul.f32 %v699, %v706
      %vm708 = vcmp.eq.f32.partialorder %v699, inf
      %v709 = vsel %vm708, %v699, %v707
      %vm710 = vcmp.eq.f32.partialorder %v699, 0.0
      %v711 = vand.u32 %v699, 2147483648
      %v712 = vsel %vm710, %v711, %v709
      %v713 = vrsqrt.pop %v700
      %v714 = vmul.f32 %v713, %v700
      %v715 = vmul.f32 %v714, %v713
      %v716 = vmul.f32 0.5, %v715
      %v717 = vsub.f32 1.5, %v716
      %v718 = vmul.f32 %v713, %v717
      %v719 = vmul.f32 %v700, %v718
      %vm720 = vcmp.eq.f32.partialorder %v700, inf
      %v721 = vsel %vm720, %v700, %v719
      %vm722 = vcmp.eq.f32.partialorder %v700, 0.0
      %v723 = vand.u32 %v700, 2147483648
      %v724 = vsel %vm722, %v723, %v721
      %v725 = vadd.f32 %v712, 1e-05
      %v726 = vadd.f32 %v724, 1e-05
      %v727 = vrcp.pop %v725
      %v728 = vrcp.pop %v726
      %v729 = vmul.f32 %v677, %v727
      %v730 = vmul.f32 %v678, %v728
      %v731 = vmul.f32 %v679, %v727
      %v732 = vmul.f32 %v680, %v728
      %734 = vset.pattern.permute.xlu0 0
      %735 = vperm.xlu0 %734, %v650
      %v736 = vpop.permute.xlu0 %735
      %739 = vset.pattern.permute.xlu0 0
      %740 = vperm.xlu0 %739, %v651
      %v741 = vpop.permute.xlu0 %740
      %v743 = vmul.f32 %v729, %v736
      %v744 = vmul.f32 %v730, %v736
      %v745 = vmul.f32 %v731, %v741
      %v746 = vmul.f32 %v732, %v741
      %748 = vset.pattern.permute.xlu0 0
      %749 = vperm.xlu0 %748, %v652
      %v750 = vpop.permute.xlu0 %749
      %753 = vset.pattern.permute.xlu0 0
      %754 = vperm.xlu0 %753, %v653
      %v755 = vpop.permute.xlu0 %754
      %v757 = vadd.f32 %v743, %v750
      %v758 = vadd.f32 %v744, %v750
      %v759 = vadd.f32 %v745, %v755
      %v760 = vadd.f32 %v746, %v755
      %v761 = vpack.c.bf16 %v758, %v757
      %v762 = vpack.c.bf16 %v760, %v759
      %763 = vst [vmem:[%s486] sm:$0xff] %v761
      %764 = vst [vmem:[%s486 + $0x8] sm:$0xff] %v762
      %v765 = vld [vmem:[%s7] sm:$0xff]
      %v766 = vld [vmem:[%s7 + $0x8] sm:$0xff]
      %v767 = vld [vmem:[%s8] sm:$0xff]
      %v768 = vld [vmem:[%s8 + $0x8] sm:$0xff]
      %v769 = vadd.f32 %v757, %v759
      %v770 = vrot.slane %v769, 4
      %v771 = vadd.f32 %v769, %v770
      %v772 = vrot.slane %v771, 2
      %v773 = vadd.f32 %v771, %v772
      %v774 = vrot.slane %v773, 1
      %v775 = vadd.f32 %v773, %v774
      %v776 = vadd.f32 %v758, %v760
      %v777 = vrot.slane %v776, 4
      %v778 = vadd.f32 %v776, %v777
      %v779 = vrot.slane %v778, 2
      %v780 = vadd.f32 %v778, %v779
      %v781 = vrot.slane %v780, 1
      %v782 = vadd.f32 %v780, %v781
      %v783 = vmul.f32 %v775, %v674
      %v784 = vmul.f32 %v782, %v674
      %v785 = vsub.f32 %v757, %v783
      %v786 = vsub.f32 %v758, %v784
      %v787 = vsub.f32 %v759, %v783
      %v788 = vsub.f32 %v760, %v784
      %v789 = vmul.f32 %v785, %v785
      %v790 = vmul.f32 %v786, %v786
      %v791 = vmul.f32 %v787, %v787
      %v792 = vmul.f32 %v788, %v788
      %v793 = vadd.f32 %v789, %v791
      %v794 = vrot.slane %v793, 4
      %v795 = vadd.f32 %v793, %v794
      %v796 = vrot.slane %v795, 2
      %v797 = vadd.f32 %v795, %v796
      %v798 = vrot.slane %v797, 1
      %v799 = vadd.f32 %v797, %v798
      %v800 = vadd.f32 %v790, %v792
      %v801 = vrot.slane %v800, 4
      %v802 = vadd.f32 %v800, %v801
      %v803 = vrot.slane %v802, 2
      %v804 = vadd.f32 %v802, %v803
      %v805 = vrot.slane %v804, 1
      %v806 = vadd.f32 %v804, %v805
      %v807 = vmul.f32 %v799, %v674
      %v808 = vmul.f32 %v806, %v674
      %v809 = vrsqrt.pop %v807
      %v810 = vmul.f32 %v809, %v807
      %v811 = vmul.f32 %v810, %v809
      %v812 = vmul.f32 0.5, %v811
      %v813 = vsub.f32 1.5, %v812
      %v814 = vmul.f32 %v809, %v813
      %v815 = vmul.f32 %v807, %v814
      %vm816 = vcmp.eq.f32.partialorder %v807, inf
      %v817 = vsel %vm816, %v807, %v815
      %vm818 = vcmp.eq.f32.partialorder %v807, 0.0
      %v819 = vand.u32 %v807, 2147483648
      %v820 = vsel %vm818, %v819, %v817
      %v821 = vrsqrt.pop %v808
      %v822 = vmul.f32 %v821, %v808
      %v823 = vmul.f32 %v822, %v821
      %v824 = vmul.f32 0.5, %v823
      %v825 = vsub.f32 1.5, %v824
      %v826 = vmul.f32 %v821, %v825
      %v827 = vmul.f32 %v808, %v826
      %vm828 = vcmp.eq.f32.partialorder %v808, inf
      %v829 = vsel %vm828, %v808, %v827
      %vm830 = vcmp.eq.f32.partialorder %v808, 0.0
      %v831 = vand.u32 %v808, 2147483648
      %v832 = vsel %vm830, %v831, %v829
      %v833 = vadd.f32 %v820, 1e-05
      %v834 = vadd.f32 %v832, 1e-05
      %v835 = vrcp.pop %v833
      %v836 = vrcp.pop %v834
      %v837 = vmul.f32 %v785, %v835
      %v838 = vmul.f32 %v786, %v836
      %v839 = vmul.f32 %v787, %v835
      %v840 = vmul.f32 %v788, %v836
      %842 = vset.pattern.permute.xlu0 0
      %843 = vperm.xlu0 %842, %v765
      %v844 = vpop.permute.xlu0 %843
      %847 = vset.pattern.permute.xlu0 0
      %848 = vperm.xlu0 %847, %v766
      %v849 = vpop.permute.xlu0 %848
      %v851 = vmul.f32 %v837, %v844
      %v852 = vmul.f32 %v838, %v844
      %v853 = vmul.f32 %v839, %v849
      %v854 = vmul.f32 %v840, %v849
      %856 = vset.pattern.permute.xlu0 0
      %857 = vperm.xlu0 %856, %v767
      %v858 = vpop.permute.xlu0 %857
      %861 = vset.pattern.permute.xlu0 0
      %862 = vperm.xlu0 %861, %v768
      %v863 = vpop.permute.xlu0 %862
      %v865 = vadd.f32 %v851, %v858
      %v866 = vadd.f32 %v852, %v858
      %v867 = vadd.f32 %v853, %v863
      %v868 = vadd.f32 %v854, %v863
      %v869 = vadd.f32 %v865, %v867
      %v870 = vrot.slane %v869, 4
      %v871 = vadd.f32 %v869, %v870
      %v872 = vrot.slane %v871, 2
      %v873 = vadd.f32 %v871, %v872
      %v874 = vrot.slane %v873, 1
      %v875 = vadd.f32 %v873, %v874
      %v876 = vadd.f32 %v866, %v868
      %v877 = vrot.slane %v876, 4
      %v878 = vadd.f32 %v876, %v877
      %v879 = vrot.slane %v878, 2
      %v880 = vadd.f32 %v878, %v879
      %v881 = vrot.slane %v880, 1
      %v882 = vadd.f32 %v880, %v881
      %v885 = vrot.slane %v882, 7
      %vm886 = vcmask 1040384
      %v887 = vsel %vm886, %v875, %v885
      %v889 = vlaneseq
      %vm890 = vcmp.ge.s32.totalorder %v889, 0
      %vm891 = vcmp.lt.s32.totalorder %v889, 256
      %vm892 = vmand %vm890, %vm891
      %893 = vst.msk [vmem:[%s495] sm:$0x3] %vm892, %v887
      %v894 = vlaneseq
      %v895 = vand.u32 %v894, 127
      %v896 = vadd.s32 %v895, 128
      %s897 = smul.u32 %s28, 256
      %v898 = vstv %s897
      %v899 = vadd.s32 %v895, %v898
      %v900 = vadd.s32 %v896, %v898
      %vm901 = vcmp.lt.s32.totalorder %v899, 256
      %vm902 = vcmp.lt.s32.totalorder %v900, 256
      %v903 = vsel %vm901, 1, 0
      %v904 = vsel %vm902, 1, 0
      %v905 = vcvt.s32.f32 %v903
      %v906 = vcvt.s32.f32 %v904
      %v907 = vmul.f32 %v865, %v905
      %v908 = vmul.f32 %v866, %v906
      %v909 = vmul.f32 %v867, %v905
      %v910 = vmul.f32 %v868, %v906
      %v911 = vadd.f32 %v907, %v908
      %912 = vadd.xlane.f32.xlu0 %v911
      %v913 = vpop.xlane.xlu0 %912
      %v914 = vadd.f32 %v909, %v910
      %915 = vadd.xlane.f32.xlu0 %v914
      %v916 = vpop.xlane.xlu0 %915
      %vm917 = vcmask 64512
      %918 = vst.msk [vmem:[%s505] sm:$0xff] %vm917, %v913
      %919 = vst.msk [vmem:[%s505 + $0x8] sm:$0xff] %vm917, %v916
      %s920 = smul.u32 2, %s28
      %p921 = scmp.lt.s32.totalorder %s27, 1
      %s922 = scalar_select %p921, %s27, 1
      %p923 = scmp.lt.s32.totalorder %s920, 1
      %s924 = scalar_select %p923, %s920, 1
      %s925 = smul.addr %s922, 4
      %s926 = sadd.s32 %s924, %s925
      %s927 = smul.addr %s926, 4
      %s928 = scalar_lea.vmem %s9, %s927
      %s929 = smul.u32 2, %s28
      %p930 = scmp.lt.s32.totalorder %s27, 1
      %s931 = scalar_select %p930, %s27, 1
      %p932 = scmp.lt.s32.totalorder %s929, 1
      %s933 = scalar_select %p932, %s929, 1
      %s934 = smul.addr %s931, 2
      %s935 = sadd.s32 %s933, %s934
      %s936 = scalar_lea.vmem %s10, %s935
      %p937 = scmp.lt.s32.totalorder %s27, 1
      %s938 = scalar_select %p937, %s27, 1
      %p939 = scmp.lt.s32.totalorder %s28, 0
      %s940 = scalar_select %p939, %s28, 0
      %s941 = smul.addr %s940, 2
      %s942 = smul.addr %s938, 2
      %s943 = sadd.s32 %s941, %s942
      %s944 = smul.addr %s943, 8
      %s945 = scalar_lea.vmem %s11, %s944
      // Predicated region
      $region57: #{up_forward.2} parent=55 // pred_check
        %p946 = pneg %p258
      $region58: #{up_forward.2} parent=55 // pred_check_branch
        %948 = sbr.rel (%p946) target = $region60
      $region59: #{up_forward.2} parent=55 // pred_region
        %s949 = smul.u32 2, %s28
      $region60: #{up_forward.2} parent=55 // pred_fallthru
        _
      // Predicated region
      $region61: #{up_forward.2} parent=55 // pred_check
        %p950 = pneg %p286
      $region62: #{up_forward.2} parent=55 // pred_check_branch
        %952 = sbr.rel (%p950) target = $region64
      $region63: #{up_forward.2} parent=55 // pred_region
        %s953 = smul.u32 2, %s28
      $region64: #{up_forward.2} parent=55 // pred_fallthru
        _
      // Predicated region
      $region65: #{up_forward.2} parent=55 // pred_check
        %p954 = pneg %p314
      $region66: #{up_forward.2} parent=55 // pred_check_branch
        %956 = sbr.rel (%p954) target = $region68
      $region67: #{up_forward.2} parent=55 // pred_region
        _
      $region68: #{up_forward.2} parent=55 // pred_fallthru
        _
    $region56: #{up_forward.2} parent=5 // pred_fallthru
      _
    %p957 = scmp.le.s32.totalorder 2, %s18
    // Predicated region
    $region69: #{up_forward.2} parent=5 // pred_check
      %p958 = pneg %p957
    $region70: #{up_forward.2} parent=5 // pred_check_branch
      %960 = sbr.rel (%p958) target = $region72
    $region71: #{up_forward.2} parent=5 // pred_region
      %s961 = ssub.s32 %s18, 2
      // Predicated region
      $region73: #{up_forward.2} parent=71 // pred_check
        %p962 = pneg %p264
      $region74: #{up_forward.2} parent=71 // pred_check_branch
        %964 = sbr.rel (%p962) target = $region76
      $region75: #{up_forward.2} parent=71 // pred_region
        %s965 = smul.u32 2, %s30
        %p966 = scmp.lt.s32.totalorder %s29, 1
        %s967 = scalar_select %p966, %s29, 1
        %p968 = scmp.lt.s32.totalorder %s965, 1
        %s969 = scalar_select %p968, %s965, 1
        %s970 = smul.addr %s967, 4
        %s971 = sadd.s32 %s969, %s970
        %s972 = smul.addr %s971, 4
        %s973 = scalar_lea.vmem %s9, %s972
      $region76: #{up_forward.2} parent=71 // pred_fallthru
        _
      // Predicated region
      $region77: #{up_forward.2} parent=71 // pred_check
        %p974 = pneg %p292
      $region78: #{up_forward.2} parent=71 // pred_check_branch
        %976 = sbr.rel (%p974) target = $region80
      $region79: #{up_forward.2} parent=71 // pred_region
        %s977 = smul.u32 2, %s30
        %p978 = scmp.lt.s32.totalorder %s29, 1
        %s979 = scalar_select %p978, %s29, 1
        %p980 = scmp.lt.s32.totalorder %s977, 1
        %s981 = scalar_select %p980, %s977, 1
        %s982 = smul.addr %s979, 2
        %s983 = sadd.s32 %s981, %s982
        %s984 = scalar_lea.vmem %s10, %s983
      $region80: #{up_forward.2} parent=71 // pred_fallthru
        _
      // Predicated region
      $region81: #{up_forward.2} parent=71 // pred_check
        %p985 = pneg %p320
      $region82: #{up_forward.2} parent=71 // pred_check_branch
        %987 = sbr.rel (%p985) target = $region84
      $region83: #{up_forward.2} parent=71 // pred_region
        %p988 = scmp.lt.s32.totalorder %s29, 1
        %s989 = scalar_select %p988, %s29, 1
        %p990 = scmp.lt.s32.totalorder %s30, 0
        %s991 = scalar_select %p990, %s30, 0
        %s992 = smul.addr %s991, 2
        %s993 = smul.addr %s989, 2
        %s994 = sadd.s32 %s992, %s993
        %s995 = smul.addr %s994, 8
        %s996 = scalar_lea.vmem %s11, %s995
      $region84: #{up_forward.2} parent=71 // pred_fallthru
        _
    $region72: #{up_forward.2} parent=5 // pred_fallthru
      _
  $region6: #{up_forward.2} parent=0 // loop_footer
    %s22 = sadd.s32 1, %s18
  $region7: #{up_forward.2} parent=0 // loop_footer_branch
    %17 = sbr.rel target = $region3
  $region8: #{up_forward.2} parent=0 // loop_exit
    _

// kernel: up_forward.3
$region0: #{up_forward.3}
  #allocation0 [shape = 'u32[]', space=smem, size = 0x4, offset = 0x4, fixed_abs, tag = 'smem constant byte address 0x4 - core index']
  #allocation1 [shape = 'u32[72,128]{1,0:T(1,128)}', space=vmem, size = 0x9000, scoped, tag = 'internal scratch']
  %s0 = inlined_call_operand.vmem [shape: bf16[2,16,256], index: 0, kind: input, shape index: {}]
  %s1 = inlined_call_operand.vmem [shape: f32[2,48,16], index: 1, kind: input, shape index: {}]
  %s2 = inlined_call_operand.vmem [shape: f32[16,1], index: 2, kind: input, shape index: {}]
  %s3 = inlined_call_operand.vmem [shape: f32[16,1], index: 3, kind: input, shape index: {}, may-alias: {3,13}]
  %s4 = inlined_call_operand.vmem [shape: f32[16,1], index: 4, kind: input, shape index: {}, may-alias: {4,14}]
  %s5 = inlined_call_operand.vmem [shape: f32[2,1,256], index: 5, kind: input, shape index: {}]
  %s6 = inlined_call_operand.vmem [shape: f32[2,1,256], index: 6, kind: input, shape index: {}]
  %s7 = inlined_call_operand.vmem [shape: f32[32,16], index: 7, kind: input, shape index: {}]
  %s8 = inlined_call_operand.vmem [shape: f32[32,1], index: 8, kind: input, shape index: {}]
  %s9 = inlined_call_operand.vmem [shape: f32[16,32], index: 9, kind: input, shape index: {}]
  %s10 = inlined_call_operand.vmem [shape: f32[16,1], index: 10, kind: input, shape index: {}]
  %s11 = inlined_call_operand.vmem [shape: f32[16,1], index: 11, kind: input, shape index: {}]
  %s12 = inlined_call_operand.vmem [shape: f32[16,1], index: 12, kind: input, shape index: {}]
  %s13 = inlined_call_operand.vmem [shape: f32[16,1], index: 13, kind: input, shape index: {}, may-alias: {3,13}]
  %s14 = inlined_call_operand.vmem [shape: f32[16,1], index: 14, kind: input, shape index: {}, may-alias: {4,14}]
  %s15 = inlined_call_operand.vmem [shape: bf16[2,16,256], index: 15, kind: output, shape index: {0}]
  %s16 = inlined_call_operand.hbm [shape: f32[2,1,256], index: 16, kind: output, shape index: {1}]
  %s17 = inlined_call_operand.hbm [shape: f32[2,1,16,8], index: 17, kind: output, shape index: {2}]
  %18 = xla_tuple %s15, %s16, %s17
  %s19 = sld [smem:[#allocation0]]
  $region109: #{up_forward.3} parent=0
    _
  %s21 = ssub.s32 1, %s19
  %s22 = scalar_select 0, %s21, %s19
  $region1: #{up_forward.3} parent=0
    #allocation2 [shape = 'u8[2048]{0}', space=vmem, size = 0x800, scoped, tag = 'output window, operand 1']
    #allocation3 [shape = 's32[2]{0}', space=sflag, size = 0x8, scoped, tag = 'scoped memory for up_forward.3']
    #allocation4 [shape = 'u8[16384]{0}', space=vmem, size = 0x4000, scoped, tag = 'output window, operand 2']
    #allocation5 [shape = 's32[2]{0}', space=sflag, size = 0x8, scoped, tag = 'scoped memory for up_forward.3']
    %23 = vsyncpa [#allocation3], 0
    %s24 = scalar_lea.sflag [#allocation3], 1
    %25 = vsyncpa %s24, 0
    %26 = vsyncpa [#allocation5], 0
    %s27 = scalar_lea.sflag [#allocation5], 1
    %28 = vsyncpa %s27, 0
    loop: start=0, step=1, limit=4
    $region2: #{up_forward.3} parent=1 // loop_pre_header
      _
    $region3: #{up_forward.3} parent=1 // loop_header
      %s30 = sphi 0, %s34
      %p31 = scmp.ge.s32.totalorder %s30, 4
      %s37 = sphi 0, %s49
      %s38 = sphi 0, %s45
      %s39 = sphi 0, %s37
      %s40 = sphi 0, %s38
      %s41 = sphi 0, %s39
      %s42 = sphi 0, %s40
      %s54 = sphi 0, %s56
      %s57 = sphi 0, %s54
      %s58 = sphi 0, %s57
      %s74 = sphi 0, %s58
      %s80 = sphi 0, %s82
      %s83 = sphi 0, %s80
      %s84 = sphi 0, %s83
      %s100 = sphi 0, %s84
      %s104 = sphi 0, %s104
      %s106 = sphi 0, %s104
      %s107 = sphi 0, %s106
      %s121 = sphi 0, %s107
      %s125 = sphi 0, %s125
      %s127 = sphi 0, %s125
      %s128 = sphi 0, %s127
      %s142 = sphi 0, %s128
      %s146 = sphi 0, %s146
      %s148 = sphi 0, %s146
      %s149 = sphi 0, %s148
      %s163 = sphi 0, %s149
      %s171 = sphi 0, %s173
      %s174 = sphi 0, %s171
      %s175 = sphi 0, %s174
      %s191 = sphi 0, %s175
      %s199 = sphi 0, %s201
      %s202 = sphi 0, %s199
      %s203 = sphi 0, %s202
      %s219 = sphi 0, %s203
      %s223 = sphi 0, %s223
      %s225 = sphi 0, %s223
      %s226 = sphi 0, %s225
      %s240 = sphi 0, %s226
      %s244 = sphi 0, %s244
      %s246 = sphi 0, %s244
      %s247 = sphi 0, %s246
      %s261 = sphi 0, %s247
      %s265 = sphi 0, %s265
      %s267 = sphi 0, %s265
      %s268 = sphi 0, %s267
      %s282 = sphi 0, %s268
      %s286 = sphi 0, %s286
      %s288 = sphi 0, %s286
      %s289 = sphi 0, %s288
      %s303 = sphi 0, %s289
      %s307 = sphi 0, %s307
      %s309 = sphi 0, %s307
      %s310 = sphi 0, %s309
      %s324 = sphi 0, %s310
      %s328 = sphi 0, %s328
      %s330 = sphi 0, %s328
      %s331 = sphi 0, %s330
      %s345 = sphi 0, %s331
      %s349 = sphi 0, %s349
      %s351 = sphi 0, %s349
      %s352 = sphi 0, %s351
      %s366 = sphi 0, %s352
      %s370 = sphi 0, %s370
      %s372 = sphi 0, %s370
      %s373 = sphi 0, %s372
      %s387 = sphi 0, %s373
      %s395 = sphi 0, %s397
      %s398 = sphi 0, %s395
      %s399 = sphi 0, %s398
      %s415 = sphi 0, %s399
      %s423 = sphi 0, %s425
      %s426 = sphi 0, %s423
      %s427 = sphi 0, %s426
      %s443 = sphi 0, %s427
      %s451 = sphi 0, %s453
      %s454 = sphi 0, %s451
      %s455 = sphi 0, %s454
      %s471 = sphi 0, %s455
    $region4: #{up_forward.3} parent=1 // loop_header_branch
      %33 = sbr.rel (%p31) target = $region8
    $region5: #{up_forward.3} parent=1 // loop_body
      %s35 = ssub.s32 %s30, 1
      %s36 = ssub.s32 %s30, 2
      %s43 = sadd.s32 1, %s38
      %p44 = scmp.ge.s32.totalorder %s43, 1
      %s45 = scalar_select %p44, 0, %s43
      %s46 = sadd.s32 1, %s37
      %s47 = scalar_select %p44, %s46, %s37
      %p48 = scmp.ge.s32.totalorder %s47, 2
      %s49 = scalar_select %p48, 0, %s47
      %s50 = ssub.s32 %s37, %s49
      %s51 = ssub.s32 %s38, %s45
      %s52 = sor.u32 %s50, %s51
      %p53 = scmp.eq.s32.totalorder %s52, 0
      %s55 = sadd.s32 %s54, 1
      %s56 = scalar_select %p53, %s54, %s55
      %p59 = pneg %p53
      %p60 = scmp.eq.s32.totalorder %s30, 1
      %p61 = por %p59, %p60
      %p62 = scmp.ne.s32.totalorder %s54, %s57
      %p63 = scmp.eq.s32.totalorder %s30, 0
      %p64 = por %p62, %p63
      %p65 = scmp.ne.s32.totalorder %s54, %s57
      %p66 = scmp.eq.s32.totalorder %s35, 1
      %p67 = por %p65, %p66
      %p68 = scmp.ne.s32.totalorder %s57, %s58
      %p69 = scmp.eq.s32.totalorder %s35, 0
      %p70 = por %p68, %p69
      %p71 = scmp.ne.s32.totalorder %s57, %s58
      %p72 = scmp.eq.s32.totalorder %s36, 1
      %p73 = por %p71, %p72
      %p75 = scmp.ne.s32.totalorder %s58, %s74
      %p76 = scmp.eq.s32.totalorder %s36, 0
      %p77 = por %p75, %p76
      %s78 = ssub.s32 %s37, %s49
      %p79 = scmp.eq.s32.totalorder %s78, 0
      %s81 = sadd.s32 %s80, 1
      %s82 = scalar_select %p79, %s80, %s81
      %p85 = pneg %p79
      %p86 = scmp.eq.s32.totalorder %s30, 1
      %p87 = por %p85, %p86
      %p88 = scmp.ne.s32.totalorder %s80, %s83
      %p89 = scmp.eq.s32.totalorder %s30, 0
      %p90 = por %p88, %p89
      %p91 = scmp.ne.s32.totalorder %s80, %s83
      %p92 = scmp.eq.s32.totalorder %s35, 1
      %p93 = por %p91, %p92
      %p94 = scmp.ne.s32.totalorder %s83, %s84
      %p95 = scmp.eq.s32.totalorder %s35, 0
      %p96 = por %p94, %p95
      %p97 = scmp.ne.s32.totalorder %s83, %s84
      %p98 = scmp.eq.s32.totalorder %s36, 1
      %p99 = por %p97, %p98
      %p101 = scmp.ne.s32.totalorder %s84, %s100
      %p102 = scmp.eq.s32.totalorder %s36, 0
      %p103 = por %p101, %p102
      %s105 = sadd.s32 %s104, 1
      %p108 = scmp.eq.s32.totalorder %s30, 1
      %p109 = scmp.ne.s32.totalorder %s104, %s106
      %p110 = scmp.eq.s32.totalorder %s30, 0
      %p111 = por %p109, %p110
      %p112 = scmp.ne.s32.totalorder %s104, %s106
      %p113 = scmp.eq.s32.totalorder %s35, 1
      %p114 = por %p112, %p113
      %p115 = scmp.ne.s32.totalorder %s106, %s107
      %p116 = scmp.eq.s32.totalorder %s35, 0
      %p117 = por %p115, %p116
      %p118 = scmp.ne.s32.totalorder %s106, %s107
      %p119 = scmp.eq.s32.totalorder %s36, 1
      %p120 = por %p118, %p119
      %p122 = scmp.ne.s32.totalorder %s107, %s121
      %p123 = scmp.eq.s32.totalorder %s36, 0
      %p124 = por %p122, %p123
      %s126 = sadd.s32 %s125, 1
      %p129 = scmp.eq.s32.totalorder %s30, 1
      %p130 = scmp.ne.s32.totalorder %s125, %s127
      %p131 = scmp.eq.s32.totalorder %s30, 0
      %p132 = por %p130, %p131
      %p133 = scmp.ne.s32.totalorder %s125, %s127
      %p134 = scmp.eq.s32.totalorder %s35, 1
      %p135 = por %p133, %p134
      %p136 = scmp.ne.s32.totalorder %s127, %s128
      %p137 = scmp.eq.s32.totalorder %s35, 0
      %p138 = por %p136, %p137
      %p139 = scmp.ne.s32.totalorder %s127, %s128
      %p140 = scmp.eq.s32.totalorder %s36, 1
      %p141 = por %p139, %p140
      %p143 = scmp.ne.s32.totalorder %s128, %s142
      %p144 = scmp.eq.s32.totalorder %s36, 0
      %p145 = por %p143, %p144
      %s147 = sadd.s32 %s146, 1
      %p150 = scmp.eq.s32.totalorder %s30, 1
      %p151 = scmp.ne.s32.totalorder %s146, %s148
      %p152 = scmp.eq.s32.totalorder %s30, 0
      %p153 = por %p151, %p152
      %p154 = scmp.ne.s32.totalorder %s146, %s148
      %p155 = scmp.eq.s32.totalorder %s35, 1
      %p156 = por %p154, %p155
      %p157 = scmp.ne.s32.totalorder %s148, %s149
      %p158 = scmp.eq.s32.totalorder %s35, 0
      %p159 = por %p157, %p158
      %p160 = scmp.ne.s32.totalorder %s148, %s149
      %p161 = scmp.eq.s32.totalorder %s36, 1
      %p162 = por %p160, %p161
      %p164 = scmp.ne.s32.totalorder %s149, %s163
      %p165 = scmp.eq.s32.totalorder %s36, 0
      %p166 = por %p164, %p165
      %s167 = ssub.s32 %s37, %s49
      %s168 = ssub.s32 %s38, %s45
      %s169 = sor.u32 %s167, %s168
      %p170 = scmp.eq.s32.totalorder %s169, 0
      %s172 = sadd.s32 %s171, 1
      %s173 = scalar_select %p170, %s171, %s172
      %p176 = pneg %p170
      %p177 = scmp.eq.s32.totalorder %s30, 1
      %p178 = por %p176, %p177
      %p179 = scmp.ne.s32.totalorder %s171, %s174
      %p180 = scmp.eq.s32.totalorder %s30, 0
      %p181 = por %p179, %p180
      %p182 = scmp.ne.s32.totalorder %s171, %s174
      %p183 = scmp.eq.s32.totalorder %s35, 1
      %p184 = por %p182, %p183
      %p185 = scmp.ne.s32.totalorder %s174, %s175
      %p186 = scmp.eq.s32.totalorder %s35, 0
      %p187 = por %p185, %p186
      %p188 = scmp.ne.s32.totalorder %s174, %s175
      %p189 = scmp.eq.s32.totalorder %s36, 1
      %p190 = por %p188, %p189
      %p192 = scmp.ne.s32.totalorder %s175, %s191
      %p193 = scmp.eq.s32.totalorder %s36, 0
      %p194 = por %p192, %p193
      %s195 = ssub.s32 %s37, %s49
      %s196 = ssub.s32 %s38, %s45
      %s197 = sor.u32 %s195, %s196
      %p198 = scmp.eq.s32.totalorder %s197, 0
      %s200 = sadd.s32 %s199, 1
      %s201 = scalar_select %p198, %s199, %s200
      %p204 = pneg %p198
      %p205 = scmp.eq.s32.totalorder %s30, 1
      %p206 = por %p204, %p205
      %p207 = scmp.ne.s32.totalorder %s199, %s202
      %p208 = scmp.eq.s32.totalorder %s30, 0
      %p209 = por %p207, %p208
      %p210 = scmp.ne.s32.totalorder %s199, %s202
      %p211 = scmp.eq.s32.totalorder %s35, 1
      %p212 = por %p210, %p211
      %p213 = scmp.ne.s32.totalorder %s202, %s203
      %p214 = scmp.eq.s32.totalorder %s35, 0
      %p215 = por %p213, %p214
      %p216 = scmp.ne.s32.totalorder %s202, %s203
      %p217 = scmp.eq.s32.totalorder %s36, 1
      %p218 = por %p216, %p217
      %p220 = scmp.ne.s32.totalorder %s203, %s219
      %p221 = scmp.eq.s32.totalorder %s36, 0
      %p222 = por %p220, %p221
      %s224 = sadd.s32 %s223, 1
      %p227 = scmp.eq.s32.totalorder %s30, 1
      %p228 = scmp.ne.s32.totalorder %s223, %s225
      %p229 = scmp.eq.s32.totalorder %s30, 0
      %p230 = por %p228, %p229
      %p231 = scmp.ne.s32.totalorder %s223, %s225
      %p232 = scmp.eq.s32.totalorder %s35, 1
      %p233 = por %p231, %p232
      %p234 = scmp.ne.s32.totalorder %s225, %s226
      %p235 = scmp.eq.s32.totalorder %s35, 0
      %p236 = por %p234, %p235
      %p237 = scmp.ne.s32.totalorder %s225, %s226
      %p238 = scmp.eq.s32.totalorder %s36, 1
      %p239 = por %p237, %p238
      %p241 = scmp.ne.s32.totalorder %s226, %s240
      %p242 = scmp.eq.s32.totalorder %s36, 0
      %p243 = por %p241, %p242
      %s245 = sadd.s32 %s244, 1
      %p248 = scmp.eq.s32.totalorder %s30, 1
      %p249 = scmp.ne.s32.totalorder %s244, %s246
      %p250 = scmp.eq.s32.totalorder %s30, 0
      %p251 = por %p249, %p250
      %p252 = scmp.ne.s32.totalorder %s244, %s246
      %p253 = scmp.eq.s32.totalorder %s35, 1
      %p254 = por %p252, %p253
      %p255 = scmp.ne.s32.totalorder %s246, %s247
      %p256 = scmp.eq.s32.totalorder %s35, 0
      %p257 = por %p255, %p256
      %p258 = scmp.ne.s32.totalorder %s246, %s247
      %p259 = scmp.eq.s32.totalorder %s36, 1
      %p260 = por %p258, %p259
      %p262 = scmp.ne.s32.totalorder %s247, %s261
      %p263 = scmp.eq.s32.totalorder %s36, 0
      %p264 = por %p262, %p263
      %s266 = sadd.s32 %s265, 1
      %p269 = scmp.eq.s32.totalorder %s30, 1
      %p270 = scmp.ne.s32.totalorder %s265, %s267
      %p271 = scmp.eq.s32.totalorder %s30, 0
      %p272 = por %p270, %p271
      %p273 = scmp.ne.s32.totalorder %s265, %s267
      %p274 = scmp.eq.s32.totalorder %s35, 1
      %p275 = por %p273, %p274
      %p276 = scmp.ne.s32.totalorder %s267, %s268
      %p277 = scmp.eq.s32.totalorder %s35, 0
      %p278 = por %p276, %p277
      %p279 = scmp.ne.s32.totalorder %s267, %s268
      %p280 = scmp.eq.s32.totalorder %s36, 1
      %p281 = por %p279, %p280
      %p283 = scmp.ne.s32.totalorder %s268, %s282
      %p284 = scmp.eq.s32.totalorder %s36, 0
      %p285 = por %p283, %p284
      %s287 = sadd.s32 %s286, 1
      %p290 = scmp.eq.s32.totalorder %s30, 1
      %p291 = scmp.ne.s32.totalorder %s286, %s288
      %p292 = scmp.eq.s32.totalorder %s30, 0
      %p293 = por %p291, %p292
      %p294 = scmp.ne.s32.totalorder %s286, %s288
      %p295 = scmp.eq.s32.totalorder %s35, 1
      %p296 = por %p294, %p295
      %p297 = scmp.ne.s32.totalorder %s288, %s289
      %p298 = scmp.eq.s32.totalorder %s35, 0
      %p299 = por %p297, %p298
      %p300 = scmp.ne.s32.totalorder %s288, %s289
      %p301 = scmp.eq.s32.totalorder %s36, 1
      %p302 = por %p300, %p301
      %p304 = scmp.ne.s32.totalorder %s289, %s303
      %p305 = scmp.eq.s32.totalorder %s36, 0
      %p306 = por %p304, %p305
      %s308 = sadd.s32 %s307, 1
      %p311 = scmp.eq.s32.totalorder %s30, 1
      %p312 = scmp.ne.s32.totalorder %s307, %s309
      %p313 = scmp.eq.s32.totalorder %s30, 0
      %p314 = por %p312, %p313
      %p315 = scmp.ne.s32.totalorder %s307, %s309
      %p316 = scmp.eq.s32.totalorder %s35, 1
      %p317 = por %p315, %p316
      %p318 = scmp.ne.s32.totalorder %s309, %s310
      %p319 = scmp.eq.s32.totalorder %s35, 0
      %p320 = por %p318, %p319
      %p321 = scmp.ne.s32.totalorder %s309, %s310
      %p322 = scmp.eq.s32.totalorder %s36, 1
      %p323 = por %p321, %p322
      %p325 = scmp.ne.s32.totalorder %s310, %s324
      %p326 = scmp.eq.s32.totalorder %s36, 0
      %p327 = por %p325, %p326
      %s329 = sadd.s32 %s328, 1
      %p332 = scmp.eq.s32.totalorder %s30, 1
      %p333 = scmp.ne.s32.totalorder %s328, %s330
      %p334 = scmp.eq.s32.totalorder %s30, 0
      %p335 = por %p333, %p334
      %p336 = scmp.ne.s32.totalorder %s328, %s330
      %p337 = scmp.eq.s32.totalorder %s35, 1
      %p338 = por %p336, %p337
      %p339 = scmp.ne.s32.totalorder %s330, %s331
      %p340 = scmp.eq.s32.totalorder %s35, 0
      %p341 = por %p339, %p340
      %p342 = scmp.ne.s32.totalorder %s330, %s331
      %p343 = scmp.eq.s32.totalorder %s36, 1
      %p344 = por %p342, %p343
      %p346 = scmp.ne.s32.totalorder %s331, %s345
      %p347 = scmp.eq.s32.totalorder %s36, 0
      %p348 = por %p346, %p347
      %s350 = sadd.s32 %s349, 1
      %p353 = scmp.eq.s32.totalorder %s30, 1
      %p354 = scmp.ne.s32.totalorder %s349, %s351
      %p355 = scmp.eq.s32.totalorder %s30, 0
      %p356 = por %p354, %p355
      %p357 = scmp.ne.s32.totalorder %s349, %s351
      %p358 = scmp.eq.s32.totalorder %s35, 1
      %p359 = por %p357, %p358
      %p360 = scmp.ne.s32.totalorder %s351, %s352
      %p361 = scmp.eq.s32.totalorder %s35, 0
      %p362 = por %p360, %p361
      %p363 = scmp.ne.s32.totalorder %s351, %s352
      %p364 = scmp.eq.s32.totalorder %s36, 1
      %p365 = por %p363, %p364
      %p367 = scmp.ne.s32.totalorder %s352, %s366
      %p368 = scmp.eq.s32.totalorder %s36, 0
      %p369 = por %p367, %p368
      %s371 = sadd.s32 %s370, 1
      %p374 = scmp.eq.s32.totalorder %s30, 1
      %p375 = scmp.ne.s32.totalorder %s370, %s372
      %p376 = scmp.eq.s32.totalorder %s30, 0
      %p377 = por %p375, %p376
      %p378 = scmp.ne.s32.totalorder %s370, %s372
      %p379 = scmp.eq.s32.totalorder %s35, 1
      %p380 = por %p378, %p379
      %p381 = scmp.ne.s32.totalorder %s372, %s373
      %p382 = scmp.eq.s32.totalorder %s35, 0
      %p383 = por %p381, %p382
      %p384 = scmp.ne.s32.totalorder %s372, %s373
      %p385 = scmp.eq.s32.totalorder %s36, 1
      %p386 = por %p384, %p385
      %p388 = scmp.ne.s32.totalorder %s373, %s387
      %p389 = scmp.eq.s32.totalorder %s36, 0
      %p390 = por %p388, %p389
      %s391 = ssub.s32 %s37, %s49
      %s392 = ssub.s32 %s38, %s45
      %s393 = sor.u32 %s391, %s392
      %p394 = scmp.eq.s32.totalorder %s393, 0
      %s396 = sadd.s32 %s395, 1
      %s397 = scalar_select %p394, %s395, %s396
      %p400 = pneg %p394
      %p401 = scmp.eq.s32.totalorder %s30, 1
      %p402 = por %p400, %p401
      %p403 = scmp.ne.s32.totalorder %s395, %s398
      %p404 = scmp.eq.s32.totalorder %s30, 0
      %p405 = por %p403, %p404
      %p406 = scmp.ne.s32.totalorder %s395, %s398
      %p407 = scmp.eq.s32.totalorder %s35, 1
      %p408 = por %p406, %p407
      %p409 = scmp.ne.s32.totalorder %s398, %s399
      %p410 = scmp.eq.s32.totalorder %s35, 0
      %p411 = por %p409, %p410
      %p412 = scmp.ne.s32.totalorder %s398, %s399
      %p413 = scmp.eq.s32.totalorder %s36, 1
      %p414 = por %p412, %p413
      %p416 = scmp.ne.s32.totalorder %s399, %s415
      %p417 = scmp.eq.s32.totalorder %s36, 0
      %p418 = por %p416, %p417
      %s419 = ssub.s32 %s37, %s49
      %s420 = ssub.s32 %s38, %s45
      %s421 = sor.u32 %s419, %s420
      %p422 = scmp.eq.s32.totalorder %s421, 0
      %s424 = sadd.s32 %s423, 1
      %s425 = scalar_select %p422, %s423, %s424
      %p428 = pneg %p422
      %p429 = scmp.eq.s32.totalorder %s30, 1
      %p430 = por %p428, %p429
      %p431 = scmp.ne.s32.totalorder %s423, %s426
      %p432 = scmp.eq.s32.totalorder %s30, 0
      %p433 = por %p431, %p432
      %p434 = scmp.ne.s32.totalorder %s423, %s426
      %p435 = scmp.eq.s32.totalorder %s35, 1
      %p436 = por %p434, %p435
      %p437 = scmp.ne.s32.totalorder %s426, %s427
      %p438 = scmp.eq.s32.totalorder %s35, 0
      %p439 = por %p437, %p438
      %p440 = scmp.ne.s32.totalorder %s426, %s427
      %p441 = scmp.eq.s32.totalorder %s36, 1
      %p442 = por %p440, %p441
      %p444 = scmp.ne.s32.totalorder %s427, %s443
      %p445 = scmp.eq.s32.totalorder %s36, 0
      %p446 = por %p444, %p445
      %s447 = ssub.s32 %s37, %s49
      %s448 = ssub.s32 %s38, %s45
      %s449 = sor.u32 %s447, %s448
      %p450 = scmp.eq.s32.totalorder %s449, 0
      %s452 = sadd.s32 %s451, 1
      %s453 = scalar_select %p450, %s451, %s452
      %p456 = pneg %p450
      %p457 = scmp.eq.s32.totalorder %s30, 1
      %p458 = por %p456, %p457
      %p459 = scmp.ne.s32.totalorder %s451, %s454
      %p460 = scmp.eq.s32.totalorder %s30, 0
      %p461 = por %p459, %p460
      %p462 = scmp.ne.s32.totalorder %s451, %s454
      %p463 = scmp.eq.s32.totalorder %s35, 1
      %p464 = por %p462, %p463
      %p465 = scmp.ne.s32.totalorder %s454, %s455
      %p466 = scmp.eq.s32.totalorder %s35, 0
      %p467 = por %p465, %p466
      %p468 = scmp.ne.s32.totalorder %s454, %s455
      %p469 = scmp.eq.s32.totalorder %s36, 1
      %p470 = por %p468, %p469
      %p472 = scmp.ne.s32.totalorder %s455, %s471
      %p473 = scmp.eq.s32.totalorder %s36, 0
      %p474 = por %p472, %p473
      %p475 = scmp.le.s32.totalorder 1, %s30
      %p476 = scmp.lt.s32.totalorder %s30, 3
      %p477 = pnand %p475, %p476
      %p478 = pneg %p477
      // Predicated region
      $region9: #{up_forward.3} parent=5 // pred_check
        _
      $region10: #{up_forward.3} parent=5 // pred_check_branch
        %480 = sbr.rel (%p477) target = $region12
      $region11: #{up_forward.3} parent=5 // pred_region
        %s481 = ssub.s32 %s30, 1
        // Predicated region
        $region13: #{up_forward.3} parent=11 // pred_check
          %p482 = pneg %p117
        $region14: #{up_forward.3} parent=11 // pred_check_branch
          %484 = sbr.rel (%p482) target = $region16
        $region15: #{up_forward.3} parent=11 // pred_region
          _
        $region16: #{up_forward.3} parent=11 // pred_fallthru
          _
        // Predicated region
        $region17: #{up_forward.3} parent=11 // pred_check
          %p485 = pneg %p138
        $region18: #{up_forward.3} parent=11 // pred_check_branch
          %487 = sbr.rel (%p485) target = $region20
        $region19: #{up_forward.3} parent=11 // pred_region
          _
        $region20: #{up_forward.3} parent=11 // pred_fallthru
          _
        // Predicated region
        $region21: #{up_forward.3} parent=11 // pred_check
          %p488 = pneg %p159
        $region22: #{up_forward.3} parent=11 // pred_check_branch
          %490 = sbr.rel (%p488) target = $region24
        $region23: #{up_forward.3} parent=11 // pred_region
          _
        $region24: #{up_forward.3} parent=11 // pred_fallthru
          _
        // Predicated region
        $region25: #{up_forward.3} parent=11 // pred_check
          %p491 = pneg %p236
        $region26: #{up_forward.3} parent=11 // pred_check_branch
          %493 = sbr.rel (%p491) target = $region28
        $region27: #{up_forward.3} parent=11 // pred_region
          _
        $region28: #{up_forward.3} parent=11 // pred_fallthru
          _
        // Predicated region
        $region29: #{up_forward.3} parent=11 // pred_check
          %p494 = pneg %p257
        $region30: #{up_forward.3} parent=11 // pred_check_branch
          %496 = sbr.rel (%p494) target = $region32
        $region31: #{up_forward.3} parent=11 // pred_region
          _
        $region32: #{up_forward.3} parent=11 // pred_fallthru
          _
        // Predicated region
        $region33: #{up_forward.3} parent=11 // pred_check
          %p497 = pneg %p278
        $region34: #{up_forward.3} parent=11 // pred_check_branch
          %499 = sbr.rel (%p497) target = $region36
        $region35: #{up_forward.3} parent=11 // pred_region
          _
        $region36: #{up_forward.3} parent=11 // pred_fallthru
          _
        // Predicated region
        $region37: #{up_forward.3} parent=11 // pred_check
          %p500 = pneg %p299
        $region38: #{up_forward.3} parent=11 // pred_check_branch
          %502 = sbr.rel (%p500) target = $region40
        $region39: #{up_forward.3} parent=11 // pred_region
          _
        $region40: #{up_forward.3} parent=11 // pred_fallthru
          _
        // Predicated region
        $region41: #{up_forward.3} parent=11 // pred_check
          %p503 = pneg %p320
        $region42: #{up_forward.3} parent=11 // pred_check_branch
          %505 = sbr.rel (%p503) target = $region44
        $region43: #{up_forward.3} parent=11 // pred_region
          _
        $region44: #{up_forward.3} parent=11 // pred_fallthru
          _
        // Predicated region
        $region45: #{up_forward.3} parent=11 // pred_check
          %p506 = pneg %p341
        $region46: #{up_forward.3} parent=11 // pred_check_branch
          %508 = sbr.rel (%p506) target = $region48
        $region47: #{up_forward.3} parent=11 // pred_region
          _
        $region48: #{up_forward.3} parent=11 // pred_fallthru
          _
        // Predicated region
        $region49: #{up_forward.3} parent=11 // pred_check
          %p509 = pneg %p362
        $region50: #{up_forward.3} parent=11 // pred_check_branch
          %511 = sbr.rel (%p509) target = $region52
        $region51: #{up_forward.3} parent=11 // pred_region
          _
        $region52: #{up_forward.3} parent=11 // pred_fallthru
          _
        // Predicated region
        $region53: #{up_forward.3} parent=11 // pred_check
          %p512 = pneg %p383
        $region54: #{up_forward.3} parent=11 // pred_check_branch
          %514 = sbr.rel (%p512) target = $region56
        $region55: #{up_forward.3} parent=11 // pred_region
          _
        $region56: #{up_forward.3} parent=11 // pred_fallthru
          _
      $region12: #{up_forward.3} parent=5 // pred_fallthru
        _
      %p515 = scmp.lt.s32.totalorder %s30, 2
      // Predicated region
      $region57: #{up_forward.3} parent=5 // pred_check
        %p516 = pneg %p515
      $region58: #{up_forward.3} parent=5 // pred_check_branch
        %518 = sbr.rel (%p516) target = $region60
      $region59: #{up_forward.3} parent=5 // pred_region
        // Predicated region
        $region61: #{up_forward.3} parent=59 // pred_check
          %p519 = pneg %p64
        $region62: #{up_forward.3} parent=59 // pred_check_branch
          %521 = sbr.rel (%p519) target = $region64
        $region63: #{up_forward.3} parent=59 // pred_region
          %s522 = smul.u32 2, %s38
          %p523 = scmp.lt.s32.totalorder %s37, 1
          %s524 = scalar_select %p523, %s37, 1
          %p525 = scmp.lt.s32.totalorder %s522, 1
          %s526 = scalar_select %p525, %s522, 1
          %s527 = smul.addr %s524, 4
          %s528 = sadd.s32 %s526, %s527
          %s529 = smul.addr %s528, 4
          %s530 = scalar_lea.vmem %s0, %s529
          %s531 = smul.u32 2, %s38
        $region64: #{up_forward.3} parent=59 // pred_fallthru
          _
        // Predicated region
        $region65: #{up_forward.3} parent=59 // pred_check
          %p532 = pneg %p90
        $region66: #{up_forward.3} parent=59 // pred_check_branch
          %534 = sbr.rel (%p532) target = $region68
        $region67: #{up_forward.3} parent=59 // pred_region
          %p535 = scmp.lt.s32.totalorder %s37, 1
          %s536 = scalar_select %p535, %s37, 1
          %s537 = smul.addr %s536, 6
          %s538 = smul.addr %s537, 8
          %s539 = scalar_lea.vmem %s1, %s538
        $region68: #{up_forward.3} parent=59 // pred_fallthru
          _
        // Predicated region
        $region69: #{up_forward.3} parent=59 // pred_check
          %p540 = pneg %p181
        $region70: #{up_forward.3} parent=59 // pred_check_branch
          %542 = sbr.rel (%p540) target = $region72
        $region71: #{up_forward.3} parent=59 // pred_region
          %s543 = smul.u32 2, %s38
          %p544 = scmp.lt.s32.totalorder %s37, 1
          %s545 = scalar_select %p544, %s37, 1
          %p546 = scmp.lt.s32.totalorder %s543, 1
          %s547 = scalar_select %p546, %s543, 1
          %s548 = smul.addr %s545, 2
          %s549 = sadd.s32 %s547, %s548
          %s550 = scalar_lea.vmem %s5, %s549
          %s551 = smul.u32 2, %s38
        $region72: #{up_forward.3} parent=59 // pred_fallthru
          _
        // Predicated region
        $region73: #{up_forward.3} parent=59 // pred_check
          %p552 = pneg %p209
        $region74: #{up_forward.3} parent=59 // pred_check_branch
          %554 = sbr.rel (%p552) target = $region76
        $region75: #{up_forward.3} parent=59 // pred_region
          %s555 = smul.u32 2, %s38
          %p556 = scmp.lt.s32.totalorder %s37, 1
          %s557 = scalar_select %p556, %s37, 1
          %p558 = scmp.lt.s32.totalorder %s555, 1
          %s559 = scalar_select %p558, %s555, 1
          %s560 = smul.addr %s557, 2
          %s561 = sadd.s32 %s559, %s560
          %s562 = scalar_lea.vmem %s6, %s561
          %s563 = smul.u32 2, %s38
        $region76: #{up_forward.3} parent=59 // pred_fallthru
          _
      $region60: #{up_forward.3} parent=5 // pred_fallthru
        _
      %p564 = scmp.le.s32.totalorder 1, %s30
      %p565 = scmp.lt.s32.totalorder %s30, 3
      %p566 = pnand %p564, %p565
      %p567 = pneg %p566
      // Predicated region
      $region77: #{up_forward.3} parent=5 // pred_check
        _
      $region78: #{up_forward.3} parent=5 // pred_check_branch
        %569 = sbr.rel (%p566) target = $region80
      $region79: #{up_forward.3} parent=5 // pred_region
        %s570 = ssub.s32 %s30, 1
        %s571 = smul.u32 2, %s40
        %p572 = scmp.lt.s32.totalorder %s39, 1
        %s573 = scalar_select %p572, %s39, 1
        %p574 = scmp.lt.s32.totalorder %s571, 1
        %s575 = scalar_select %p574, %s571, 1
        %s576 = smul.addr %s573, 4
        %s577 = sadd.s32 %s575, %s576
        %s578 = smul.addr %s577, 4
        %s579 = scalar_lea.vmem %s0, %s578
        %p580 = pneg %p70
        %p581 = pneg %p67
        %p582 = scmp.lt.s32.totalorder %s39, 1
        %s583 = scalar_select %p582, %s39, 1
        %s584 = smul.addr %s583, 6
        %s585 = smul.addr %s584, 8
        %s586 = scalar_lea.vmem %s1, %s585
        %p587 = pneg %p96
        %p588 = pneg %p93
        %p589 = pneg %p117
        %p590 = pneg %p114
        %p591 = pneg %p138
        %p592 = pneg %p135
        %p593 = pneg %p159
        %p594 = pneg %p156
        %s595 = smul.u32 2, %s40
        %p596 = scmp.lt.s32.totalorder %s39, 1
        %s597 = scalar_select %p596, %s39, 1
        %p598 = scmp.lt.s32.totalorder %s595, 1
        %s599 = scalar_select %p598, %s595, 1
        %s600 = smul.addr %s597, 2
        %s601 = sadd.s32 %s599, %s600
        %s602 = scalar_lea.vmem %s5, %s601
        %p603 = pneg %p187
        %p604 = pneg %p184
        %s605 = smul.u32 2, %s40
        %p606 = scmp.lt.s32.totalorder %s39, 1
        %s607 = scalar_select %p606, %s39, 1
        %p608 = scmp.lt.s32.totalorder %s605, 1
        %s609 = scalar_select %p608, %s605, 1
        %s610 = smul.addr %s607, 2
        %s611 = sadd.s32 %s609, %s610
        %s612 = scalar_lea.vmem %s6, %s611
        %p613 = pneg %p215
        %p614 = pneg %p212
        %p615 = pneg %p236
        %p616 = pneg %p233
        %p617 = pneg %p257
        %p618 = pneg %p254
        %p619 = pneg %p278
        %p620 = pneg %p275
        %p621 = pneg %p299
        %p622 = pneg %p296
        %p623 = pneg %p320
        %p624 = pneg %p317
        %p625 = pneg %p341
        %p626 = pneg %p338
        %p627 = pneg %p362
        %p628 = pneg %p359
        %p629 = pneg %p383
        %p630 = pneg %p380
        %p631 = pneg %p411
        %p632 = pneg %p408
        %s633 = smul.u32 2, %s40
        %p634 = scmp.lt.s32.totalorder %s39, 1
        %s635 = scalar_select %p634, %s39, 1
        %p636 = scmp.lt.s32.totalorder %s633, 1
        %s637 = scalar_select %p636, %s633, 1
        %s638 = smul.addr %s635, 4
        %s639 = sadd.s32 %s637, %s638
        %s640 = smul.addr %s639, 4
        %s641 = scalar_lea.vmem %s15, %s640
        %p642 = pneg %p439
        %p643 = pneg %p436
        %s644 = sand.u32 %s426, 1
        %s645 = scalar_lea.sflag [#allocation3], %s644
        %s646 = sand.u32 %s426, 1
        %s647 = smul.addr %s646, 2
        %s648 = scalar_lea.vmem [#allocation2], %s647
        %p649 = pneg %p467
        %p650 = pneg %p464
        %s651 = sand.u32 %s454, 1
        %s652 = scalar_lea.sflag [#allocation5], %s651
        %s653 = sand.u32 %s454, 1
        %s654 = smul.addr %s653, 16
        %s655 = scalar_lea.vmem [#allocation4], %s654
        %s656 = smul.u32 2, %s40
        %p657 = scmp.lt.s32.totalorder %s39, 1
        %s658 = scalar_select %p657, %s39, 1
        %p659 = scmp.lt.s32.totalorder %s656, 1
        %s660 = scalar_select %p659, %s656, 1
        %s661 = smul.addr %s658, 4
        %s662 = sadd.s32 %s660, %s661
        %s663 = smul.addr %s662, 4
        %s664 = scalar_lea.vmem %s0, %s663
        %s665 = smul.u32 2, %s40
        %p666 = scmp.lt.s32.totalorder %s39, 1
        %s667 = scalar_select %p666, %s39, 1
        %s668 = smul.addr %s667, 6
        %s669 = smul.addr %s668, 8
        %s670 = scalar_lea.vmem %s1, %s669
        %s671 = smul.u32 2, %s40
        %p672 = scmp.lt.s32.totalorder %s39, 1
        %s673 = scalar_select %p672, %s39, 1
        %p674 = scmp.lt.s32.totalorder %s671, 1
        %s675 = scalar_select %p674, %s671, 1
        %s676 = smul.addr %s673, 2
        %s677 = sadd.s32 %s675, %s676
        %s678 = scalar_lea.vmem %s5, %s677
        %s679 = smul.u32 2, %s40
        %s680 = smul.u32 2, %s40
        %p681 = scmp.lt.s32.totalorder %s39, 1
        %s682 = scalar_select %p681, %s39, 1
        %p683 = scmp.lt.s32.totalorder %s680, 1
        %s684 = scalar_select %p683, %s680, 1
        %s685 = smul.addr %s682, 2
        %s686 = sadd.s32 %s684, %s685
        %s687 = scalar_lea.vmem %s6, %s686
        %s688 = smul.u32 2, %s40
        %s689 = smul.u32 2, %s40
        %p690 = scmp.lt.s32.totalorder %s39, 1
        %s691 = scalar_select %p690, %s39, 1
        %p692 = scmp.lt.s32.totalorder %s689, 1
        %s693 = scalar_select %p692, %s689, 1
        %s694 = smul.addr %s691, 4
        %s695 = sadd.s32 %s693, %s694
        %s696 = smul.addr %s695, 4
        %s697 = scalar_lea.vmem %s15, %s696
        %s698 = smul.u32 2, %s40
        %s699 = smul.u32 2, %s40
        %v700 = vld [vmem:[%s664] sm:$0xff]
        %v701 = vld [vmem:[%s664 + $0x8] sm:$0xff]
        %v702 = vunpack.c.l.bf16 %v700
        %v703 = vunpack.c.h.bf16 %v700
        %v704 = vunpack.c.l.bf16 %v701
        %v705 = vunpack.c.h.bf16 %v701
        %v706 = vld [vmem:[%s3] sm:$0xff]
        %v707 = vld [vmem:[%s3 + $0x8] sm:$0xff]
        %v708 = vld [vmem:[%s4] sm:$0xff]
        %v709 = vld [vmem:[%s4 + $0x8] sm:$0xff]
        %v710 = vadd.f32 %v702, %v704
        %v711 = vrot.slane %v710, 4
        %v712 = vadd.f32 %v710, %v711
        %v713 = vrot.slane %v712, 2
        %v714 = vadd.f32 %v712, %v713
        %v715 = vrot.slane %v714, 1
        %v716 = vadd.f32 %v714, %v715
        %v717 = vadd.f32 %v703, %v705
        %v718 = vrot.slane %v717, 4
        %v719 = vadd.f32 %v717, %v718
        %v720 = vrot.slane %v719, 2
        %v721 = vadd.f32 %v719, %v720
        %v722 = vrot.slane %v721, 1
        %v723 = vadd.f32 %v721, %v722
        %v724 = vrcp.pop 16.0
        %v725 = vmul.f32 16.0, %v724
        %v726 = vsub.f32 1.0, %v725
        %v727 = vmul.f32 %v724, %v726
        %v728 = vadd.f32 %v724, %v727
        %vm729 = vweird.f32 %v724
        %v730 = vsel %vm729, %v724, %v728
        %v731 = vmul.f32 %v716, %v730
        %v732 = vmul.f32 %v723, %v730
        %v733 = vsub.f32 %v702, %v731
        %v734 = vsub.f32 %v703, %v732
        %v735 = vsub.f32 %v704, %v731
        %v736 = vsub.f32 %v705, %v732
        %v737 = vmul.f32 %v733, %v733
        %v738 = vmul.f32 %v734, %v734
        %v739 = vmul.f32 %v735, %v735
        %v740 = vmul.f32 %v736, %v736
        %v741 = vadd.f32 %v737, %v739
        %v742 = vrot.slane %v741, 4
        %v743 = vadd.f32 %v741, %v742
        %v744 = vrot.slane %v743, 2
        %v745 = vadd.f32 %v743, %v744
        %v746 = vrot.slane %v745, 1
        %v747 = vadd.f32 %v745, %v746
        %v748 = vadd.f32 %v738, %v740
        %v749 = vrot.slane %v748, 4
        %v750 = vadd.f32 %v748, %v749
        %v751 = vrot.slane %v750, 2
        %v752 = vadd.f32 %v750, %v751
        %v753 = vrot.slane %v752, 1
        %v754 = vadd.f32 %v752, %v753
        %v755 = vmul.f32 %v747, %v730
        %v756 = vmul.f32 %v754, %v730
        %v757 = vrsqrt.pop %v755
        %v758 = vmul.f32 %v757, %v755
        %v759 = vmul.f32 %v758, %v757
        %v760 = vmul.f32 0.5, %v759
        %v761 = vsub.f32 1.5, %v760
        %v762 = vmul.f32 %v757, %v761
        %v763 = vmul.f32 %v755, %v762
        %vm764 = vcmp.eq.f32.partialorder %v755, inf
        %v765 = vsel %vm764, %v755, %v763
        %vm766 = vcmp.eq.f32.partialorder %v755, 0.0
        %v767 = vand.u32 %v755, 2147483648
        %v768 = vsel %vm766, %v767, %v765
        %v769 = vrsqrt.pop %v756
        %v770 = vmul.f32 %v769, %v756
        %v771 = vmul.f32 %v770, %v769
        %v772 = vmul.f32 0.5, %v771
        %v773 = vsub.f32 1.5, %v772
        %v774 = vmul.f32 %v769, %v773
        %v775 = vmul.f32 %v756, %v774
        %vm776 = vcmp.eq.f32.partialorder %v756, inf
        %v777 = vsel %vm776, %v756, %v775
        %vm778 = vcmp.eq.f32.partialorder %v756, 0.0
        %v779 = vand.u32 %v756, 2147483648
        %v780 = vsel %vm778, %v779, %v777
        %v781 = vadd.f32 %v768, 1e-05
        %v782 = vadd.f32 %v780, 1e-05
        %v783 = vrcp.pop %v781
        %v784 = vrcp.pop %v782
        %v785 = vmul.f32 %v733, %v783
        %v786 = vmul.f32 %v734, %v784
        %v787 = vmul.f32 %v735, %v783
        %v788 = vmul.f32 %v736, %v784
        %790 = vset.pattern.permute.xlu0 0
        %791 = vperm.xlu0 %790, %v706
        %v792 = vpop.permute.xlu0 %791
        %795 = vset.pattern.permute.xlu0 0
        %796 = vperm.xlu0 %795, %v707
        %v797 = vpop.permute.xlu0 %796
        %v799 = vmul.f32 %v785, %v792
        %v800 = vmul.f32 %v786, %v792
        %v801 = vmul.f32 %v787, %v797
        %v802 = vmul.f32 %v788, %v797
        %804 = vset.pattern.permute.xlu0 0
        %805 = vperm.xlu0 %804, %v708
        %v806 = vpop.permute.xlu0 %805
        %809 = vset.pattern.permute.xlu0 0
        %810 = vperm.xlu0 %809, %v709
        %v811 = vpop.permute.xlu0 %810
        %v813 = vadd.f32 %v799, %v806
        %v814 = vadd.f32 %v800, %v806
        %v815 = vadd.f32 %v801, %v811
        %v816 = vadd.f32 %v802, %v811
        %v817 = vld [vmem:[%s670] sm:$0xff]
        %v818 = vld [vmem:[%s670 + $0x8] sm:$0xff]
        %v819 = vld [vmem:[%s670 + $0x10] sm:$0xff]
        %v820 = vld [vmem:[%s670 + $0x18] sm:$0xff]
        %v821 = vld [vmem:[%s670 + $0x20] sm:$0xff]
        %v822 = vld [vmem:[%s670 + $0x28] sm:$0xff]
        %vm823 = vcmask 130048
        %v825 = vsel %vm823, %v817, 0
        %v828 = vsel %vm823, %v818, 0
        %v831 = vsel %vm823, %v819, 0
        %v834 = vsel %vm823, %v820, 0
        %v837 = vsel %vm823, %v821, 0
        %v840 = vsel %vm823, %v822, 0
        %842 = vmatpush.msra.mxu0 0.0
        %843 = vmatpush.msra.mxu0 0.0
        %844 = vmatpush.msra.mxu0 0.0
        %845 = vmatpush.msra.mxu0 0.0
        %846 = vmatpush.msra.mxu0 0.0
        %847 = vmatpush.msra.mxu0 0.0
        %848 = vmatpush.msra.mxu0 0.0
        %849 = vmatpush.msra.mxu0 0.0
        %850 = vmatpush.msra.mxu0 0.0
        %851 = vmatpush.msra.mxu0 0.0
        %852 = vmatpush.msra.mxu0 0.0
        %853 = vmatpush.msra.mxu0 0.0
        %854 = vmatpush.msra.mxu0 0.0
        %855 = vmatpush.msra.mxu0 0.0
        %856 = vmatpush.msra.mxu0 %v815
        %857 = vmatpush.msra.mxu0 %v813
        %858 = vmatmul.f32.gmra.mxu0 %v825
        %v859 = vpop.f32.mrf.mxu0
        %v860 = vadd.f32 0.0, %v859
        %861 = vmatmul.f32.gmra.mxu0 %v828
        %v862 = vpop.f32.mrf.mxu0
        %v863 = vadd.f32 0.0, %v862
        %864 = vmatmul.f32.gmra.mxu0 %v831
        %v865 = vpop.f32.mrf.mxu0
        %v866 = vadd.f32 0.0, %v865
        %867 = vmatmul.f32.gmra.mxu0 %v834
        %v868 = vpop.f32.mrf.mxu0
        %v869 = vadd.f32 0.0, %v868
        %870 = vmatmul.f32.gmra.mxu0 %v837
        %v871 = vpop.f32.mrf.mxu0
        %v872 = vadd.f32 0.0, %v871
        %873 = vmatmul.f32.gmra.mxu0 %v840
        %v874 = vpop.f32.mrf.mxu0
        %v875 = vadd.f32 0.0, %v874
        %876 = vdwg.mxu0
        %877 = vmatpush.msra.mxu0 0.0
        %878 = vmatpush.msra.mxu0 0.0
        %879 = vmatpush.msra.mxu0 0.0
        %880 = vmatpush.msra.mxu0 0.0
        %881 = vmatpush.msra.mxu0 0.0
        %882 = vmatpush.msra.mxu0 0.0
        %883 = vmatpush.msra.mxu0 0.0
        %884 = vmatpush.msra.mxu0 0.0
        %885 = vmatpush.msra.mxu0 0.0
        %886 = vmatpush.msra.mxu0 0.0
        %887 = vmatpush.msra.mxu0 0.0
        %888 = vmatpush.msra.mxu0 0.0
        %889 = vmatpush.msra.mxu0 0.0
        %890 = vmatpush.msra.mxu0 0.0
        %891 = vmatpush.msra.mxu0 %v816
        %892 = vmatpush.msra.mxu0 %v814
        %893 = vmatmul.f32.gmra.mxu0 %v825
        %v894 = vpop.f32.mrf.mxu0
        %v895 = vadd.f32 0.0, %v894
        %896 = vmatmul.f32.gmra.mxu0 %v828
        %v897 = vpop.f32.mrf.mxu0
        %v898 = vadd.f32 0.0, %v897
        %899 = vmatmul.f32.gmra.mxu0 %v831
        %v900 = vpop.f32.mrf.mxu0
        %v901 = vadd.f32 0.0, %v900
        %902 = vmatmul.f32.gmra.mxu0 %v834
        %v903 = vpop.f32.mrf.mxu0
        %v904 = vadd.f32 0.0, %v903
        %905 = vmatmul.f32.gmra.mxu0 %v837
        %v906 = vpop.f32.mrf.mxu0
        %v907 = vadd.f32 0.0, %v906
        %908 = vmatmul.f32.gmra.mxu0 %v840
        %v909 = vpop.f32.mrf.mxu0
        %v910 = vadd.f32 0.0, %v909
        %911 = vdwg.mxu0
        %v912 = vld [vmem:[%s678] sm:$0x3]
        %v913 = vld [vmem:[%s687] sm:$0x3]
        %v914 = vadd.f32 %v702, %v860
        %v915 = vadd.f32 %v703, %v895
        %v916 = vadd.f32 %v704, %v863
        %v917 = vadd.f32 %v705, %v898
        %v919 = vperm.slane %v912, 0
        %v920 = vperm.slane %v912, 1
        %v923 = vmul.f32 %v919, %v866
        %v924 = vmul.f32 %v920, %v901
        %v925 = vmul.f32 %v919, %v869
        %v926 = vmul.f32 %v920, %v904
        %v927 = vadd.f32 %v914, %v923
        %v928 = vadd.f32 %v915, %v924
        %v929 = vadd.f32 %v916, %v925
        %v930 = vadd.f32 %v917, %v926
        %v932 = vperm.slane %v913, 0
        %v933 = vperm.slane %v913, 1
        %v936 = vmul.f32 %v932, %v872
        %v937 = vmul.f32 %v933, %v907
        %v938 = vmul.f32 %v932, %v875
        %v939 = vmul.f32 %v933, %v910
        %v940 = vadd.f32 %v927, %v936
        %v941 = vadd.f32 %v928, %v937
        %v942 = vadd.f32 %v929, %v938
        %v943 = vadd.f32 %v930, %v939
        %v944 = vld [vmem:[%s2] sm:$0xff]
        %v945 = vld [vmem:[%s2 + $0x8] sm:$0xff]
        %947 = vset.pattern.permute.xlu0 0
        %948 = vperm.xlu0 %947, %v944
        %v949 = vpop.permute.xlu0 %948
        %952 = vset.pattern.permute.xlu0 0
        %953 = vperm.xlu0 %952, %v945
        %v954 = vpop.permute.xlu0 %953
        %v956 = vadd.f32 %v940, %v949
        %v957 = vadd.f32 %v941, %v949
        %v958 = vadd.f32 %v942, %v954
        %v959 = vadd.f32 %v943, %v954
        %v960 = vld [vmem:[%s11] sm:$0xff]
        %v961 = vld [vmem:[%s11 + $0x8] sm:$0xff]
        %v962 = vld [vmem:[%s12] sm:$0xff]
        %v963 = vld [vmem:[%s12 + $0x8] sm:$0xff]
        %v964 = vadd.f32 %v956, %v958
        %v965 = vrot.slane %v964, 4
        %v966 = vadd.f32 %v964, %v965
        %v967 = vrot.slane %v966, 2
        %v968 = vadd.f32 %v966, %v967
        %v969 = vrot.slane %v968, 1
        %v970 = vadd.f32 %v968, %v969
        %v971 = vadd.f32 %v957, %v959
        %v972 = vrot.slane %v971, 4
        %v973 = vadd.f32 %v971, %v972
        %v974 = vrot.slane %v973, 2
        %v975 = vadd.f32 %v973, %v974
        %v976 = vrot.slane %v975, 1
        %v977 = vadd.f32 %v975, %v976
        %v978 = vmul.f32 %v970, %v730
        %v979 = vmul.f32 %v977, %v730
        %v980 = vsub.f32 %v956, %v978
        %v981 = vsub.f32 %v957, %v979
        %v982 = vsub.f32 %v958, %v978
        %v983 = vsub.f32 %v959, %v979
        %v984 = vmul.f32 %v980, %v980
        %v985 = vmul.f32 %v981, %v981
        %v986 = vmul.f32 %v982, %v982
        %v987 = vmul.f32 %v983, %v983
        %v988 = vadd.f32 %v984, %v986
        %v989 = vrot.slane %v988, 4
        %v990 = vadd.f32 %v988, %v989
        %v991 = vrot.slane %v990, 2
        %v992 = vadd.f32 %v990, %v991
        %v993 = vrot.slane %v992, 1
        %v994 = vadd.f32 %v992, %v993
        %v995 = vadd.f32 %v985, %v987
        %v996 = vrot.slane %v995, 4
        %v997 = vadd.f32 %v995, %v996
        %v998 = vrot.slane %v997, 2
        %v999 = vadd.f32 %v997, %v998
        %v1000 = vrot.slane %v999, 1
        %v1001 = vadd.f32 %v999, %v1000
        %v1002 = vmul.f32 %v994, %v730
        %v1003 = vmul.f32 %v1001, %v730
        %v1004 = vrsqrt.pop %v1002
        %v1005 = vmul.f32 %v1004, %v1002
        %v1006 = vmul.f32 %v1005, %v1004
        %v1007 = vmul.f32 0.5, %v1006
        %v1008 = vsub.f32 1.5, %v1007
        %v1009 = vmul.f32 %v1004, %v1008
        %v1010 = vmul.f32 %v1002, %v1009
        %vm1011 = vcmp.eq.f32.partialorder %v1002, inf
        %v1012 = vsel %vm1011, %v1002, %v1010
        %vm1013 = vcmp.eq.f32.partialorder %v1002, 0.0
        %v1014 = vand.u32 %v1002, 2147483648
        %v1015 = vsel %vm1013, %v1014, %v1012
        %v1016 = vrsqrt.pop %v1003
        %v1017 = vmul.f32 %v1016, %v1003
        %v1018 = vmul.f32 %v1017, %v1016
        %v1019 = vmul.f32 0.5, %v1018
        %v1020 = vsub.f32 1.5, %v1019
        %v1021 = vmul.f32 %v1016, %v1020
        %v1022 = vmul.f32 %v1003, %v1021
        %vm1023 = vcmp.eq.f32.partialorder %v1003, inf
        %v1024 = vsel %vm1023, %v1003, %v1022
        %vm1025 = vcmp.eq.f32.partialorder %v1003, 0.0
        %v1026 = vand.u32 %v1003, 2147483648
        %v1027 = vsel %vm1025, %v1026, %v1024
        %v1028 = vadd.f32 %v1015, 1e-05
        %v1029 = vadd.f32 %v1027, 1e-05
        %v1030 = vrcp.pop %v1028
        %v1031 = vrcp.pop %v1029
        %v1032 = vmul.f32 %v980, %v1030
        %v1033 = vmul.f32 %v981, %v1031
        %v1034 = vmul.f32 %v982, %v1030
        %v1035 = vmul.f32 %v983, %v1031
        %1037 = vset.pattern.permute.xlu0 0
        %1038 = vperm.xlu0 %1037, %v960
        %v1039 = vpop.permute.xlu0 %1038
        %1042 = vset.pattern.permute.xlu0 0
        %1043 = vperm.xlu0 %1042, %v961
        %v1044 = vpop.permute.xlu0 %1043
        %v1046 = vmul.f32 %v1032, %v1039
        %v1047 = vmul.f32 %v1033, %v1039
        %v1048 = vmul.f32 %v1034, %v1044
        %v1049 = vmul.f32 %v1035, %v1044
        %1051 = vset.pattern.permute.xlu0 0
        %1052 = vperm.xlu0 %1051, %v962
        %v1053 = vpop.permute.xlu0 %1052
        %1056 = vset.pattern.permute.xlu0 0
        %1057 = vperm.xlu0 %1056, %v963
        %v1058 = vpop.permute.xlu0 %1057
        %v1060 = vadd.f32 %v1046, %v1053
        %v1061 = vadd.f32 %v1047, %v1053
        %v1062 = vadd.f32 %v1048, %v1058
        %v1063 = vadd.f32 %v1049, %v1058
        %v1064 = vld [vmem:[%s7] sm:$0xff]
        %v1065 = vld [vmem:[%s7 + $0x8] sm:$0xff]
        %v1066 = vld [vmem:[%s7 + $0x10] sm:$0xff]
        %v1067 = vld [vmem:[%s7 + $0x18] sm:$0xff]
        %v1068 = vld [vmem:[%s8] sm:$0xff]
        %v1069 = vld [vmem:[%s8 + $0x8] sm:$0xff]
        %v1070 = vld [vmem:[%s8 + $0x10] sm:$0xff]
        %v1071 = vld [vmem:[%s8 + $0x18] sm:$0xff]
        %1073 = vset.pattern.permute.xlu0 0
        %1074 = vperm.xlu0 %1073, %v1068
        %v1075 = vpop.permute.xlu0 %1074
        %1078 = vset.pattern.permute.xlu0 0
        %1079 = vperm.xlu0 %1078, %v1069
        %v1080 = vpop.permute.xlu0 %1079
        %1083 = vset.pattern.permute.xlu0 0
        %1084 = vperm.xlu0 %1083, %v1070
        %v1085 = vpop.permute.xlu0 %1084
        %1088 = vset.pattern.permute.xlu0 0
        %1089 = vperm.xlu0 %1088, %v1071
        %v1090 = vpop.permute.xlu0 %1089
        %v1093 = vsel %vm823, %v1064, 0
        %v1096 = vsel %vm823, %v1065, 0
        %v1099 = vsel %vm823, %v1066, 0
        %v1102 = vsel %vm823, %v1067, 0
        %1104 = vmatpush.msra.mxu0 0.0
        %1105 = vmatpush.msra.mxu0 0.0
        %1106 = vmatpush.msra.mxu0 0.0
        %1107 = vmatpush.msra.mxu0 0.0
        %1108 = vmatpush.msra.mxu0 0.0
        %1109 = vmatpush.msra.mxu0 0.0
        %1110 = vmatpush.msra.mxu0 0.0
        %1111 = vmatpush.msra.mxu0 0.0
        %1112 = vmatpush.msra.mxu0 0.0
        %1113 = vmatpush.msra.mxu0 0.0
        %1114 = vmatpush.msra.mxu0 0.0
        %1115 = vmatpush.msra.mxu0 0.0
        %1116 = vmatpush.msra.mxu0 0.0
        %1117 = vmatpush.msra.mxu0 0.0
        %1118 = vmatpush.msra.mxu0 %v1062
        %1119 = vmatpush.msra.mxu0 %v1060
        %1120 = vmatmul.f32.gmra.mxu0 %v1093
        %v1121 = vpop.f32.mrf.mxu0
        %v1122 = vadd.f32 %v1075, %v1121
        %1123 = vmatmul.f32.gmra.mxu0 %v1096
        %v1124 = vpop.f32.mrf.mxu0
        %v1125 = vadd.f32 %v1080, %v1124
        %1126 = vmatmul.f32.gmra.mxu0 %v1099
        %v1127 = vpop.f32.mrf.mxu0
        %v1128 = vadd.f32 %v1085, %v1127
        %1129 = vmatmul.f32.gmra.mxu0 %v1102
        %v1130 = vpop.f32.mrf.mxu0
        %v1131 = vadd.f32 %v1090, %v1130
        %1132 = vdwg.mxu0
        %1133 = vmatpush.msra.mxu0 0.0
        %1134 = vmatpush.msra.mxu0 0.0
        %1135 = vmatpush.msra.mxu0 0.0
        %1136 = vmatpush.msra.mxu0 0.0
        %1137 = vmatpush.msra.mxu0 0.0
        %1138 = vmatpush.msra.mxu0 0.0
        %1139 = vmatpush.msra.mxu0 0.0
        %1140 = vmatpush.msra.mxu0 0.0
        %1141 = vmatpush.msra.mxu0 0.0
        %1142 = vmatpush.msra.mxu0 0.0
        %1143 = vmatpush.msra.mxu0 0.0
        %1144 = vmatpush.msra.mxu0 0.0
        %1145 = vmatpush.msra.mxu0 0.0
        %1146 = vmatpush.msra.mxu0 0.0
        %1147 = vmatpush.msra.mxu0 %v1063
        %1148 = vmatpush.msra.mxu0 %v1061
        %1149 = vmatmul.f32.gmra.mxu0 %v1093
        %v1150 = vpop.f32.mrf.mxu0
        %v1151 = vadd.f32 %v1075, %v1150
        %1152 = vmatmul.f32.gmra.mxu0 %v1096
        %v1153 = vpop.f32.mrf.mxu0
        %v1154 = vadd.f32 %v1080, %v1153
        %1155 = vmatmul.f32.gmra.mxu0 %v1099
        %v1156 = vpop.f32.mrf.mxu0
        %v1157 = vadd.f32 %v1085, %v1156
        %1158 = vmatmul.f32.gmra.mxu0 %v1102
        %v1159 = vpop.f32.mrf.mxu0
        %v1160 = vadd.f32 %v1090, %v1159
        %1161 = vdwg.mxu0
        %v1162 = vmul.f32 %v1122, 0.5
        %v1163 = vmul.f32 %v1151, 0.5
        %v1164 = vmul.f32 %v1125, 0.5
        %v1165 = vmul.f32 %v1154, 0.5
        %v1166 = vmul.f32 %v1128, 0.5
        %v1167 = vmul.f32 %v1157, 0.5
        %v1168 = vmul.f32 %v1131, 0.5
        %v1169 = vmul.f32 %v1160, 0.5
        %v1170 = vrcp.pop 1.4142135
        %v1171 = vmul.f32 1.4142135, %v1170
        %v1172 = vsub.f32 1.0, %v1171
        %v1173 = vmul.f32 %v1170, %v1172
        %v1174 = vadd.f32 %v1170, %v1173
        %vm1175 = vweird.f32 %v1170
        %v1176 = vsel %vm1175, %v1170, %v1174
        %v1177 = vmul.f32 %v1122, %v1176
        %v1178 = vmul.f32 %v1151, %v1176
        %v1179 = vmul.f32 %v1125, %v1176
        %v1180 = vmul.f32 %v1154, %v1176
        %v1181 = vmul.f32 %v1128, %v1176
        %v1182 = vmul.f32 %v1157, %v1176
        %v1183 = vmul.f32 %v1131, %v1176
        %v1184 = vmul.f32 %v1160, %v1176
        %v1185 = vmul.f32 %v1177, %v1177
        %v1186 = vmin.f32 16.0, %v1185
        %v1187 = vmul.f32 %v1186, 2.1237322e-06
        %v1188 = vadd.f32 %v1187, 0.00028619796
        %v1189 = vmul.f32 %v1186, %v1188
        %v1190 = vadd.f32 %v1189, 0.0036580483
        %v1191 = vmul.f32 %v1186, %v1190
        %v1192 = vadd.f32 %v1191, 0.05243302
        %v1193 = vmul.f32 %v1186, %v1192
        %v1194 = vadd.f32 %v1193, 0.18741608
        %v1195 = vmul.f32 %v1186, %v1194
        %v1196 = vadd.f32 %v1195, 1.1283791
        %v1197 = vmul.f32 %v1177, %v1196
        %v1198 = vmul.f32 %v1186, 3.8918573e-05
        %v1199 = vadd.f32 %v1198, 0.001143296
        %v1200 = vmul.f32 %v1186, %v1199
        %v1201 = vadd.f32 %v1200, 0.014752088
        %v1202 = vmul.f32 %v1186, %v1201
        %v1203 = vadd.f32 %v1202, 0.112945676
        %v1204 = vmul.f32 %v1186, %v1203
        %v1205 = vadd.f32 %v1204, 0.4994258
        %v1206 = vmul.f32 %v1186, %v1205
        %v1207 = vadd.f32 %v1206, 1.0
        %v1208 = vrcp.pop %v1207
        %v1209 = vmul.f32 %v1207, %v1208
        %v1210 = vsub.f32 1.0, %v1209
        %v1211 = vmul.f32 %v1208, %v1210
        %v1212 = vadd.f32 %v1208, %v1211
        %vm1213 = vweird.f32 %v1207
        %vm1214 = vweird.f32 %v1208
        %vm1215 = vmor %vm1213, %vm1214
        %v1216 = vsel %vm1215, %v1208, %v1212
        %v1217 = vand.u32 2147483647, %v1207
        %vm1218 = vcmp.eq.f32.partialorder %v1217, 8.507059e+37
        %v1219 = vand.u32 %v1207, 2147483648
        %v1220 = vor.u32 1.1754944e-38, %v1219
        %v1221 = vsel %vm1218, %v1220, %v1216
        %v1222 = vmul.f32 %v1197, %v1221
        %v1223 = vmin.f32 %v1222, 1.0
        %v1224 = vmax.f32 %v1223, -1.0
        %v1225 = vmul.f32 %v1178, %v1178
        %v1226 = vmin.f32 16.0, %v1225
        %v1227 = vmul.f32 %v1226, 2.1237322e-06
        %v1228 = vadd.f32 %v1227, 0.00028619796
        %v1229 = vmul.f32 %v1226, %v1228
        %v1230 = vadd.f32 %v1229, 0.0036580483
        %v1231 = vmul.f32 %v1226, %v1230
        %v1232 = vadd.f32 %v1231, 0.05243302
        %v1233 = vmul.f32 %v1226, %v1232
        %v1234 = vadd.f32 %v1233, 0.18741608
        %v1235 = vmul.f32 %v1226, %v1234
        %v1236 = vadd.f32 %v1235, 1.1283791
        %v1237 = vmul.f32 %v1178, %v1236
        %v1238 = vmul.f32 %v1226, 3.8918573e-05
        %v1239 = vadd.f32 %v1238, 0.001143296
        %v1240 = vmul.f32 %v1226, %v1239
        %v1241 = vadd.f32 %v1240, 0.014752088
        %v1242 = vmul.f32 %v1226, %v1241
        %v1243 = vadd.f32 %v1242, 0.112945676
        %v1244 = vmul.f32 %v1226, %v1243
        %v1245 = vadd.f32 %v1244, 0.4994258
        %v1246 = vmul.f32 %v1226, %v1245
        %v1247 = vadd.f32 %v1246, 1.0
        %v1248 = vrcp.pop %v1247
        %v1249 = vmul.f32 %v1247, %v1248
        %v1250 = vsub.f32 1.0, %v1249
        %v1251 = vmul.f32 %v1248, %v1250
        %v1252 = vadd.f32 %v1248, %v1251
        %vm1253 = vweird.f32 %v1247
        %vm1254 = vweird.f32 %v1248
        %vm1255 = vmor %vm1253, %vm1254
        %v1256 = vsel %vm1255, %v1248, %v1252
        %v1257 = vand.u32 2147483647, %v1247
        %vm1258 = vcmp.eq.f32.partialorder %v1257, 8.507059e+37
        %v1259 = vand.u32 %v1247, 2147483648
        %v1260 = vor.u32 1.1754944e-38, %v1259
        %v1261 = vsel %vm1258, %v1260, %v1256
        %v1262 = vmul.f32 %v1237, %v1261
        %v1263 = vmin.f32 %v1262, 1.0
        %v1264 = vmax.f32 %v1263, -1.0
        %v1265 = vmul.f32 %v1179, %v1179
        %v1266 = vmin.f32 16.0, %v1265
        %v1267 = vmul.f32 %v1266, 2.1237322e-06
        %v1268 = vadd.f32 %v1267, 0.00028619796
        %v1269 = vmul.f32 %v1266, %v1268
        %v1270 = vadd.f32 %v1269, 0.0036580483
        %v1271 = vmul.f32 %v1266, %v1270
        %v1272 = vadd.f32 %v1271, 0.05243302
        %v1273 = vmul.f32 %v1266, %v1272
        %v1274 = vadd.f32 %v1273, 0.18741608
        %v1275 = vmul.f32 %v1266, %v1274
        %v1276 = vadd.f32 %v1275, 1.1283791
        %v1277 = vmul.f32 %v1179, %v1276
        %v1278 = vmul.f32 %v1266, 3.8918573e-05
        %v1279 = vadd.f32 %v1278, 0.001143296
        %v1280 = vmul.f32 %v1266, %v1279
        %v1281 = vadd.f32 %v1280, 0.014752088
        %v1282 = vmul.f32 %v1266, %v1281
        %v1283 = vadd.f32 %v1282, 0.112945676
        %v1284 = vmul.f32 %v1266, %v1283
        %v1285 = vadd.f32 %v1284, 0.4994258
        %v1286 = vmul.f32 %v1266, %v1285
        %v1287 = vadd.f32 %v1286, 1.0
        %v1288 = vrcp.pop %v1287
        %v1289 = vmul.f32 %v1287, %v1288
        %v1290 = vsub.f32 1.0, %v1289
        %v1291 = vmul.f32 %v1288, %v1290
        %v1292 = vadd.f32 %v1288, %v1291
        %vm1293 = vweird.f32 %v1287
        %vm1294 = vweird.f32 %v1288
        %vm1295 = vmor %vm1293, %vm1294
        %v1296 = vsel %vm1295, %v1288, %v1292
        %v1297 = vand.u32 2147483647, %v1287
        %vm1298 = vcmp.eq.f32.partialorder %v1297, 8.507059e+37
        %v1299 = vand.u32 %v1287, 2147483648
        %v1300 = vor.u32 1.1754944e-38, %v1299
        %v1301 = vsel %vm1298, %v1300, %v1296
        %v1302 = vmul.f32 %v1277, %v1301
        %v1303 = vmin.f32 %v1302, 1.0
        %v1304 = vmax.f32 %v1303, -1.0
        %v1305 = vmul.f32 %v1180, %v1180
        %v1306 = vmin.f32 16.0, %v1305
        %v1307 = vmul.f32 %v1306, 2.1237322e-06
        %v1308 = vadd.f32 %v1307, 0.00028619796
        %v1309 = vmul.f32 %v1306, %v1308
        %v1310 = vadd.f32 %v1309, 0.0036580483
        %v1311 = vmul.f32 %v1306, %v1310
        %v1312 = vadd.f32 %v1311, 0.05243302
        %v1313 = vmul.f32 %v1306, %v1312
        %v1314 = vadd.f32 %v1313, 0.18741608
        %v1315 = vmul.f32 %v1306, %v1314
        %v1316 = vadd.f32 %v1315, 1.1283791
        %v1317 = vmul.f32 %v1180, %v1316
        %v1318 = vmul.f32 %v1306, 3.8918573e-05
        %v1319 = vadd.f32 %v1318, 0.001143296
        %v1320 = vmul.f32 %v1306, %v1319
        %v1321 = vadd.f32 %v1320, 0.014752088
        %v1322 = vmul.f32 %v1306, %v1321
        %v1323 = vadd.f32 %v1322, 0.112945676
        %v1324 = vmul.f32 %v1306, %v1323
        %v1325 = vadd.f32 %v1324, 0.4994258
        %v1326 = vmul.f32 %v1306, %v1325
        %v1327 = vadd.f32 %v1326, 1.0
        %v1328 = vrcp.pop %v1327
        %v1329 = vmul.f32 %v1327, %v1328
        %v1330 = vsub.f32 1.0, %v1329
        %v1331 = vmul.f32 %v1328, %v1330
        %v1332 = vadd.f32 %v1328, %v1331
        %vm1333 = vweird.f32 %v1327
        %vm1334 = vweird.f32 %v1328
        %vm1335 = vmor %vm1333, %vm1334
        %v1336 = vsel %vm1335, %v1328, %v1332
        %v1337 = vand.u32 2147483647, %v1327
        %vm1338 = vcmp.eq.f32.partialorder %v1337, 8.507059e+37
        %v1339 = vand.u32 %v1327, 2147483648
        %v1340 = vor.u32 1.1754944e-38, %v1339
        %v1341 = vsel %vm1338, %v1340, %v1336
        %v1342 = vmul.f32 %v1317, %v1341
        %v1343 = vmin.f32 %v1342, 1.0
        %v1344 = vmax.f32 %v1343, -1.0
        %v1345 = vmul.f32 %v1181, %v1181
        %v1346 = vmin.f32 16.0, %v1345
        %v1347 = vmul.f32 %v1346, 2.1237322e-06
        %v1348 = vadd.f32 %v1347, 0.00028619796
        %v1349 = vmul.f32 %v1346, %v1348
        %v1350 = vadd.f32 %v1349, 0.0036580483
        %v1351 = vmul.f32 %v1346, %v1350
        %v1352 = vadd.f32 %v1351, 0.05243302
        %v1353 = vmul.f32 %v1346, %v1352
        %v1354 = vadd.f32 %v1353, 0.18741608
        %v1355 = vmul.f32 %v1346, %v1354
        %v1356 = vadd.f32 %v1355, 1.1283791
        %v1357 = vmul.f32 %v1181, %v1356
        %v1358 = vmul.f32 %v1346, 3.8918573e-05
        %v1359 = vadd.f32 %v1358, 0.001143296
        %v1360 = vmul.f32 %v1346, %v1359
        %v1361 = vadd.f32 %v1360, 0.014752088
        %v1362 = vmul.f32 %v1346, %v1361
        %v1363 = vadd.f32 %v1362, 0.112945676
        %v1364 = vmul.f32 %v1346, %v1363
        %v1365 = vadd.f32 %v1364, 0.4994258
        %v1366 = vmul.f32 %v1346, %v1365
        %v1367 = vadd.f32 %v1366, 1.0
        %v1368 = vrcp.pop %v1367
        %v1369 = vmul.f32 %v1367, %v1368
        %v1370 = vsub.f32 1.0, %v1369
        %v1371 = vmul.f32 %v1368, %v1370
        %v1372 = vadd.f32 %v1368, %v1371
        %vm1373 = vweird.f32 %v1367
        %vm1374 = vweird.f32 %v1368
        %vm1375 = vmor %vm1373, %vm1374
        %v1376 = vsel %vm1375, %v1368, %v1372
        %v1377 = vand.u32 2147483647, %v1367
        %vm1378 = vcmp.eq.f32.partialorder %v1377, 8.507059e+37
        %v1379 = vand.u32 %v1367, 2147483648
        %v1380 = vor.u32 1.1754944e-38, %v1379
        %v1381 = vsel %vm1378, %v1380, %v1376
        %v1382 = vmul.f32 %v1357, %v1381
        %v1383 = vmin.f32 %v1382, 1.0
        %v1384 = vmax.f32 %v1383, -1.0
        %v1385 = vmul.f32 %v1182, %v1182
        %v1386 = vmin.f32 16.0, %v1385
        %v1387 = vmul.f32 %v1386, 2.1237322e-06
        %v1388 = vadd.f32 %v1387, 0.00028619796
        %v1389 = vmul.f32 %v1386, %v1388
        %v1390 = vadd.f32 %v1389, 0.0036580483
        %v1391 = vmul.f32 %v1386, %v1390
        %v1392 = vadd.f32 %v1391, 0.05243302
        %v1393 = vmul.f32 %v1386, %v1392
        %v1394 = vadd.f32 %v1393, 0.18741608
        %v1395 = vmul.f32 %v1386, %v1394
        %v1396 = vadd.f32 %v1395, 1.1283791
        %v1397 = vmul.f32 %v1182, %v1396
        %v1398 = vmul.f32 %v1386, 3.8918573e-05
        %v1399 = vadd.f32 %v1398, 0.001143296
        %v1400 = vmul.f32 %v1386, %v1399
        %v1401 = vadd.f32 %v1400, 0.014752088
        %v1402 = vmul.f32 %v1386, %v1401
        %v1403 = vadd.f32 %v1402, 0.112945676
        %v1404 = vmul.f32 %v1386, %v1403
        %v1405 = vadd.f32 %v1404, 0.4994258
        %v1406 = vmul.f32 %v1386, %v1405
        %v1407 = vadd.f32 %v1406, 1.0
        %v1408 = vrcp.pop %v1407
        %v1409 = vmul.f32 %v1407, %v1408
        %v1410 = vsub.f32 1.0, %v1409
        %v1411 = vmul.f32 %v1408, %v1410
        %v1412 = vadd.f32 %v1408, %v1411
        %vm1413 = vweird.f32 %v1407
        %vm1414 = vweird.f32 %v1408
        %vm1415 = vmor %vm1413, %vm1414
        %v1416 = vsel %vm1415, %v1408, %v1412
        %v1417 = vand.u32 2147483647, %v1407
        %vm1418 = vcmp.eq.f32.partialorder %v1417, 8.507059e+37
        %v1419 = vand.u32 %v1407, 2147483648
        %v1420 = vor.u32 1.1754944e-38, %v1419
        %v1421 = vsel %vm1418, %v1420, %v1416
        %v1422 = vmul.f32 %v1397, %v1421
        %v1423 = vmin.f32 %v1422, 1.0
        %v1424 = vmax.f32 %v1423, -1.0
        %v1425 = vmul.f32 %v1183, %v1183
        %v1426 = vmin.f32 16.0, %v1425
        %v1427 = vmul.f32 %v1426, 2.1237322e-06
        %v1428 = vadd.f32 %v1427, 0.00028619796
        %v1429 = vmul.f32 %v1426, %v1428
        %v1430 = vadd.f32 %v1429, 0.0036580483
        %v1431 = vmul.f32 %v1426, %v1430
        %v1432 = vadd.f32 %v1431, 0.05243302
        %v1433 = vmul.f32 %v1426, %v1432
        %v1434 = vadd.f32 %v1433, 0.18741608
        %v1435 = vmul.f32 %v1426, %v1434
        %v1436 = vadd.f32 %v1435, 1.1283791
        %v1437 = vmul.f32 %v1183, %v1436
        %v1438 = vmul.f32 %v1426, 3.8918573e-05
        %v1439 = vadd.f32 %v1438, 0.001143296
        %v1440 = vmul.f32 %v1426, %v1439
        %v1441 = vadd.f32 %v1440, 0.014752088
        %v1442 = vmul.f32 %v1426, %v1441
        %v1443 = vadd.f32 %v1442, 0.112945676
        %v1444 = vmul.f32 %v1426, %v1443
        %v1445 = vadd.f32 %v1444, 0.4994258
        %v1446 = vmul.f32 %v1426, %v1445
        %v1447 = vadd.f32 %v1446, 1.0
        %v1448 = vrcp.pop %v1447
        %v1449 = vmul.f32 %v1447, %v1448
        %v1450 = vsub.f32 1.0, %v1449
        %v1451 = vmul.f32 %v1448, %v1450
        %v1452 = vadd.f32 %v1448, %v1451
        %vm1453 = vweird.f32 %v1447
        %vm1454 = vweird.f32 %v1448
        %vm1455 = vmor %vm1453, %vm1454
        %v1456 = vsel %vm1455, %v1448, %v1452
        %v1457 = vand.u32 2147483647, %v1447
        %vm1458 = vcmp.eq.f32.partialorder %v1457, 8.507059e+37
        %v1459 = vand.u32 %v1447, 2147483648
        %v1460 = vor.u32 1.1754944e-38, %v1459
        %v1461 = vsel %vm1458, %v1460, %v1456
        %v1462 = vmul.f32 %v1437, %v1461
        %v1463 = vmin.f32 %v1462, 1.0
        %v1464 = vmax.f32 %v1463, -1.0
        %v1465 = vmul.f32 %v1184, %v1184
        %v1466 = vmin.f32 16.0, %v1465
        %v1467 = vmul.f32 %v1466, 2.1237322e-06
        %v1468 = vadd.f32 %v1467, 0.00028619796
        %v1469 = vmul.f32 %v1466, %v1468
        %v1470 = vadd.f32 %v1469, 0.0036580483
        %v1471 = vmul.f32 %v1466, %v1470
        %v1472 = vadd.f32 %v1471, 0.05243302
        %v1473 = vmul.f32 %v1466, %v1472
        %v1474 = vadd.f32 %v1473, 0.18741608
        %v1475 = vmul.f32 %v1466, %v1474
        %v1476 = vadd.f32 %v1475, 1.1283791
        %v1477 = vmul.f32 %v1184, %v1476
        %v1478 = vmul.f32 %v1466, 3.8918573e-05
        %v1479 = vadd.f32 %v1478, 0.001143296
        %v1480 = vmul.f32 %v1466, %v1479
        %v1481 = vadd.f32 %v1480, 0.014752088
        %v1482 = vmul.f32 %v1466, %v1481
        %v1483 = vadd.f32 %v1482, 0.112945676
        %v1484 = vmul.f32 %v1466, %v1483
        %v1485 = vadd.f32 %v1484, 0.4994258
        %v1486 = vmul.f32 %v1466, %v1485
        %v1487 = vadd.f32 %v1486, 1.0
        %v1488 = vrcp.pop %v1487
        %v1489 = vmul.f32 %v1487, %v1488
        %v1490 = vsub.f32 1.0, %v1489
        %v1491 = vmul.f32 %v1488, %v1490
        %v1492 = vadd.f32 %v1488, %v1491
        %vm1493 = vweird.f32 %v1487
        %vm1494 = vweird.f32 %v1488
        %vm1495 = vmor %vm1493, %vm1494
        %v1496 = vsel %vm1495, %v1488, %v1492
        %v1497 = vand.u32 2147483647, %v1487
        %vm1498 = vcmp.eq.f32.partialorder %v1497, 8.507059e+37
        %v1499 = vand.u32 %v1487, 2147483648
        %v1500 = vor.u32 1.1754944e-38, %v1499
        %v1501 = vsel %vm1498, %v1500, %v1496
        %v1502 = vmul.f32 %v1477, %v1501
        %v1503 = vmin.f32 %v1502, 1.0
        %v1504 = vmax.f32 %v1503, -1.0
        %v1505 = vadd.f32 %v1224, 1.0
        %v1506 = vadd.f32 %v1264, 1.0
        %v1507 = vadd.f32 %v1304, 1.0
        %v1508 = vadd.f32 %v1344, 1.0
        %v1509 = vadd.f32 %v1384, 1.0
        %v1510 = vadd.f32 %v1424, 1.0
        %v1511 = vadd.f32 %v1464, 1.0
        %v1512 = vadd.f32 %v1504, 1.0
        %v1513 = vmul.f32 %v1162, %v1505
        %v1514 = vmul.f32 %v1163, %v1506
        %v1515 = vmul.f32 %v1164, %v1507
        %v1516 = vmul.f32 %v1165, %v1508
        %v1517 = vmul.f32 %v1166, %v1509
        %v1518 = vmul.f32 %v1167, %v1510
        %v1519 = vmul.f32 %v1168, %v1511
        %v1520 = vmul.f32 %v1169, %v1512
        %v1521 = vld [vmem:[%s9] sm:$0xff]
        %v1522 = vld [vmem:[%s9 + $0x8] sm:$0xff]
        %vm1523 = vcmask 261120
        %v1525 = vsel %vm1523, %v1521, 0
        %v1528 = vsel %vm1523, %v1522, 0
        %1530 = vmatpush.msra.mxu0 0.0
        %1531 = vmatpush.msra.mxu0 0.0
        %1532 = vmatpush.msra.mxu0 0.0
        %1533 = vmatpush.msra.mxu0 0.0
        %1534 = vmatpush.msra.mxu0 0.0
        %1535 = vmatpush.msra.mxu0 0.0
        %1536 = vmatpush.msra.mxu0 0.0
        %1537 = vmatpush.msra.mxu0 0.0
        %1538 = vmatpush.msra.mxu0 0.0
        %1539 = vmatpush.msra.mxu0 0.0
        %1540 = vmatpush.msra.mxu0 0.0
        %1541 = vmatpush.msra.mxu0 0.0
        %1542 = vmatpush.msra.mxu0 %v1519
        %1543 = vmatpush.msra.mxu0 %v1517
        %1544 = vmatpush.msra.mxu0 %v1515
        %1545 = vmatpush.msra.mxu0 %v1513
        %1546 = vmatmul.f32.gmra.mxu0 %v1525
        %v1547 = vpop.f32.mrf.mxu0
        %v1548 = vadd.f32 0.0, %v1547
        %1549 = vmatmul.f32.gmra.mxu0 %v1528
        %v1550 = vpop.f32.mrf.mxu0
        %v1551 = vadd.f32 0.0, %v1550
        %1552 = vdwg.mxu0
        %1553 = vmatpush.msra.mxu0 0.0
        %1554 = vmatpush.msra.mxu0 0.0
        %1555 = vmatpush.msra.mxu0 0.0
        %1556 = vmatpush.msra.mxu0 0.0
        %1557 = vmatpush.msra.mxu0 0.0
        %1558 = vmatpush.msra.mxu0 0.0
        %1559 = vmatpush.msra.mxu0 0.0
        %1560 = vmatpush.msra.mxu0 0.0
        %1561 = vmatpush.msra.mxu0 0.0
        %1562 = vmatpush.msra.mxu0 0.0
        %1563 = vmatpush.msra.mxu0 0.0
        %1564 = vmatpush.msra.mxu0 0.0
        %1565 = vmatpush.msra.mxu0 %v1520
        %1566 = vmatpush.msra.mxu0 %v1518
        %1567 = vmatpush.msra.mxu0 %v1516
        %1568 = vmatpush.msra.mxu0 %v1514
        %1569 = vmatmul.f32.gmra.mxu0 %v1525
        %v1570 = vpop.f32.mrf.mxu0
        %v1571 = vadd.f32 0.0, %v1570
        %1572 = vmatmul.f32.gmra.mxu0 %v1528
        %v1573 = vpop.f32.mrf.mxu0
        %v1574 = vadd.f32 0.0, %v1573
        %1575 = vdwg.mxu0
        %v1576 = vadd.f32 %v956, %v1548
        %v1577 = vadd.f32 %v957, %v1571
        %v1578 = vadd.f32 %v958, %v1551
        %v1579 = vadd.f32 %v959, %v1574
        %v1580 = vld [vmem:[%s10] sm:$0xff]
        %v1581 = vld [vmem:[%s10 + $0x8] sm:$0xff]
        %1583 = vset.pattern.permute.xlu0 0
        %1584 = vperm.xlu0 %1583, %v1580
        %v1585 = vpop.permute.xlu0 %1584
        %1588 = vset.pattern.permute.xlu0 0
        %1589 = vperm.xlu0 %1588, %v1581
        %v1590 = vpop.permute.xlu0 %1589
        %v1592 = vadd.f32 %v1576, %v1585
        %v1593 = vadd.f32 %v1577, %v1585
        %v1594 = vadd.f32 %v1578, %v1590
        %v1595 = vadd.f32 %v1579, %v1590
        %v1596 = vpack.c.bf16 %v1593, %v1592
        %v1597 = vpack.c.bf16 %v1595, %v1594
        %1598 = vst [vmem:[%s697] sm:$0xff] %v1596
        %1599 = vst [vmem:[%s697 + $0x8] sm:$0xff] %v1597
        %v1600 = vld [vmem:[%s13] sm:$0xff]
        %v1601 = vld [vmem:[%s13 + $0x8] sm:$0xff]
        %v1602 = vld [vmem:[%s14] sm:$0xff]
        %v1603 = vld [vmem:[%s14 + $0x8] sm:$0xff]
        %v1604 = vadd.f32 %v1592, %v1594
        %v1605 = vrot.slane %v1604, 4
        %v1606 = vadd.f32 %v1604, %v1605
        %v1607 = vrot.slane %v1606, 2
        %v1608 = vadd.f32 %v1606, %v1607
        %v1609 = vrot.slane %v1608, 1
        %v1610 = vadd.f32 %v1608, %v1609
        %v1611 = vadd.f32 %v1593, %v1595
        %v1612 = vrot.slane %v1611, 4
        %v1613 = vadd.f32 %v1611, %v1612
        %v1614 = vrot.slane %v1613, 2
        %v1615 = vadd.f32 %v1613, %v1614
        %v1616 = vrot.slane %v1615, 1
        %v1617 = vadd.f32 %v1615, %v1616
        %v1618 = vmul.f32 %v1610, %v730
        %v1619 = vmul.f32 %v1617, %v730
        %v1620 = vsub.f32 %v1592, %v1618
        %v1621 = vsub.f32 %v1593, %v1619
        %v1622 = vsub.f32 %v1594, %v1618
        %v1623 = vsub.f32 %v1595, %v1619
        %v1624 = vmul.f32 %v1620, %v1620
        %v1625 = vmul.f32 %v1621, %v1621
        %v1626 = vmul.f32 %v1622, %v1622
        %v1627 = vmul.f32 %v1623, %v1623
        %v1628 = vadd.f32 %v1624, %v1626
        %v1629 = vrot.slane %v1628, 4
        %v1630 = vadd.f32 %v1628, %v1629
        %v1631 = vrot.slane %v1630, 2
        %v1632 = vadd.f32 %v1630, %v1631
        %v1633 = vrot.slane %v1632, 1
        %v1634 = vadd.f32 %v1632, %v1633
        %v1635 = vadd.f32 %v1625, %v1627
        %v1636 = vrot.slane %v1635, 4
        %v1637 = vadd.f32 %v1635, %v1636
        %v1638 = vrot.slane %v1637, 2
        %v1639 = vadd.f32 %v1637, %v1638
        %v1640 = vrot.slane %v1639, 1
        %v1641 = vadd.f32 %v1639, %v1640
        %v1642 = vmul.f32 %v1634, %v730
        %v1643 = vmul.f32 %v1641, %v730
        %v1644 = vrsqrt.pop %v1642
        %v1645 = vmul.f32 %v1644, %v1642
        %v1646 = vmul.f32 %v1645, %v1644
        %v1647 = vmul.f32 0.5, %v1646
        %v1648 = vsub.f32 1.5, %v1647
        %v1649 = vmul.f32 %v1644, %v1648
        %v1650 = vmul.f32 %v1642, %v1649
        %vm1651 = vcmp.eq.f32.partialorder %v1642, inf
        %v1652 = vsel %vm1651, %v1642, %v1650
        %vm1653 = vcmp.eq.f32.partialorder %v1642, 0.0
        %v1654 = vand.u32 %v1642, 2147483648
        %v1655 = vsel %vm1653, %v1654, %v1652
        %v1656 = vrsqrt.pop %v1643
        %v1657 = vmul.f32 %v1656, %v1643
        %v1658 = vmul.f32 %v1657, %v1656
        %v1659 = vmul.f32 0.5, %v1658
        %v1660 = vsub.f32 1.5, %v1659
        %v1661 = vmul.f32 %v1656, %v1660
        %v1662 = vmul.f32 %v1643, %v1661
        %vm1663 = vcmp.eq.f32.partialorder %v1643, inf
        %v1664 = vsel %vm1663, %v1643, %v1662
        %vm1665 = vcmp.eq.f32.partialorder %v1643, 0.0
        %v1666 = vand.u32 %v1643, 2147483648
        %v1667 = vsel %vm1665, %v1666, %v1664
        %v1668 = vadd.f32 %v1655, 1e-05
        %v1669 = vadd.f32 %v1667, 1e-05
        %v1670 = vrcp.pop %v1668
        %v1671 = vrcp.pop %v1669
        %v1672 = vmul.f32 %v1620, %v1670
        %v1673 = vmul.f32 %v1621, %v1671
        %v1674 = vmul.f32 %v1622, %v1670
        %v1675 = vmul.f32 %v1623, %v1671
        %1677 = vset.pattern.permute.xlu0 0
        %1678 = vperm.xlu0 %1677, %v1600
        %v1679 = vpop.permute.xlu0 %1678
        %1682 = vset.pattern.permute.xlu0 0
        %1683 = vperm.xlu0 %1682, %v1601
        %v1684 = vpop.permute.xlu0 %1683
        %v1686 = vmul.f32 %v1672, %v1679
        %v1687 = vmul.f32 %v1673, %v1679
        %v1688 = vmul.f32 %v1674, %v1684
        %v1689 = vmul.f32 %v1675, %v1684
        %1691 = vset.pattern.permute.xlu0 0
        %1692 = vperm.xlu0 %1691, %v1602
        %v1693 = vpop.permute.xlu0 %1692
        %1696 = vset.pattern.permute.xlu0 0
        %1697 = vperm.xlu0 %1696, %v1603
        %v1698 = vpop.permute.xlu0 %1697
        %v1700 = vadd.f32 %v1686, %v1693
        %v1701 = vadd.f32 %v1687, %v1693
        %v1702 = vadd.f32 %v1688, %v1698
        %v1703 = vadd.f32 %v1689, %v1698
        %v1704 = vadd.f32 %v1700, %v1702
        %v1705 = vrot.slane %v1704, 4
        %v1706 = vadd.f32 %v1704, %v1705
        %v1707 = vrot.slane %v1706, 2
        %v1708 = vadd.f32 %v1706, %v1707
        %v1709 = vrot.slane %v1708, 1
        %v1710 = vadd.f32 %v1708, %v1709
        %v1711 = vadd.f32 %v1701, %v1703
        %v1712 = vrot.slane %v1711, 4
        %v1713 = vadd.f32 %v1711, %v1712
        %v1714 = vrot.slane %v1713, 2
        %v1715 = vadd.f32 %v1713, %v1714
        %v1716 = vrot.slane %v1715, 1
        %v1717 = vadd.f32 %v1715, %v1716
        %v1720 = vrot.slane %v1717, 7
        %vm1721 = vcmask 1040384
        %v1722 = vsel %vm1721, %v1710, %v1720
        %v1724 = vlaneseq
        %vm1725 = vcmp.ge.s32.totalorder %v1724, 0
        %vm1726 = vcmp.lt.s32.totalorder %v1724, 256
        %vm1727 = vmand %vm1725, %vm1726
        %1728 = vst.msk [vmem:[%s648] sm:$0x3] %vm1727, %v1722
        %v1729 = vlaneseq
        %v1730 = vand.u32 %v1729, 127
        %v1731 = vadd.s32 %v1730, 128
        %s1732 = smul.u32 %s40, 256
        %v1733 = vstv %s1732
        %v1734 = vadd.s32 %v1730, %v1733
        %v1735 = vadd.s32 %v1731, %v1733
        %vm1736 = vcmp.lt.s32.totalorder %v1734, 256
        %vm1737 = vcmp.lt.s32.totalorder %v1735, 256
        %v1738 = vsel %vm1736, 1, 0
        %v1739 = vsel %vm1737, 1, 0
        %v1740 = vcvt.s32.f32 %v1738
        %v1741 = vcvt.s32.f32 %v1739
        %v1742 = vmul.f32 %v1700, %v1740
        %v1743 = vmul.f32 %v1701, %v1741
        %v1744 = vmul.f32 %v1702, %v1740
        %v1745 = vmul.f32 %v1703, %v1741
        %v1746 = vadd.f32 %v1742, %v1743
        %1747 = vadd.xlane.f32.xlu0 %v1746
        %v1748 = vpop.xlane.xlu0 %1747
        %v1749 = vadd.f32 %v1744, %v1745
        %1750 = vadd.xlane.f32.xlu0 %v1749
        %v1751 = vpop.xlane.xlu0 %1750
        %vm1752 = vcmask 64512
        %1753 = vst.msk [vmem:[%s655] sm:$0xff] %vm1752, %v1748
        %1754 = vst.msk [vmem:[%s655 + $0x8] sm:$0xff] %vm1752, %v1751
        %s1755 = smul.u32 2, %s40
        %p1756 = scmp.lt.s32.totalorder %s39, 1
        %s1757 = scalar_select %p1756, %s39, 1
        %p1758 = scmp.lt.s32.totalorder %s1755, 1
        %s1759 = scalar_select %p1758, %s1755, 1
        %s1760 = smul.addr %s1757, 4
        %s1761 = sadd.s32 %s1759, %s1760
        %s1762 = smul.addr %s1761, 4
        %s1763 = scalar_lea.vmem %s15, %s1762
        %s1764 = sand.u32 %s426, 1
        %s1765 = scalar_lea.sflag [#allocation3], %s1764
        %s1766 = sand.u32 %s426, 1
        %s1767 = smul.addr %s1766, 2
        %s1768 = scalar_lea.vmem [#allocation2], %s1767
        %s1769 = sand.u32 %s454, 1
        %s1770 = scalar_lea.sflag [#allocation5], %s1769
        %s1771 = sand.u32 %s454, 1
        %s1772 = smul.addr %s1771, 16
        %s1773 = scalar_lea.vmem [#allocation4], %s1772
        // Predicated region
        $region81: #{up_forward.3} parent=79 // pred_check
          %p1774 = pneg %p408
        $region82: #{up_forward.3} parent=79 // pred_check_branch
          %1776 = sbr.rel (%p1774) target = $region84
        $region83: #{up_forward.3} parent=79 // pred_region
          %s1777 = smul.u32 2, %s40
        $region84: #{up_forward.3} parent=79 // pred_fallthru
          _
        // Predicated region
        $region85: #{up_forward.3} parent=79 // pred_check
          %p1778 = pneg %p436
        $region86: #{up_forward.3} parent=79 // pred_check_branch
          %1780 = sbr.rel (%p1778) target = $region88
        $region87: #{up_forward.3} parent=79 // pred_region
          %s1781 = smul.u32 2, %s40
          %1783 = vsyncadd %s1765, 0
          %s1784 = smul.addr %s39, 2
          %s1785 = sadd.s32 %s1781, %s1784
          %s1786 = scalar_lea.hbm %s16, %s1785
          %s1788 = sshll.u32 %s1768, 4
          %s1789 = int_to_ptr.vmem [resolvable:$true] %s1788
          %s1790 = sshll.u32 %s1786, 4
          %s1791 = int_to_ptr.hbm [resolvable:$true] %s1790
          %1793 = dma.vmem_to_hbm [thread:$0]  %s1789, 32, %s1791, %s1765
        $region88: #{up_forward.3} parent=79 // pred_fallthru
          _
        // Predicated region
        $region89: #{up_forward.3} parent=79 // pred_check
          %p1794 = pneg %p464
        $region90: #{up_forward.3} parent=79 // pred_check_branch
          %1796 = sbr.rel (%p1794) target = $region92
        $region91: #{up_forward.3} parent=79 // pred_region
          %1798 = vsyncadd %s1770, 0
          %s1799 = smul.addr %s40, 2
          %s1800 = smul.addr %s39, 2
          %s1801 = sadd.s32 %s1799, %s1800
          %s1802 = smul.addr %s1801, 8
          %s1803 = scalar_lea.hbm %s17, %s1802
          %s1804 = sshll.u32 %s1773, 4
          %s1805 = int_to_ptr.vmem [resolvable:$true] %s1804
          %s1806 = sshll.u32 %s1803, 4
          %s1807 = int_to_ptr.hbm [resolvable:$true] %s1806
          %1812 = dma.vmem_to_hbm [thread:$0]  %s1805, 256, %s1807, %s1770, 128, 128, 8
        $region92: #{up_forward.3} parent=79 // pred_fallthru
          _
      $region80: #{up_forward.3} parent=5 // pred_fallthru
        _
      %p1813 = scmp.le.s32.totalorder 2, %s30
      // Predicated region
      $region93: #{up_forward.3} parent=5 // pred_check
        %p1814 = pneg %p1813
      $region94: #{up_forward.3} parent=5 // pred_check_branch
        %1816 = sbr.rel (%p1814) target = $region96
      $region95: #{up_forward.3} parent=5 // pred_region
        %s1817 = ssub.s32 %s30, 2
        // Predicated region
        $region97: #{up_forward.3} parent=95 // pred_check
          %p1818 = pneg %p414
        $region98: #{up_forward.3} parent=95 // pred_check_branch
          %1820 = sbr.rel (%p1818) target = $region100
        $region99: #{up_forward.3} parent=95 // pred_region
          %s1821 = smul.u32 2, %s42
          %p1822 = scmp.lt.s32.totalorder %s41, 1
          %s1823 = scalar_select %p1822, %s41, 1
          %p1824 = scmp.lt.s32.totalorder %s1821, 1
          %s1825 = scalar_select %p1824, %s1821, 1
          %s1826 = smul.addr %s1823, 4
          %s1827 = sadd.s32 %s1825, %s1826
          %s1828 = smul.addr %s1827, 4
          %s1829 = scalar_lea.vmem %s15, %s1828
        $region100: #{up_forward.3} parent=95 // pred_fallthru
          _
        // Predicated region
        $region101: #{up_forward.3} parent=95 // pred_check
          %p1830 = pneg %p442
        $region102: #{up_forward.3} parent=95 // pred_check_branch
          %1832 = sbr.rel (%p1830) target = $region104
        $region103: #{up_forward.3} parent=95 // pred_region
          %s1833 = sand.u32 %s427, 1
          %s1834 = scalar_lea.sflag [#allocation3], %s1833
          %s1835 = sand.u32 %s427, 1
          %s1836 = smul.addr %s1835, 2
          %s1837 = scalar_lea.vmem [#allocation2], %s1836
          %1839 = dma.done %s1834, 32
        $region104: #{up_forward.3} parent=95 // pred_fallthru
          _
        // Predicated region
        $region105: #{up_forward.3} parent=95 // pred_check
          %p1840 = pneg %p470
        $region106: #{up_forward.3} parent=95 // pred_check_branch
          %1842 = sbr.rel (%p1840) target = $region108
        $region107: #{up_forward.3} parent=95 // pred_region
          %s1843 = sand.u32 %s455, 1
          %s1844 = scalar_lea.sflag [#allocation5], %s1843
          %s1845 = sand.u32 %s455, 1
          %s1846 = smul.addr %s1845, 16
          %s1847 = scalar_lea.vmem [#allocation4], %s1846
          %1849 = dma.done %s1844, 256
        $region108: #{up_forward.3} parent=95 // pred_fallthru
          _
      $region96: #{up_forward.3} parent=5 // pred_fallthru
        _
    $region6: #{up_forward.3} parent=1 // loop_footer
      %s34 = sadd.s32 1, %s30
    $region7: #{up_forward.3} parent=1 // loop_footer_branch
      %29 = sbr.rel target = $region3
    $region8: #{up_forward.3} parent=1 // loop_exit
      _
    %1850 = vsyncpa [#allocation3], 1
    %s1851 = scalar_lea.sflag [#allocation3], 1
    %1852 = vsyncpa %s1851, 1
    %1853 = vsyncpa [#allocation5], 1
    %s1854 = scalar_lea.sflag [#allocation5], 1
    %1855 = vsyncpa %s1854, 1

</llo_original>
